<compile_context>
chip_gen: v7x
topology: tpu7x:2x2x1
jax: 0.10.0
libtpu: 0.0.40
codegen_flags: <defaults>
</compile_context>

<pallas_src>
import functools

import jax
import jax.numpy as jnp
from jax.experimental import pallas as pl
from jax.experimental.pallas import tpu as pltpu

EPS = 1e-5                                   # torch.nn.BatchNorm2d default eps
_VMEM_LIMIT_BYTES = 48 * 1024 * 1024         # explicit; leaves headroom on v7x (64 MiB VMEM)
_RESIDENT_BUDGET_BYTES = 36 * 1024 * 1024    # guard for the double-buffered resident image


def _compiler_params():
    return pltpu.CompilerParams(
        dimension_semantics=("parallel", "parallel"),   # batch x row-tile, both independent
        vmem_limit_bytes=_VMEM_LIMIT_BYTES)


# ----------------------------- Pallas kernels -----------------------------

def _bn_conv3x3_relu_stats_kernel(x_ref, scale_ref, shift_ref, w_ref, b_ref,
                                  y_ref, stats_ref):
    """One row-tile of: [prev BN affine] -> zero-pad -> 3x3 conv -> bias -> ReLU,
    plus mean-shifted partial BN statistics of THIS layer.

    x_ref:     (1, H, W, Cin)   bf16  raw (pre-BN) activation / network input, resident
                                      across the row-tile axis (one DMA per batch elem)
    scale_ref: (1, Cin)         f32   gamma * rsqrt(var+eps) of the previous BN (ones for conv1)
    shift_ref: (1, Cin)         f32   beta - mean*scale of the previous BN (zeros for conv1)
    w_ref:     (9*Cin, Cout)    bf16  im2col-flattened 3x3 weights (dy, dx, cin major->minor)
    b_ref:     (1, Cout)        f32   conv bias
    y_ref:     (1, TH, W, Cout) bf16  raw (pre-BN) output activation tile
    stats_ref: (1, 1, 2, Cout)  f32   per-tile [sum, centered sum-of-squares]
    """
    _, TH, W, Cout = y_ref.shape
    _, H, _, Cin = x_ref.shape
    i = pl.program_id(1)
    r0 = i * TH

    scale = scale_ref[...]                                        # (1, Cin) f32
    shift = shift_ref[...]

    # Rows owned by this tile (always in range), normalized with the previous BN affine.
    core = x_ref[0, pl.ds(r0, TH), :, :].astype(jnp.float32)      # (TH, W, Cin)
    core = core * scale + shift

    # Halo rows: clamped dynamic row index + zero mask when out of range.  Zero 'same'
    # padding acts on the *normalized* activation, exactly as in the torch module
    # (BN output is what conv2/conv3 pad), so normalize first, then mask to zero.
    top = x_ref[0, pl.ds(jnp.maximum(r0 - 1, 0), 1), :, :].astype(jnp.float32)
    top = jnp.where(r0 > 0, top * scale + shift, 0.0)             # (1, W, Cin)
    bot = x_ref[0, pl.ds(jnp.minimum(r0 + TH, H - 1), 1), :, :].astype(jnp.float32)
    bot = jnp.where(r0 + TH < H, bot * scale + shift, 0.0)        # (1, W, Cin)

    rows = jnp.concatenate([top, core, bot], axis=0).astype(jnp.bfloat16)   # (TH+2, W, Cin)
    zcol = jnp.zeros((TH + 2, 1, Cin), jnp.bfloat16)
    win = jnp.concatenate([zcol, rows, zcol], axis=1)             # (TH+2, W+2, Cin) bf16

    # im2col: the 9 taps concatenated on the channel (lane) axis -> one K = 9*Cin MXU
    # matmul.  (Alternative per-dy K=3*Cin accumulating matmuls / pltpu.roll swizzles are
    # possible follow-ups if a bundle dump shows the patch shuffle saturating vld/VALU.)
    taps = []
    for dy in range(3):
        rows_dy = win[dy:dy + TH]                                 # (TH, W+2, Cin)
        for dx in range(3):
            taps.append(rows_dy[:, dx:dx + W, :])                 # (TH, W, Cin)
    patches = jnp.concatenate(taps, axis=-1).reshape(TH * W, 9 * Cin)

    acc = jnp.dot(patches, w_ref[...],
                  preferred_element_type=jnp.float32)             # (TH*W, Cout) f32 on MXU
    y = jnp.maximum(acc + b_ref[...], 0.0)                        # bias + ReLU in f32

    y_ref[0] = y.reshape(TH, W, Cout).astype(y_ref.dtype)         # bf16 activation store

    # Mean-shifted per-tile BN partials (avoids E[x^2]-E[x]^2 cancellation); reduced
    # across tiles/batch in the wrapper with the exact parallel-variance combination.
    npix = float(TH * W)
    s = jnp.sum(y, axis=0, keepdims=True)                         # (1, Cout)
    d = y - s * (1.0 / npix)
    css = jnp.sum(d * d, axis=0, keepdims=True)                   # (1, Cout)
    stats_ref[0, 0] = jnp.concatenate([s, css], axis=0)           # (2, Cout)


def _bn_conv1x1_stats_kernel(y_ref, scale_ref, shift_ref, w_ref, b_ref,
                             z_ref, stats_ref):
    """Fused: previous BatchNorm (per-channel affine) -> 1x1 conv + bias, plus BN3 partials.

    y_ref:     (1, TH, W, Cin)  bf16  raw (pre-BN) activation of the previous layer
    scale_ref: (1, Cin)         f32
    shift_ref: (1, Cin)         f32
    w_ref:     (Cin, Cout)      bf16  1x1 conv weights
    b_ref:     (1, Cout)        f32
    z_ref:     (1, TH, W, Cout) bf16  conv3 output tile (pre-BN3, no ReLU)
    stats_ref: (1, 1, 2, Cout)  f32   per-tile [sum, centered sum-of-squares]
    """
    _, TH, W, Cout = z_ref.shape
    Cin = y_ref.shape[-1]

    x = y_ref[0].reshape(TH * W, Cin).astype(jnp.float32)         # merge leading dims only
    x = x * scale_ref[...] + shift_ref[...]                       # normalize in f32
    acc = jnp.dot(x.astype(jnp.bfloat16), w_ref[...],
                  preferred_element_type=jnp.float32) + b_ref[...]

    z_ref[0] = acc.reshape(TH, W, Cout).astype(z_ref.dtype)       # bf16 store

    npix = float(TH * W)
    s = jnp.sum(acc, axis=0, keepdims=True)
    d = acc - s * (1.0 / npix)
    css = jnp.sum(d * d, axis=0, keepdims=True)
    stats_ref[0, 0] = jnp.concatenate([s, css], axis=0)


# ----------------------------- pallas_call wrappers -----------------------------

def bn_conv3x3_relu_stats(x, scale, shift, w_hwio, b, *, row_tile):
    """x: (N, H, W, Cin) bf16 raw pre-BN activation (or input); w_hwio: (3,3,Cin,Cout) f32."""
    N, H, W, Cin = x.shape
    Cout = w_hwio.shape[-1]
    T = H // row_tile
    w_mat = w_hwio.reshape(9 * Cin, Cout).astype(jnp.bfloat16)
    flops = 2 * N * H * W * 9 * Cin * Cout
    bytes_accessed = (N * H * W * Cin * 2 + 9 * Cin * Cout * 2 + (2 * Cin + Cout) * 4
                      + N * H * W * Cout * 2 + N * T * 2 * Cout * 4)
    return pl.pallas_call(
        _bn_conv3x3_relu_stats_kernel,
        grid=(N, T),
        in_specs=[
            # Full raw image for batch n; index constant along the row-tile axis, so it is
            # fetched once per batch element and stays VMEM-resident across row tiles.
            # TODO(synk): for large images switch to a manual halo-DMA pipeline
            # (memory_space=pl.ANY + make_async_copy) or pl.Buffered(1) to shrink the
            # double-buffered resident block (v7x has only 64 MiB VMEM).
            pl.BlockSpec((1, H, W, Cin), lambda n, i: (n, 0, 0, 0)),
            pl.BlockSpec((1, Cin), lambda n, i: (0, 0)),
            pl.BlockSpec((1, Cin), lambda n, i: (0, 0)),
            pl.BlockSpec((9 * Cin, Cout), lambda n, i: (0, 0)),
            pl.BlockSpec((1, Cout), lambda n, i: (0, 0)),
        ],
        out_specs=[
            # TODO(synk): a lane-dense (1, TH, W*Cout) output block would avoid masked
            # 32-lane stores but needs a minor-dim-changing reshape in-kernel; enable once
            # Mosaic reshape support for that case is confirmed on the target jax version.
            pl.BlockSpec((1, row_tile, W, Cout), lambda n, i: (n, i, 0, 0)),
            pl.BlockSpec((1, 1, 2, Cout), lambda n, i: (n, i, 0, 0)),
        ],
        out_shape=(jax.ShapeDtypeStruct((N, H, W, Cout), jnp.bfloat16),
                   jax.ShapeDtypeStruct((N, T, 2, Cout), jnp.float32)),
        compiler_params=_compiler_params(),
        cost_estimate=pl.CostEstimate(flops=flops, transcendentals=0,
                                      bytes_accessed=bytes_accessed),
    )(x, scale, shift, w_mat, b)


def bn_conv1x1_stats(y, scale, shift, w, b, *, row_tile):
    """y: (N, H, W, Cin) bf16 raw pre-BN activation; scale/shift: (1, Cin); w: (Cin, Cout)."""
    N, H, W, Cin = y.shape
    Cout = w.shape[-1]
    T = H // row_tile
    flops = 2 * N * H * W * Cin * Cout
    bytes_accessed = (N * H * W * Cin * 2 + Cin * Cout * 2 + (2 * Cin + Cout) * 4
                      + N * H * W * Cout * 2 + N * T * 2 * Cout * 4)
    return pl.pallas_call(
        _bn_conv1x1_stats_kernel,
        grid=(N, T),
        in_specs=[
            pl.BlockSpec((1, row_tile, W, Cin), lambda n, i: (n, i, 0, 0)),
            pl.BlockSpec((1, Cin), lambda n, i: (0, 0)),
            pl.BlockSpec((1, Cin), lambda n, i: (0, 0)),
            pl.BlockSpec((Cin, Cout), lambda n, i: (0, 0)),
            pl.BlockSpec((1, Cout), lambda n, i: (0, 0)),
        ],
        out_specs=[
            pl.BlockSpec((1, row_tile, W, Cout), lambda n, i: (n, i, 0, 0)),
            pl.BlockSpec((1, 1, 2, Cout), lambda n, i: (n, i, 0, 0)),
        ],
        out_shape=(jax.ShapeDtypeStruct((N, H, W, Cout), jnp.bfloat16),
                   jax.ShapeDtypeStruct((N, T, 2, Cout), jnp.float32)),
        compiler_params=_compiler_params(),
        cost_estimate=pl.CostEstimate(flops=flops, transcendentals=0,
                                      bytes_accessed=bytes_accessed),
    )(y, scale, shift, w.astype(jnp.bfloat16), b)


# ----------------------------- BN stat reduction (tiny, XLA) -----------------------------

def _bn_affine(stats, pixels_per_tile, gamma, beta):
    """stats: (N, T, 2, C) per-tile [sum, centered SS] -> per-channel affine (scale, shift).

    Exact parallel-variance combination:  SS_total = sum_t css_t + n_t * sum_t (m_t - m)^2.
    """
    sums = stats[:, :, 0, :].astype(jnp.float32)                  # (N, T, C)
    css = stats[:, :, 1, :].astype(jnp.float32)                   # (N, T, C)
    count = float(stats.shape[0] * stats.shape[1] * pixels_per_tile)
    mean = jnp.sum(sums, axis=(0, 1)) / count                     # (C,)
    tile_mean = sums / float(pixels_per_tile)                     # (N, T, C)
    var = (jnp.sum(css, axis=(0, 1))
           + float(pixels_per_tile) * jnp.sum(jnp.square(tile_mean - mean), axis=(0, 1))) / count
    var = jnp.maximum(var, 0.0)
    scale = gamma[0] * jax.lax.rsqrt(var + EPS)                   # (C,)
    shift = beta[0] - mean * scale
    return scale[None, :], shift[None, :]                         # (1, C) each


def _pick_row_tile(H, W, n_batch=1):
    # Large tiles amortize the ~0.35 us per-grid-step overhead; keep >= 2 row tiles per
    # image when the batch alone cannot feed both v7x TensorCores.
    target_rows = max(1, 8192 // max(W, 1))
    max_rows = H if n_batch >= 2 else max(1, H // 2)
    th = max(1, min(target_rows, max_rows))
    while H % th:
        th -= 1
    return th


def _resident_block_bytes(H, W, C):
    # bf16 (1, H, W, C) VMEM block: last two dims tiled to (16 sublanes, 128 lanes).
    lanes = -(-C // 128) * 128
    sublanes = -(-W // 16) * 16
    return H * sublanes * lanes * 2


# ----------------------------- parameter init (matches torch init) -----------------------------

def _kaiming_uniform(key, shape, fan_in):
    # torch.nn.init.kaiming_uniform_(w) defaults: bound = sqrt(6 / fan_in)
    bound = (6.0 / fan_in) ** 0.5
    return jax.random.uniform(key, shape, jnp.float32, -bound, bound)


def init_mynet_params(key, input_dim, n_channel, n_conv):
    keys = jax.random.split(key, n_conv + 2)
    params = {
        "conv1_w": _kaiming_uniform(keys[0], (3, 3, input_dim, n_channel), input_dim * 9),
        "conv1_b": jnp.zeros((1, n_channel), jnp.float32),
        "bn1_g": jnp.ones((1, n_channel), jnp.float32),
        "bn1_b": jnp.zeros((1, n_channel), jnp.float32),
        "conv2_w": [
            _kaiming_uniform(keys[1 + i], (3, 3, n_channel, n_channel), n_channel * 9)
            for i in range(n_conv - 1)
        ],
        "conv2_b": [jnp.zeros((1, n_channel), jnp.float32) for _ in range(n_conv - 1)],
        "bn2_g": [jnp.ones((1, n_channel), jnp.float32) for _ in range(n_conv - 1)],
        "bn2_b": [jnp.zeros((1, n_channel), jnp.float32) for _ in range(n_conv - 1)],
        "conv3_w": _kaiming_uniform(keys[n_conv + 1], (n_channel, n_channel), n_channel),
        "conv3_b": jnp.zeros((1, n_channel), jnp.float32),
        "bn3_g": jnp.ones((1, n_channel), jnp.float32),
        "bn3_b": jnp.zeros((1, n_channel), jnp.float32),
    }
    return params


# ----------------------------- forward -----------------------------

@functools.partial(jax.jit, static_argnames=("row_tile",))
def mynet_forward(x_nchw, params, *, row_tile=None):
    """Input: (N, Cin, H, W) f32 (PyTorch NCHW). Output: (N, nChannel, H, W) f32."""
    x = jnp.transpose(x_nchw, (0, 2, 3, 1))                       # NCHW -> NHWC
    N, H, W, Cin = x.shape
    n_channel = params["conv1_w"].shape[-1]
    rt = row_tile if row_tile is not None else _pick_row_tile(H, W, N)
    if H % rt:
        raise ValueError(f"row_tile={rt} must divide H={H}")

    # Guard the VMEM-resident full-image block (double-buffered across the batch axis).
    resident = 2 * max(_resident_block_bytes(H, W, Cin),
                       _resident_block_bytes(H, W, n_channel))
    if resident > _RESIDENT_BUDGET_BYTES:
        # TODO(synk): replace the resident-image block with a manual halo-DMA pipeline
        # for images this large (required to stay inside v7x's 64 MiB VMEM).
        raise ValueError(
            f"image {H}x{W} needs ~{resident >> 20} MiB resident VMEM; exceeds budget")

    px_per_tile = rt * W

    act = x.astype(jnp.bfloat16)                                  # raw layer input, bf16
    scale = jnp.ones((1, Cin), jnp.float32)                       # identity "previous BN"
    shift = jnp.zeros((1, Cin), jnp.float32)

    # conv1: [identity affine] -> pad -> conv -> ReLU  (+ mean-shifted BN1 partials)
    act, st = bn_conv3x3_relu_stats(act, scale, shift,
                                    params["conv1_w"], params["conv1_b"], row_tile=rt)
    scale, shift = _bn_affine(st, px_per_tile, params["bn1_g"], params["bn1_b"])

    # (nConv-1) x [prev BN affine -> pad -> conv2 -> ReLU (+ partial stats)], all in-kernel.
    for w, b, g, be in zip(params["conv2_w"], params["conv2_b"],
                           params["bn2_g"], params["bn2_b"]):
        act, st = bn_conv3x3_relu_stats(act, scale, shift, w, b, row_tile=rt)
        scale, shift = _bn_affine(st, px_per_tile, g, be)

    # prev BN affine fused into the 1x1-conv prologue; conv3 + bias (+ BN3 partials).
    z, st3 = bn_conv1x1_stats(act, scale, shift,
                              params["conv3_w"], params["conv3_b"], row_tile=rt)
    scale3, shift3 = _bn_affine(st3, px_per_tile, params["bn3_g"], params["bn3_b"])
    out = z.astype(jnp.float32) * scale3 + shift3                 # final BN3 normalize
    return jnp.transpose(out, (0, 3, 1, 2))                       # NHWC -> NCHW


# ----------------------------- pure-JAX f32 reference (torch semantics) -----------------------------

@jax.jit
def mynet_reference(x_nchw, params):
    x = jnp.transpose(x_nchw, (0, 2, 3, 1))

    def conv(a, w, b):
        y = jax.lax.conv_general_dilated(a, w, (1, 1), "SAME",
                                         dimension_numbers=("NHWC", "HWIO", "NHWC"))
        return y + b.reshape(1, 1, 1, -1)

    def bn(a, g, b):
        m = jnp.mean(a, axis=(0, 1, 2), keepdims=True)
        v = jnp.mean(jnp.square(a - m), axis=(0, 1, 2), keepdims=True)
        return (a - m) * jax.lax.rsqrt(v + EPS) * g.reshape(1, 1, 1, -1) + b.reshape(1, 1, 1, -1)

    y = bn(jnp.maximum(conv(x, params["conv1_w"], params["conv1_b"]), 0.0),
           params["bn1_g"], params["bn1_b"])
    for w, b, g, be in zip(params["conv2_w"], params["conv2_b"],
                           params["bn2_g"], params["bn2_b"]):
        y = bn(jnp.maximum(conv(y, w, b), 0.0), g, be)
    w3 = params["conv3_w"].reshape(1, 1, *params["conv3_w"].shape)
    y = bn(conv(y, w3, params["conv3_b"]), params["bn3_g"], params["bn3_b"])
    return jnp.transpose(y, (0, 3, 1, 2))


if __name__ == "__main__":
    # Small deterministic config consistent with the module:
    # args.COMMON.NCHANNEL = 32, args.COMMON.NCONV = 3, input_dim = 4.
    N, INPUT_DIM, H, W = 2, 4, 16, 16
    N_CHANNEL, N_CONV = 32, 3

    root = jax.random.PRNGKey(0)
    k_x, k_p = jax.random.split(root)
    x = jax.random.normal(k_x, (N, INPUT_DIM, H, W), jnp.float32)     # NCHW like torch
    params = init_mynet_params(k_p, INPUT_DIM, N_CHANNEL, N_CONV)

    # row_tile=8 -> 2 row tiles per image -> a 2x2 grid, exercising in-kernel halo handling
    # (top/bottom tiles), the fused BN prologue and the tiled two-pass BN reduction.
    out = mynet_forward(x, params, row_tile=8)
    jax.block_until_ready(out)

    assert out.shape == (N, N_CHANNEL, H, W), out.shape
    assert out.dtype == jnp.float32

    # Correctness vs. a pure-JAX f32 reference.  bf16 MXU operands and bf16 activation
    # storage cause small drift; this unsupervised-segmentation net tolerates it.
    ref = mynet_reference(x, params)
    rel = float(jnp.linalg.norm(out - ref) / (jnp.linalg.norm(ref) + 1e-12))
    assert rel < 0.1, f"relative L2 error too large: {rel}"

    print("KERNEL_OK")
</pallas_src>

<mosaic_0001>
module attributes {stable_mosaic.version = 11 : i64} {
  func.func @_bn_conv3x3_relu_stats_kernel(%arg0: i32, %arg1: i32, %arg2: memref<1x16x16x4xbf16, #tpu.memory_space<vmem>>, %arg3: memref<1x4xf32, #tpu.memory_space<vmem>>, %arg4: memref<1x4xf32, #tpu.memory_space<vmem>>, %arg5: memref<36x32xbf16, #tpu.memory_space<vmem>>, %arg6: memref<1x32xf32, #tpu.memory_space<vmem>>, %arg7: memref<1x8x16x32xbf16, #tpu.memory_space<vmem>>, %arg8: memref<1x1x2x32xf32, #tpu.memory_space<vmem>>) attributes {dimension_semantics = [#tpu.dimension_semantics<parallel>, #tpu.dimension_semantics<parallel>], iteration_bounds = array<i64: 2, 2>, scalar_prefetch = 0 : i64, scratch_operands = 0 : i64, tpu.core_type = #tpu.core_type<tc>, window_params = [{transform_indices = @transform_0, window_bounds = array<i64: 1, 16, 16, 4>}, {pipeline_mode = #tpu.pipeline_mode<synchronous>, transform_indices = @transform_1, window_bounds = array<i64: 1, 4>}, {pipeline_mode = #tpu.pipeline_mode<synchronous>, transform_indices = @transform_2, window_bounds = array<i64: 1, 4>}, {pipeline_mode = #tpu.pipeline_mode<synchronous>, transform_indices = @transform_3, window_bounds = array<i64: 36, 32>}, {pipeline_mode = #tpu.pipeline_mode<synchronous>, transform_indices = @transform_4, window_bounds = array<i64: 1, 32>}, {transform_indices = @transform_5, window_bounds = array<i64: 1, 8, 16, 32>}, {transform_indices = @transform_6, window_bounds = array<i64: 1, 1, 2, 32>}]} {
    %c8_i32 = arith.constant 8 : i32
    %0 = arith.muli %arg1, %c8_i32 : i32
    %c0 = arith.constant 0 : index
    %c0_0 = arith.constant 0 : index
    %1 = vector.load %arg3[%c0, %c0_0] : memref<1x4xf32, #tpu.memory_space<vmem>>, vector<1x4xf32>
    %c0_1 = arith.constant 0 : index
    %c0_2 = arith.constant 0 : index
    %2 = vector.load %arg4[%c0_1, %c0_2] : memref<1x4xf32, #tpu.memory_space<vmem>>, vector<1x4xf32>
    %c0_3 = arith.constant 0 : index
    %3 = arith.index_cast %0 : i32 to index
    %c0_4 = arith.constant 0 : index
    %c0_5 = arith.constant 0 : index
    %4 = vector.load %arg2[%c0_3, %3, %c0_4, %c0_5] : memref<1x16x16x4xbf16, #tpu.memory_space<vmem>>, vector<1x8x16x4xbf16>
    %5 = vector.shape_cast %4 : vector<1x8x16x4xbf16> to vector<8x16x4xbf16>
    %6 = arith.extf %5 : vector<8x16x4xbf16> to vector<8x16x4xf32>
    %7 = vector.shape_cast %1 : vector<1x4xf32> to vector<1x1x4xf32>
    %8 = vector.broadcast %7 : vector<1x1x4xf32> to vector<8x16x4xf32>
    %9 = arith.mulf %6, %8 : vector<8x16x4xf32>
    %10 = vector.shape_cast %2 : vector<1x4xf32> to vector<1x1x4xf32>
    %11 = vector.broadcast %10 : vector<1x1x4xf32> to vector<8x16x4xf32>
    %12 = arith.addf %9, %11 : vector<8x16x4xf32>
    %c1_i32 = arith.constant 1 : i32
    %13 = arith.subi %0, %c1_i32 : i32
    %c0_i32 = arith.constant 0 : i32
    %14 = arith.maxsi %13, %c0_i32 : i32
    %c0_6 = arith.constant 0 : index
    %15 = arith.index_cast %14 : i32 to index
    %c0_7 = arith.constant 0 : index
    %c0_8 = arith.constant 0 : index
    %16 = vector.load %arg2[%c0_6, %15, %c0_7, %c0_8] : memref<1x16x16x4xbf16, #tpu.memory_space<vmem>>, vector<1x1x16x4xbf16>
    %17 = vector.shape_cast %16 : vector<1x1x16x4xbf16> to vector<1x16x4xbf16>
    %18 = arith.extf %17 : vector<1x16x4xbf16> to vector<1x16x4xf32>
    %c0_i32_9 = arith.constant 0 : i32
    %19 = arith.cmpi sgt, %0, %c0_i32_9 : i32
    %20 = vector.shape_cast %1 : vector<1x4xf32> to vector<1x1x4xf32>
    %21 = vector.broadcast %20 : vector<1x1x4xf32> to vector<1x16x4xf32>
    %22 = arith.mulf %18, %21 : vector<1x16x4xf32>
    %23 = vector.shape_cast %2 : vector<1x4xf32> to vector<1x1x4xf32>
    %24 = vector.broadcast %23 : vector<1x1x4xf32> to vector<1x16x4xf32>
    %25 = arith.addf %22, %24 : vector<1x16x4xf32>
    %cst = arith.constant 0.000000e+00 : f32
    %26 = vector.broadcast %cst : f32 to vector<1x16x4xf32>
    %27 = arith.select %19, %25, %26 : vector<1x16x4xf32>
    %c8_i32_10 = arith.constant 8 : i32
    %28 = arith.addi %0, %c8_i32_10 : i32
    %c15_i32 = arith.constant 15 : i32
    %29 = arith.minsi %28, %c15_i32 : i32
    %c0_11 = arith.constant 0 : index
    %30 = arith.index_cast %29 : i32 to index
    %c0_12 = arith.constant 0 : index
    %c0_13 = arith.constant 0 : index
    %31 = vector.load %arg2[%c0_11, %30, %c0_12, %c0_13] : memref<1x16x16x4xbf16, #tpu.memory_space<vmem>>, vector<1x1x16x4xbf16>
    %32 = vector.shape_cast %31 : vector<1x1x16x4xbf16> to vector<1x16x4xbf16>
    %33 = arith.extf %32 : vector<1x16x4xbf16> to vector<1x16x4xf32>
    %c8_i32_14 = arith.constant 8 : i32
    %34 = arith.addi %0, %c8_i32_14 : i32
    %c16_i32 = arith.constant 16 : i32
    %35 = arith.cmpi slt, %34, %c16_i32 : i32
    %36 = vector.shape_cast %1 : vector<1x4xf32> to vector<1x1x4xf32>
    %37 = vector.broadcast %36 : vector<1x1x4xf32> to vector<1x16x4xf32>
    %38 = arith.mulf %33, %37 : vector<1x16x4xf32>
    %39 = vector.shape_cast %2 : vector<1x4xf32> to vector<1x1x4xf32>
    %40 = vector.broadcast %39 : vector<1x1x4xf32> to vector<1x16x4xf32>
    %41 = arith.addf %38, %40 : vector<1x16x4xf32>
    %cst_15 = arith.constant 0.000000e+00 : f32
    %42 = vector.broadcast %cst_15 : f32 to vector<1x16x4xf32>
    %43 = arith.select %35, %41, %42 : vector<1x16x4xf32>
    %44 = tpu.concatenate %27, %12, %43 in 0 : vector<1x16x4xf32>, vector<8x16x4xf32>, vector<1x16x4xf32> -> vector<10x16x4xf32>
    %45 = arith.truncf %44 : vector<10x16x4xf32> to vector<10x16x4xbf16>
    %cst_16 = arith.constant 0.000000e+00 : bf16
    %46 = vector.broadcast %cst_16 : bf16 to vector<10x1x4xbf16>
    %47 = tpu.concatenate %46, %45, %46 in 1 : vector<10x1x4xbf16>, vector<10x16x4xbf16>, vector<10x1x4xbf16> -> vector<10x18x4xbf16>
    %48 = vector.extract_strided_slice %47 {offsets = [0, 0, 0], sizes = [8, 18, 4], strides = [1, 1, 1]} : vector<10x18x4xbf16> to vector<8x18x4xbf16>
    %49 = vector.extract_strided_slice %48 {offsets = [0, 0, 0], sizes = [8, 16, 4], strides = [1, 1, 1]} : vector<8x18x4xbf16> to vector<8x16x4xbf16>
    %50 = vector.extract_strided_slice %48 {offsets = [0, 1, 0], sizes = [8, 16, 4], strides = [1, 1, 1]} : vector<8x18x4xbf16> to vector<8x16x4xbf16>
    %51 = vector.extract_strided_slice %48 {offsets = [0, 2, 0], sizes = [8, 16, 4], strides = [1, 1, 1]} : vector<8x18x4xbf16> to vector<8x16x4xbf16>
    %52 = vector.extract_strided_slice %47 {offsets = [1, 0, 0], sizes = [8, 18, 4], strides = [1, 1, 1]} : vector<10x18x4xbf16> to vector<8x18x4xbf16>
    %53 = vector.extract_strided_slice %52 {offsets = [0, 0, 0], sizes = [8, 16, 4], strides = [1, 1, 1]} : vector<8x18x4xbf16> to vector<8x16x4xbf16>
    %54 = vector.extract_strided_slice %52 {offsets = [0, 1, 0], sizes = [8, 16, 4], strides = [1, 1, 1]} : vector<8x18x4xbf16> to vector<8x16x4xbf16>
    %55 = vector.extract_strided_slice %52 {offsets = [0, 2, 0], sizes = [8, 16, 4], strides = [1, 1, 1]} : vector<8x18x4xbf16> to vector<8x16x4xbf16>
    %56 = vector.extract_strided_slice %47 {offsets = [2, 0, 0], sizes = [8, 18, 4], strides = [1, 1, 1]} : vector<10x18x4xbf16> to vector<8x18x4xbf16>
    %57 = vector.extract_strided_slice %56 {offsets = [0, 0, 0], sizes = [8, 16, 4], strides = [1, 1, 1]} : vector<8x18x4xbf16> to vector<8x16x4xbf16>
    %58 = vector.extract_strided_slice %56 {offsets = [0, 1, 0], sizes = [8, 16, 4], strides = [1, 1, 1]} : vector<8x18x4xbf16> to vector<8x16x4xbf16>
    %59 = vector.extract_strided_slice %56 {offsets = [0, 2, 0], sizes = [8, 16, 4], strides = [1, 1, 1]} : vector<8x18x4xbf16> to vector<8x16x4xbf16>
    %60 = tpu.concatenate %49, %50, %51, %53, %54, %55, %57, %58, %59 in 2 : vector<8x16x4xbf16>, vector<8x16x4xbf16>, vector<8x16x4xbf16>, vector<8x16x4xbf16>, vector<8x16x4xbf16>, vector<8x16x4xbf16>, vector<8x16x4xbf16>, vector<8x16x4xbf16>, vector<8x16x4xbf16> -> vector<8x16x36xbf16>
    %61 = vector.shape_cast %60 : vector<8x16x36xbf16> to vector<128x36xbf16>
    %c0_17 = arith.constant 0 : index
    %c0_18 = arith.constant 0 : index
    %62 = vector.load %arg5[%c0_17, %c0_18] : memref<36x32xbf16, #tpu.memory_space<vmem>>, vector<36x32xbf16>
    %cst_19 = arith.constant dense<0.000000e+00> : vector<128x32xf32>
    %63 = tpu.matmul %61, %62, %cst_19 {dimension_numbers = #tpu.dot_dimension_numbers<[1], [0], [0], [1], [0, 0, 1, 1], [], []>} : vector<128x36xbf16>, vector<36x32xbf16>, vector<128x32xf32> -> vector<128x32xf32>
    %c0_20 = arith.constant 0 : index
    %c0_21 = arith.constant 0 : index
    %64 = vector.load %arg6[%c0_20, %c0_21] : memref<1x32xf32, #tpu.memory_space<vmem>>, vector<1x32xf32>
    %65 = vector.broadcast %64 : vector<1x32xf32> to vector<128x32xf32>
    %66 = arith.addf %63, %65 : vector<128x32xf32>
    %cst_22 = arith.constant 0.000000e+00 : f32
    %67 = vector.broadcast %cst_22 : f32 to vector<128x32xf32>
    %68 = arith.maximumf %66, %67 : vector<128x32xf32>
    %69 = vector.shape_cast %68 : vector<128x32xf32> to vector<8x16x32xf32>
    %70 = arith.truncf %69 : vector<8x16x32xf32> to vector<8x16x32xbf16>
    %c0_23 = arith.constant 0 : index
    %c0_24 = arith.constant 0 : index
    %c0_25 = arith.constant 0 : index
    %c0_26 = arith.constant 0 : index
    %71 = vector.load %arg7[%c0_23, %c0_24, %c0_25, %c0_26] : memref<1x8x16x32xbf16, #tpu.memory_space<vmem>>, vector<1x8x16x32xbf16>
    %72 = vector.shape_cast %71 : vector<1x8x16x32xbf16> to vector<8x16x32xbf16>
    %73 = vector.shape_cast %70 : vector<8x16x32xbf16> to vector<1x8x16x32xbf16>
    tpu.vector_store %arg7[%c0_23, %c0_24, %c0_25, %c0_26], %73 {strides = array<i32>} : memref<1x8x16x32xbf16, #tpu.memory_space<vmem>>, vector<1x8x16x32xbf16>,
    %cst_27 = arith.constant dense<0.000000e+00> : vector<32xf32>
    %74 = vector.multi_reduction <add>, %68, %cst_27 [0] : vector<128x32xf32> to vector<32xf32>
    %75 = vector.shape_cast %74 : vector<32xf32> to vector<1x32xf32>
    %cst_28 = arith.constant 7.812500e-03 : f32
    %76 = vector.broadcast %cst_28 : f32 to vector<1x32xf32>
    %77 = arith.mulf %75, %76 : vector<1x32xf32>
    %78 = vector.broadcast %77 : vector<1x32xf32> to vector<128x32xf32>
    %79 = arith.subf %68, %78 : vector<128x32xf32>
    %80 = arith.mulf %79, %79 : vector<128x32xf32>
    %cst_29 = arith.constant dense<0.000000e+00> : vector<32xf32>
    %81 = vector.multi_reduction <add>, %80, %cst_29 [0] : vector<128x32xf32> to vector<32xf32>
    %82 = vector.shape_cast %81 : vector<32xf32> to vector<1x32xf32>
    %83 = tpu.concatenate %75, %82 in 0 : vector<1x32xf32>, vector<1x32xf32> -> vector<2x32xf32>
    %c0_30 = arith.constant 0 : index
    %c0_31 = arith.constant 0 : index
    %c0_32 = arith.constant 0 : index
    %c0_33 = arith.constant 0 : index
    %84 = vector.load %arg8[%c0_30, %c0_31, %c0_32, %c0_33] : memref<1x1x2x32xf32, #tpu.memory_space<vmem>>, vector<1x1x2x32xf32>
    %85 = vector.shape_cast %84 : vector<1x1x2x32xf32> to vector<2x32xf32>
    %86 = vector.shape_cast %83 : vector<2x32xf32> to vector<1x1x2x32xf32>
    tpu.vector_store %arg8[%c0_30, %c0_31, %c0_32, %c0_33], %86 {strides = array<i32>} : memref<1x1x2x32xf32, #tpu.memory_space<vmem>>, vector<1x1x2x32xf32>,
    return
  }
  func.func @transform_0(%arg0: i32, %arg1: i32) -> (i32, i32, i32, i32) {
    %c0_i32 = arith.constant 0 : i32
    %c0_i32_0 = arith.constant 0 : i32
    %c0_i32_1 = arith.constant 0 : i32
    %c0_i32_2 = arith.constant 0 : i32
    return %arg0, %c0_i32, %c0_i32_0, %c0_i32_1 : i32, i32, i32, i32
  }
  func.func @transform_1(%arg0: i32, %arg1: i32) -> (i32, i32) {
    %c0_i32 = arith.constant 0 : i32
    %c0_i32_0 = arith.constant 0 : i32
    %c0_i32_1 = arith.constant 0 : i32
    return %c0_i32, %c0_i32_0 : i32, i32
  }
  func.func @transform_2(%arg0: i32, %arg1: i32) -> (i32, i32) {
    %c0_i32 = arith.constant 0 : i32
    %c0_i32_0 = arith.constant 0 : i32
    %c0_i32_1 = arith.constant 0 : i32
    return %c0_i32, %c0_i32_0 : i32, i32
  }
  func.func @transform_3(%arg0: i32, %arg1: i32) -> (i32, i32) {
    %c0_i32 = arith.constant 0 : i32
    %c0_i32_0 = arith.constant 0 : i32
    %c0_i32_1 = arith.constant 0 : i32
    return %c0_i32, %c0_i32_0 : i32, i32
  }
  func.func @transform_4(%arg0: i32, %arg1: i32) -> (i32, i32) {
    %c0_i32 = arith.constant 0 : i32
    %c0_i32_0 = arith.constant 0 : i32
    %c0_i32_1 = arith.constant 0 : i32
    return %c0_i32, %c0_i32_0 : i32, i32
  }
  func.func @transform_5(%arg0: i32, %arg1: i32) -> (i32, i32, i32, i32) {
    %c0_i32 = arith.constant 0 : i32
    %c0_i32_0 = arith.constant 0 : i32
    %c0_i32_1 = arith.constant 0 : i32
    return %arg0, %arg1, %c0_i32, %c0_i32_0 : i32, i32, i32, i32
  }
  func.func @transform_6(%arg0: i32, %arg1: i32) -> (i32, i32, i32, i32) {
    %c0_i32 = arith.constant 0 : i32
    %c0_i32_0 = arith.constant 0 : i32
    %c0_i32_1 = arith.constant 0 : i32
    return %arg0, %arg1, %c0_i32, %c0_i32_0 : i32, i32, i32, i32
  }
}

module attributes {stable_mosaic.version = 11 : i64} {
  func.func @_bn_conv1x1_stats_kernel(%arg0: i32, %arg1: i32, %arg2: memref<1x8x16x32xbf16, #tpu.memory_space<vmem>>, %arg3: memref<1x32xf32, #tpu.memory_space<vmem>>, %arg4: memref<1x32xf32, #tpu.memory_space<vmem>>, %arg5: memref<32x32xbf16, #tpu.memory_space<vmem>>, %arg6: memref<1x32xf32, #tpu.memory_space<vmem>>, %arg7: memref<1x8x16x32xbf16, #tpu.memory_space<vmem>>, %arg8: memref<1x1x2x32xf32, #tpu.memory_space<vmem>>) attributes {dimension_semantics = [#tpu.dimension_semantics<parallel>, #tpu.dimension_semantics<parallel>], iteration_bounds = array<i64: 2, 2>, scalar_prefetch = 0 : i64, scratch_operands = 0 : i64, tpu.core_type = #tpu.core_type<tc>, window_params = [{transform_indices = @transform_0, window_bounds = array<i64: 1, 8, 16, 32>}, {pipeline_mode = #tpu.pipeline_mode<synchronous>, transform_indices = @transform_1, window_bounds = array<i64: 1, 32>}, {pipeline_mode = #tpu.pipeline_mode<synchronous>, transform_indices = @transform_2, window_bounds = array<i64: 1, 32>}, {pipeline_mode = #tpu.pipeline_mode<synchronous>, transform_indices = @transform_3, window_bounds = array<i64: 32, 32>}, {pipeline_mode = #tpu.pipeline_mode<synchronous>, transform_indices = @transform_4, window_bounds = array<i64: 1, 32>}, {transform_indices = @transform_5, window_bounds = array<i64: 1, 8, 16, 32>}, {transform_indices = @transform_6, window_bounds = array<i64: 1, 1, 2, 32>}]} {
    %c0 = arith.constant 0 : index
    %c0_0 = arith.constant 0 : index
    %c0_1 = arith.constant 0 : index
    %c0_2 = arith.constant 0 : index
    %0 = vector.load %arg2[%c0, %c0_0, %c0_1, %c0_2] : memref<1x8x16x32xbf16, #tpu.memory_space<vmem>>, vector<1x8x16x32xbf16>
    %1 = vector.shape_cast %0 : vector<1x8x16x32xbf16> to vector<8x16x32xbf16>
    %2 = vector.shape_cast %1 : vector<8x16x32xbf16> to vector<128x32xbf16>
    %3 = arith.extf %2 : vector<128x32xbf16> to vector<128x32xf32>
    %c0_3 = arith.constant 0 : index
    %c0_4 = arith.constant 0 : index
    %4 = vector.load %arg3[%c0_3, %c0_4] : memref<1x32xf32, #tpu.memory_space<vmem>>, vector<1x32xf32>
    %5 = vector.broadcast %4 : vector<1x32xf32> to vector<128x32xf32>
    %6 = arith.mulf %3, %5 : vector<128x32xf32>
    %c0_5 = arith.constant 0 : index
    %c0_6 = arith.constant 0 : index
    %7 = vector.load %arg4[%c0_5, %c0_6] : memref<1x32xf32, #tpu.memory_space<vmem>>, vector<1x32xf32>
    %8 = vector.broadcast %7 : vector<1x32xf32> to vector<128x32xf32>
    %9 = arith.addf %6, %8 : vector<128x32xf32>
    %10 = arith.truncf %9 : vector<128x32xf32> to vector<128x32xbf16>
    %c0_7 = arith.constant 0 : index
    %c0_8 = arith.constant 0 : index
    %11 = vector.load %arg5[%c0_7, %c0_8] : memref<32x32xbf16, #tpu.memory_space<vmem>>, vector<32x32xbf16>
    %cst = arith.constant dense<0.000000e+00> : vector<128x32xf32>
    %12 = tpu.matmul %10, %11, %cst {dimension_numbers = #tpu.dot_dimension_numbers<[1], [0], [0], [1], [0, 0, 1, 1], [], []>} : vector<128x32xbf16>, vector<32x32xbf16>, vector<128x32xf32> -> vector<128x32xf32>
    %c0_9 = arith.constant 0 : index
    %c0_10 = arith.constant 0 : index
    %13 = vector.load %arg6[%c0_9, %c0_10] : memref<1x32xf32, #tpu.memory_space<vmem>>, vector<1x32xf32>
    %14 = vector.broadcast %13 : vector<1x32xf32> to vector<128x32xf32>
    %15 = arith.addf %12, %14 : vector<128x32xf32>
    %16 = vector.shape_cast %15 : vector<128x32xf32> to vector<8x16x32xf32>
    %17 = arith.truncf %16 : vector<8x16x32xf32> to vector<8x16x32xbf16>
    %c0_11 = arith.constant 0 : index
    %c0_12 = arith.constant 0 : index
    %c0_13 = arith.constant 0 : index
    %c0_14 = arith.constant 0 : index
    %18 = vector.load %arg7[%c0_11, %c0_12, %c0_13, %c0_14] : memref<1x8x16x32xbf16, #tpu.memory_space<vmem>>, vector<1x8x16x32xbf16>
    %19 = vector.shape_cast %18 : vector<1x8x16x32xbf16> to vector<8x16x32xbf16>
    %20 = vector.shape_cast %17 : vector<8x16x32xbf16> to vector<1x8x16x32xbf16>
    tpu.vector_store %arg7[%c0_11, %c0_12, %c0_13, %c0_14], %20 {strides = array<i32>} : memref<1x8x16x32xbf16, #tpu.memory_space<vmem>>, vector<1x8x16x32xbf16>,
    %cst_15 = arith.constant dense<0.000000e+00> : vector<32xf32>
    %21 = vector.multi_reduction <add>, %15, %cst_15 [0] : vector<128x32xf32> to vector<32xf32>
    %22 = vector.shape_cast %21 : vector<32xf32> to vector<1x32xf32>
    %cst_16 = arith.constant 7.812500e-03 : f32
    %23 = vector.broadcast %cst_16 : f32 to vector<1x32xf32>
    %24 = arith.mulf %22, %23 : vector<1x32xf32>
    %25 = vector.broadcast %24 : vector<1x32xf32> to vector<128x32xf32>
    %26 = arith.subf %15, %25 : vector<128x32xf32>
    %27 = arith.mulf %26, %26 : vector<128x32xf32>
    %cst_17 = arith.constant dense<0.000000e+00> : vector<32xf32>
    %28 = vector.multi_reduction <add>, %27, %cst_17 [0] : vector<128x32xf32> to vector<32xf32>
    %29 = vector.shape_cast %28 : vector<32xf32> to vector<1x32xf32>
    %30 = tpu.concatenate %22, %29 in 0 : vector<1x32xf32>, vector<1x32xf32> -> vector<2x32xf32>
    %c0_18 = arith.constant 0 : index
    %c0_19 = arith.constant 0 : index
    %c0_20 = arith.constant 0 : index
    %c0_21 = arith.constant 0 : index
    %31 = vector.load %arg8[%c0_18, %c0_19, %c0_20, %c0_21] : memref<1x1x2x32xf32, #tpu.memory_space<vmem>>, vector<1x1x2x32xf32>
    %32 = vector.shape_cast %31 : vector<1x1x2x32xf32> to vector<2x32xf32>
    %33 = vector.shape_cast %30 : vector<2x32xf32> to vector<1x1x2x32xf32>
    tpu.vector_store %arg8[%c0_18, %c0_19, %c0_20, %c0_21], %33 {strides = array<i32>} : memref<1x1x2x32xf32, #tpu.memory_space<vmem>>, vector<1x1x2x32xf32>,
    return
  }
  func.func @transform_0(%arg0: i32, %arg1: i32) -> (i32, i32, i32, i32) {
    %c0_i32 = arith.constant 0 : i32
    %c0_i32_0 = arith.constant 0 : i32
    %c0_i32_1 = arith.constant 0 : i32
    return %arg0, %arg1, %c0_i32, %c0_i32_0 : i32, i32, i32, i32
  }
  func.func @transform_1(%arg0: i32, %arg1: i32) -> (i32, i32) {
    %c0_i32 = arith.constant 0 : i32
    %c0_i32_0 = arith.constant 0 : i32
    %c0_i32_1 = arith.constant 0 : i32
    return %c0_i32, %c0_i32_0 : i32, i32
  }
  func.func @transform_2(%arg0: i32, %arg1: i32) -> (i32, i32) {
    %c0_i32 = arith.constant 0 : i32
    %c0_i32_0 = arith.constant 0 : i32
    %c0_i32_1 = arith.constant 0 : i32
    return %c0_i32, %c0_i32_0 : i32, i32
  }
  func.func @transform_3(%arg0: i32, %arg1: i32) -> (i32, i32) {
    %c0_i32 = arith.constant 0 : i32
    %c0_i32_0 = arith.constant 0 : i32
    %c0_i32_1 = arith.constant 0 : i32
    return %c0_i32, %c0_i32_0 : i32, i32
  }
  func.func @transform_4(%arg0: i32, %arg1: i32) -> (i32, i32) {
    %c0_i32 = arith.constant 0 : i32
    %c0_i32_0 = arith.constant 0 : i32
    %c0_i32_1 = arith.constant 0 : i32
    return %c0_i32, %c0_i32_0 : i32, i32
  }
  func.func @transform_5(%arg0: i32, %arg1: i32) -> (i32, i32, i32, i32) {
    %c0_i32 = arith.constant 0 : i32
    %c0_i32_0 = arith.constant 0 : i32
    %c0_i32_1 = arith.constant 0 : i32
    return %arg0, %arg1, %c0_i32, %c0_i32_0 : i32, i32, i32, i32
  }
  func.func @transform_6(%arg0: i32, %arg1: i32) -> (i32, i32, i32, i32) {
    %c0_i32 = arith.constant 0 : i32
    %c0_i32_0 = arith.constant 0 : i32
    %c0_i32_1 = arith.constant 0 : i32
    return %arg0, %arg1, %c0_i32, %c0_i32_0 : i32, i32, i32, i32
  }
}

module attributes {stable_mosaic.version = 11 : i64} {
  func.func @_bn_conv3x3_relu_stats_kernel(%arg0: i32, %arg1: i32, %arg2: memref<1x16x16x32xbf16, #tpu.memory_space<vmem>>, %arg3: memref<1x32xf32, #tpu.memory_space<vmem>>, %arg4: memref<1x32xf32, #tpu.memory_space<vmem>>, %arg5: memref<288x32xbf16, #tpu.memory_space<vmem>>, %arg6: memref<1x32xf32, #tpu.memory_space<vmem>>, %arg7: memref<1x8x16x32xbf16, #tpu.memory_space<vmem>>, %arg8: memref<1x1x2x32xf32, #tpu.memory_space<vmem>>) attributes {dimension_semantics = [#tpu.dimension_semantics<parallel>, #tpu.dimension_semantics<parallel>], iteration_bounds = array<i64: 2, 2>, scalar_prefetch = 0 : i64, scratch_operands = 0 : i64, tpu.core_type = #tpu.core_type<tc>, window_params = [{transform_indices = @transform_0, window_bounds = array<i64: 1, 16, 16, 32>}, {pipeline_mode = #tpu.pipeline_mode<synchronous>, transform_indices = @transform_1, window_bounds = array<i64: 1, 32>}, {pipeline_mode = #tpu.pipeline_mode<synchronous>, transform_indices = @transform_2, window_bounds = array<i64: 1, 32>}, {pipeline_mode = #tpu.pipeline_mode<synchronous>, transform_indices = @transform_3, window_bounds = array<i64: 288, 32>}, {pipeline_mode = #tpu.pipeline_mode<synchronous>, transform_indices = @transform_4, window_bounds = array<i64: 1, 32>}, {transform_indices = @transform_5, window_bounds = array<i64: 1, 8, 16, 32>}, {transform_indices = @transform_6, window_bounds = array<i64: 1, 1, 2, 32>}]} {
    %c8_i32 = arith.constant 8 : i32
    %0 = arith.muli %arg1, %c8_i32 : i32
    %c0 = arith.constant 0 : index
    %c0_0 = arith.constant 0 : index
    %1 = vector.load %arg3[%c0, %c0_0] : memref<1x32xf32, #tpu.memory_space<vmem>>, vector<1x32xf32>
    %c0_1 = arith.constant 0 : index
    %c0_2 = arith.constant 0 : index
    %2 = vector.load %arg4[%c0_1, %c0_2] : memref<1x32xf32, #tpu.memory_space<vmem>>, vector<1x32xf32>
    %c0_3 = arith.constant 0 : index
    %3 = arith.index_cast %0 : i32 to index
    %c0_4 = arith.constant 0 : index
    %c0_5 = arith.constant 0 : index
    %4 = vector.load %arg2[%c0_3, %3, %c0_4, %c0_5] : memref<1x16x16x32xbf16, #tpu.memory_space<vmem>>, vector<1x8x16x32xbf16>
    %5 = vector.shape_cast %4 : vector<1x8x16x32xbf16> to vector<8x16x32xbf16>
    %6 = arith.extf %5 : vector<8x16x32xbf16> to vector<8x16x32xf32>
    %7 = vector.shape_cast %1 : vector<1x32xf32> to vector<1x1x32xf32>
    %8 = vector.broadcast %7 : vector<1x1x32xf32> to vector<8x16x32xf32>
    %9 = arith.mulf %6, %8 : vector<8x16x32xf32>
    %10 = vector.shape_cast %2 : vector<1x32xf32> to vector<1x1x32xf32>
    %11 = vector.broadcast %10 : vector<1x1x32xf32> to vector<8x16x32xf32>
    %12 = arith.addf %9, %11 : vector<8x16x32xf32>
    %c1_i32 = arith.constant 1 : i32
    %13 = arith.subi %0, %c1_i32 : i32
    %c0_i32 = arith.constant 0 : i32
    %14 = arith.maxsi %13, %c0_i32 : i32
    %c0_6 = arith.constant 0 : index
    %15 = arith.index_cast %14 : i32 to index
    %c0_7 = arith.constant 0 : index
    %c0_8 = arith.constant 0 : index
    %16 = vector.load %arg2[%c0_6, %15, %c0_7, %c0_8] : memref<1x16x16x32xbf16, #tpu.memory_space<vmem>>, vector<1x1x16x32xbf16>
    %17 = vector.shape_cast %16 : vector<1x1x16x32xbf16> to vector<1x16x32xbf16>
    %18 = arith.extf %17 : vector<1x16x32xbf16> to vector<1x16x32xf32>
    %c0_i32_9 = arith.constant 0 : i32
    %19 = arith.cmpi sgt, %0, %c0_i32_9 : i32
    %20 = vector.shape_cast %1 : vector<1x32xf32> to vector<1x1x32xf32>
    %21 = vector.broadcast %20 : vector<1x1x32xf32> to vector<1x16x32xf32>
    %22 = arith.mulf %18, %21 : vector<1x16x32xf32>
    %23 = vector.shape_cast %2 : vector<1x32xf32> to vector<1x1x32xf32>
    %24 = vector.broadcast %23 : vector<1x1x32xf32> to vector<1x16x32xf32>
    %25 = arith.addf %22, %24 : vector<1x16x32xf32>
    %cst = arith.constant 0.000000e+00 : f32
    %26 = vector.broadcast %cst : f32 to vector<1x16x32xf32>
    %27 = arith.select %19, %25, %26 : vector<1x16x32xf32>
    %c8_i32_10 = arith.constant 8 : i32
    %28 = arith.addi %0, %c8_i32_10 : i32
    %c15_i32 = arith.constant 15 : i32
    %29 = arith.minsi %28, %c15_i32 : i32
    %c0_11 = arith.constant 0 : index
    %30 = arith.index_cast %29 : i32 to index
    %c0_12 = arith.constant 0 : index
    %c0_13 = arith.constant 0 : index
    %31 = vector.load %arg2[%c0_11, %30, %c0_12, %c0_13] : memref<1x16x16x32xbf16, #tpu.memory_space<vmem>>, vector<1x1x16x32xbf16>
    %32 = vector.shape_cast %31 : vector<1x1x16x32xbf16> to vector<1x16x32xbf16>
    %33 = arith.extf %32 : vector<1x16x32xbf16> to vector<1x16x32xf32>
    %c8_i32_14 = arith.constant 8 : i32
    %34 = arith.addi %0, %c8_i32_14 : i32
    %c16_i32 = arith.constant 16 : i32
    %35 = arith.cmpi slt, %34, %c16_i32 : i32
    %36 = vector.shape_cast %1 : vector<1x32xf32> to vector<1x1x32xf32>
    %37 = vector.broadcast %36 : vector<1x1x32xf32> to vector<1x16x32xf32>
    %38 = arith.mulf %33, %37 : vector<1x16x32xf32>
    %39 = vector.shape_cast %2 : vector<1x32xf32> to vector<1x1x32xf32>
    %40 = vector.broadcast %39 : vector<1x1x32xf32> to vector<1x16x32xf32>
    %41 = arith.addf %38, %40 : vector<1x16x32xf32>
    %cst_15 = arith.constant 0.000000e+00 : f32
    %42 = vector.broadcast %cst_15 : f32 to vector<1x16x32xf32>
    %43 = arith.select %35, %41, %42 : vector<1x16x32xf32>
    %44 = tpu.concatenate %27, %12, %43 in 0 : vector<1x16x32xf32>, vector<8x16x32xf32>, vector<1x16x32xf32> -> vector<10x16x32xf32>
    %45 = arith.truncf %44 : vector<10x16x32xf32> to vector<10x16x32xbf16>
    %cst_16 = arith.constant 0.000000e+00 : bf16
    %46 = vector.broadcast %cst_16 : bf16 to vector<10x1x32xbf16>
    %47 = tpu.concatenate %46, %45, %46 in 1 : vector<10x1x32xbf16>, vector<10x16x32xbf16>, vector<10x1x32xbf16> -> vector<10x18x32xbf16>
    %48 = vector.extract_strided_slice %47 {offsets = [0, 0, 0], sizes = [8, 18, 32], strides = [1, 1, 1]} : vector<10x18x32xbf16> to vector<8x18x32xbf16>
    %49 = vector.extract_strided_slice %48 {offsets = [0, 0, 0], sizes = [8, 16, 32], strides = [1, 1, 1]} : vector<8x18x32xbf16> to vector<8x16x32xbf16>
    %50 = vector.extract_strided_slice %48 {offsets = [0, 1, 0], sizes = [8, 16, 32], strides = [1, 1, 1]} : vector<8x18x32xbf16> to vector<8x16x32xbf16>
    %51 = vector.extract_strided_slice %48 {offsets = [0, 2, 0], sizes = [8, 16, 32], strides = [1, 1, 1]} : vector<8x18x32xbf16> to vector<8x16x32xbf16>
    %52 = vector.extract_strided_slice %47 {offsets = [1, 0, 0], sizes = [8, 18, 32], strides = [1, 1, 1]} : vector<10x18x32xbf16> to vector<8x18x32xbf16>
    %53 = vector.extract_strided_slice %52 {offsets = [0, 0, 0], sizes = [8, 16, 32], strides = [1, 1, 1]} : vector<8x18x32xbf16> to vector<8x16x32xbf16>
    %54 = vector.extract_strided_slice %52 {offsets = [0, 1, 0], sizes = [8, 16, 32], strides = [1, 1, 1]} : vector<8x18x32xbf16> to vector<8x16x32xbf16>
    %55 = vector.extract_strided_slice %52 {offsets = [0, 2, 0], sizes = [8, 16, 32], strides = [1, 1, 1]} : vector<8x18x32xbf16> to vector<8x16x32xbf16>
    %56 = vector.extract_strided_slice %47 {offsets = [2, 0, 0], sizes = [8, 18, 32], strides = [1, 1, 1]} : vector<10x18x32xbf16> to vector<8x18x32xbf16>
    %57 = vector.extract_strided_slice %56 {offsets = [0, 0, 0], sizes = [8, 16, 32], strides = [1, 1, 1]} : vector<8x18x32xbf16> to vector<8x16x32xbf16>
    %58 = vector.extract_strided_slice %56 {offsets = [0, 1, 0], sizes = [8, 16, 32], strides = [1, 1, 1]} : vector<8x18x32xbf16> to vector<8x16x32xbf16>
    %59 = vector.extract_strided_slice %56 {offsets = [0, 2, 0], sizes = [8, 16, 32], strides = [1, 1, 1]} : vector<8x18x32xbf16> to vector<8x16x32xbf16>
    %60 = tpu.concatenate %49, %50, %51, %53, %54, %55, %57, %58, %59 in 2 : vector<8x16x32xbf16>, vector<8x16x32xbf16>, vector<8x16x32xbf16>, vector<8x16x32xbf16>, vector<8x16x32xbf16>, vector<8x16x32xbf16>, vector<8x16x32xbf16>, vector<8x16x32xbf16>, vector<8x16x32xbf16> -> vector<8x16x288xbf16>
    %61 = vector.shape_cast %60 : vector<8x16x288xbf16> to vector<128x288xbf16>
    %c0_17 = arith.constant 0 : index
    %c0_18 = arith.constant 0 : index
    %62 = vector.load %arg5[%c0_17, %c0_18] : memref<288x32xbf16, #tpu.memory_space<vmem>>, vector<288x32xbf16>
    %cst_19 = arith.constant dense<0.000000e+00> : vector<128x32xf32>
    %63 = tpu.matmul %61, %62, %cst_19 {dimension_numbers = #tpu.dot_dimension_numbers<[1], [0], [0], [1], [0, 0, 1, 1], [], []>} : vector<128x288xbf16>, vector<288x32xbf16>, vector<128x32xf32> -> vector<128x32xf32>
    %c0_20 = arith.constant 0 : index
    %c0_21 = arith.constant 0 : index
    %64 = vector.load %arg6[%c0_20, %c0_21] : memref<1x32xf32, #tpu.memory_space<vmem>>, vector<1x32xf32>
    %65 = vector.broadcast %64 : vector<1x32xf32> to vector<128x32xf32>
    %66 = arith.addf %63, %65 : vector<128x32xf32>
    %cst_22 = arith.constant 0.000000e+00 : f32
    %67 = vector.broadcast %cst_22 : f32 to vector<128x32xf32>
    %68 = arith.maximumf %66, %67 : vector<128x32xf32>
    %69 = vector.shape_cast %68 : vector<128x32xf32> to vector<8x16x32xf32>
    %70 = arith.truncf %69 : vector<8x16x32xf32> to vector<8x16x32xbf16>
    %c0_23 = arith.constant 0 : index
    %c0_24 = arith.constant 0 : index
    %c0_25 = arith.constant 0 : index
    %c0_26 = arith.constant 0 : index
    %71 = vector.load %arg7[%c0_23, %c0_24, %c0_25, %c0_26] : memref<1x8x16x32xbf16, #tpu.memory_space<vmem>>, vector<1x8x16x32xbf16>
    %72 = vector.shape_cast %71 : vector<1x8x16x32xbf16> to vector<8x16x32xbf16>
    %73 = vector.shape_cast %70 : vector<8x16x32xbf16> to vector<1x8x16x32xbf16>
    tpu.vector_store %arg7[%c0_23, %c0_24, %c0_25, %c0_26], %73 {strides = array<i32>} : memref<1x8x16x32xbf16, #tpu.memory_space<vmem>>, vector<1x8x16x32xbf16>,
    %cst_27 = arith.constant dense<0.000000e+00> : vector<32xf32>
    %74 = vector.multi_reduction <add>, %68, %cst_27 [0] : vector<128x32xf32> to vector<32xf32>
    %75 = vector.shape_cast %74 : vector<32xf32> to vector<1x32xf32>
    %cst_28 = arith.constant 7.812500e-03 : f32
    %76 = vector.broadcast %cst_28 : f32 to vector<1x32xf32>
    %77 = arith.mulf %75, %76 : vector<1x32xf32>
    %78 = vector.broadcast %77 : vector<1x32xf32> to vector<128x32xf32>
    %79 = arith.subf %68, %78 : vector<128x32xf32>
    %80 = arith.mulf %79, %79 : vector<128x32xf32>
    %cst_29 = arith.constant dense<0.000000e+00> : vector<32xf32>
    %81 = vector.multi_reduction <add>, %80, %cst_29 [0] : vector<128x32xf32> to vector<32xf32>
    %82 = vector.shape_cast %81 : vector<32xf32> to vector<1x32xf32>
    %83 = tpu.concatenate %75, %82 in 0 : vector<1x32xf32>, vector<1x32xf32> -> vector<2x32xf32>
    %c0_30 = arith.constant 0 : index
    %c0_31 = arith.constant 0 : index
    %c0_32 = arith.constant 0 : index
    %c0_33 = arith.constant 0 : index
    %84 = vector.load %arg8[%c0_30, %c0_31, %c0_32, %c0_33] : memref<1x1x2x32xf32, #tpu.memory_space<vmem>>, vector<1x1x2x32xf32>
    %85 = vector.shape_cast %84 : vector<1x1x2x32xf32> to vector<2x32xf32>
    %86 = vector.shape_cast %83 : vector<2x32xf32> to vector<1x1x2x32xf32>
    tpu.vector_store %arg8[%c0_30, %c0_31, %c0_32, %c0_33], %86 {strides = array<i32>} : memref<1x1x2x32xf32, #tpu.memory_space<vmem>>, vector<1x1x2x32xf32>,
    return
  }
  func.func @transform_0(%arg0: i32, %arg1: i32) -> (i32, i32, i32, i32) {
    %c0_i32 = arith.constant 0 : i32
    %c0_i32_0 = arith.constant 0 : i32
    %c0_i32_1 = arith.constant 0 : i32
    %c0_i32_2 = arith.constant 0 : i32
    return %arg0, %c0_i32, %c0_i32_0, %c0_i32_1 : i32, i32, i32, i32
  }
  func.func @transform_1(%arg0: i32, %arg1: i32) -> (i32, i32) {
    %c0_i32 = arith.constant 0 : i32
    %c0_i32_0 = arith.constant 0 : i32
    %c0_i32_1 = arith.constant 0 : i32
    return %c0_i32, %c0_i32_0 : i32, i32
  }
  func.func @transform_2(%arg0: i32, %arg1: i32) -> (i32, i32) {
    %c0_i32 = arith.constant 0 : i32
    %c0_i32_0 = arith.constant 0 : i32
    %c0_i32_1 = arith.constant 0 : i32
    return %c0_i32, %c0_i32_0 : i32, i32
  }
  func.func @transform_3(%arg0: i32, %arg1: i32) -> (i32, i32) {
    %c0_i32 = arith.constant 0 : i32
    %c0_i32_0 = arith.constant 0 : i32
    %c0_i32_1 = arith.constant 0 : i32
    return %c0_i32, %c0_i32_0 : i32, i32
  }
  func.func @transform_4(%arg0: i32, %arg1: i32) -> (i32, i32) {
    %c0_i32 = arith.constant 0 : i32
    %c0_i32_0 = arith.constant 0 : i32
    %c0_i32_1 = arith.constant 0 : i32
    return %c0_i32, %c0_i32_0 : i32, i32
  }
  func.func @transform_5(%arg0: i32, %arg1: i32) -> (i32, i32, i32, i32) {
    %c0_i32 = arith.constant 0 : i32
    %c0_i32_0 = arith.constant 0 : i32
    %c0_i32_1 = arith.constant 0 : i32
    return %arg0, %arg1, %c0_i32, %c0_i32_0 : i32, i32, i32, i32
  }
  func.func @transform_6(%arg0: i32, %arg1: i32) -> (i32, i32, i32, i32) {
    %c0_i32 = arith.constant 0 : i32
    %c0_i32_0 = arith.constant 0 : i32
    %c0_i32_1 = arith.constant 0 : i32
    return %arg0, %arg1, %c0_i32, %c0_i32_0 : i32, i32, i32, i32
  }
}

</mosaic_0001>

<llo_original>
// kernel: mynet_forward.7
$region0: #{mynet_forward.7}
  #allocation0 [shape = 'u32[]', space=smem, size = 0x4, offset = 0x4, fixed_abs, tag = 'smem constant byte address 0x4 - core index']
  #allocation1 [shape = 'u32[144,128]{1,0:T(1,128)}', space=vmem, size = 0x12000, scoped, tag = 'internal scratch']
  %s0 = inlined_call_operand.vmem [shape: bf16[2,16,16,32], index: 0, kind: input, shape index: {}]
  %s1 = inlined_call_operand.vmem [shape: f32[1,32], index: 1, kind: input, shape index: {}]
  %s2 = inlined_call_operand.vmem [shape: f32[1,32], index: 2, kind: input, shape index: {}]
  %s3 = inlined_call_operand.vmem [shape: bf16[32,32], index: 3, kind: input, shape index: {}]
  %s4 = inlined_call_operand.vmem [shape: f32[1,32], index: 4, kind: input, shape index: {}]
  %s5 = inlined_call_operand.vmem [shape: bf16[2,16,16,32], index: 5, kind: output, shape index: {0}]
  %s6 = inlined_call_operand.vmem [shape: f32[2,2,2,32], index: 6, kind: output, shape index: {1}]
  %7 = xla_tuple %s5, %s6
  %s8 = sld [smem:[#allocation0]]
  $region61: #{mynet_forward.7} parent=0
    _
  %s10 = ssub.s32 1, %s8
  %s11 = scalar_select 0, %s10, %s8
  loop: start=0, step=1, limit=6
  $region2: #{mynet_forward.7} parent=0 // loop_pre_header
    _
  $region3: #{mynet_forward.7} parent=0 // loop_header
    %s13 = sphi 0, %s17
    %p14 = scmp.ge.s32.totalorder %s13, 6
    %s20 = sphi 0, %s32
    %s21 = sphi 0, %s28
    %s22 = sphi 0, %s20
    %s23 = sphi 0, %s21
    %s24 = sphi 0, %s22
    %s25 = sphi 0, %s23
    %s37 = sphi 0, %s39
    %s40 = sphi 0, %s37
    %s41 = sphi 0, %s40
    %s57 = sphi 0, %s41
    %s61 = sphi 0, %s61
    %s63 = sphi 0, %s61
    %s64 = sphi 0, %s63
    %s78 = sphi 0, %s64
    %s82 = sphi 0, %s82
    %s84 = sphi 0, %s82
    %s85 = sphi 0, %s84
    %s99 = sphi 0, %s85
    %s103 = sphi 0, %s103
    %s105 = sphi 0, %s103
    %s106 = sphi 0, %s105
    %s120 = sphi 0, %s106
    %s124 = sphi 0, %s124
    %s126 = sphi 0, %s124
    %s127 = sphi 0, %s126
    %s141 = sphi 0, %s127
    %s149 = sphi 0, %s151
    %s152 = sphi 0, %s149
    %s153 = sphi 0, %s152
    %s169 = sphi 0, %s153
    %s177 = sphi 0, %s179
    %s180 = sphi 0, %s177
    %s181 = sphi 0, %s180
    %s197 = sphi 0, %s181
  $region4: #{mynet_forward.7} parent=0 // loop_header_branch
    %16 = sbr.rel (%p14) target = $region8
  $region5: #{mynet_forward.7} parent=0 // loop_body
    %s18 = ssub.s32 %s13, 1
    %s19 = ssub.s32 %s13, 2
    %s26 = sadd.s32 1, %s21
    %p27 = scmp.ge.s32.totalorder %s26, 2
    %s28 = scalar_select %p27, 0, %s26
    %s29 = sadd.s32 1, %s20
    %s30 = scalar_select %p27, %s29, %s20
    %p31 = scmp.ge.s32.totalorder %s30, 2
    %s32 = scalar_select %p31, 0, %s30
    %s33 = ssub.s32 %s20, %s32
    %s34 = ssub.s32 %s21, %s28
    %s35 = sor.u32 %s33, %s34
    %p36 = scmp.eq.s32.totalorder %s35, 0
    %s38 = sadd.s32 %s37, 1
    %s39 = scalar_select %p36, %s37, %s38
    %p42 = pneg %p36
    %p43 = scmp.eq.s32.totalorder %s13, 3
    %p44 = por %p42, %p43
    %p45 = scmp.ne.s32.totalorder %s37, %s40
    %p46 = scmp.eq.s32.totalorder %s13, 0
    %p47 = por %p45, %p46
    %p48 = scmp.ne.s32.totalorder %s37, %s40
    %p49 = scmp.eq.s32.totalorder %s18, 3
    %p50 = por %p48, %p49
    %p51 = scmp.ne.s32.totalorder %s40, %s41
    %p52 = scmp.eq.s32.totalorder %s18, 0
    %p53 = por %p51, %p52
    %p54 = scmp.ne.s32.totalorder %s40, %s41
    %p55 = scmp.eq.s32.totalorder %s19, 3
    %p56 = por %p54, %p55
    %p58 = scmp.ne.s32.totalorder %s41, %s57
    %p59 = scmp.eq.s32.totalorder %s19, 0
    %p60 = por %p58, %p59
    %s62 = sadd.s32 %s61, 1
    %p65 = scmp.eq.s32.totalorder %s13, 3
    %p66 = scmp.ne.s32.totalorder %s61, %s63
    %p67 = scmp.eq.s32.totalorder %s13, 0
    %p68 = por %p66, %p67
    %p69 = scmp.ne.s32.totalorder %s61, %s63
    %p70 = scmp.eq.s32.totalorder %s18, 3
    %p71 = por %p69, %p70
    %p72 = scmp.ne.s32.totalorder %s63, %s64
    %p73 = scmp.eq.s32.totalorder %s18, 0
    %p74 = por %p72, %p73
    %p75 = scmp.ne.s32.totalorder %s63, %s64
    %p76 = scmp.eq.s32.totalorder %s19, 3
    %p77 = por %p75, %p76
    %p79 = scmp.ne.s32.totalorder %s64, %s78
    %p80 = scmp.eq.s32.totalorder %s19, 0
    %p81 = por %p79, %p80
    %s83 = sadd.s32 %s82, 1
    %p86 = scmp.eq.s32.totalorder %s13, 3
    %p87 = scmp.ne.s32.totalorder %s82, %s84
    %p88 = scmp.eq.s32.totalorder %s13, 0
    %p89 = por %p87, %p88
    %p90 = scmp.ne.s32.totalorder %s82, %s84
    %p91 = scmp.eq.s32.totalorder %s18, 3
    %p92 = por %p90, %p91
    %p93 = scmp.ne.s32.totalorder %s84, %s85
    %p94 = scmp.eq.s32.totalorder %s18, 0
    %p95 = por %p93, %p94
    %p96 = scmp.ne.s32.totalorder %s84, %s85
    %p97 = scmp.eq.s32.totalorder %s19, 3
    %p98 = por %p96, %p97
    %p100 = scmp.ne.s32.totalorder %s85, %s99
    %p101 = scmp.eq.s32.totalorder %s19, 0
    %p102 = por %p100, %p101
    %s104 = sadd.s32 %s103, 1
    %p107 = scmp.eq.s32.totalorder %s13, 3
    %p108 = scmp.ne.s32.totalorder %s103, %s105
    %p109 = scmp.eq.s32.totalorder %s13, 0
    %p110 = por %p108, %p109
    %p111 = scmp.ne.s32.totalorder %s103, %s105
    %p112 = scmp.eq.s32.totalorder %s18, 3
    %p113 = por %p111, %p112
    %p114 = scmp.ne.s32.totalorder %s105, %s106
    %p115 = scmp.eq.s32.totalorder %s18, 0
    %p116 = por %p114, %p115
    %p117 = scmp.ne.s32.totalorder %s105, %s106
    %p118 = scmp.eq.s32.totalorder %s19, 3
    %p119 = por %p117, %p118
    %p121 = scmp.ne.s32.totalorder %s106, %s120
    %p122 = scmp.eq.s32.totalorder %s19, 0
    %p123 = por %p121, %p122
    %s125 = sadd.s32 %s124, 1
    %p128 = scmp.eq.s32.totalorder %s13, 3
    %p129 = scmp.ne.s32.totalorder %s124, %s126
    %p130 = scmp.eq.s32.totalorder %s13, 0
    %p131 = por %p129, %p130
    %p132 = scmp.ne.s32.totalorder %s124, %s126
    %p133 = scmp.eq.s32.totalorder %s18, 3
    %p134 = por %p132, %p133
    %p135 = scmp.ne.s32.totalorder %s126, %s127
    %p136 = scmp.eq.s32.totalorder %s18, 0
    %p137 = por %p135, %p136
    %p138 = scmp.ne.s32.totalorder %s126, %s127
    %p139 = scmp.eq.s32.totalorder %s19, 3
    %p140 = por %p138, %p139
    %p142 = scmp.ne.s32.totalorder %s127, %s141
    %p143 = scmp.eq.s32.totalorder %s19, 0
    %p144 = por %p142, %p143
    %s145 = ssub.s32 %s20, %s32
    %s146 = ssub.s32 %s21, %s28
    %s147 = sor.u32 %s145, %s146
    %p148 = scmp.eq.s32.totalorder %s147, 0
    %s150 = sadd.s32 %s149, 1
    %s151 = scalar_select %p148, %s149, %s150
    %p154 = pneg %p148
    %p155 = scmp.eq.s32.totalorder %s13, 3
    %p156 = por %p154, %p155
    %p157 = scmp.ne.s32.totalorder %s149, %s152
    %p158 = scmp.eq.s32.totalorder %s13, 0
    %p159 = por %p157, %p158
    %p160 = scmp.ne.s32.totalorder %s149, %s152
    %p161 = scmp.eq.s32.totalorder %s18, 3
    %p162 = por %p160, %p161
    %p163 = scmp.ne.s32.totalorder %s152, %s153
    %p164 = scmp.eq.s32.totalorder %s18, 0
    %p165 = por %p163, %p164
    %p166 = scmp.ne.s32.totalorder %s152, %s153
    %p167 = scmp.eq.s32.totalorder %s19, 3
    %p168 = por %p166, %p167
    %p170 = scmp.ne.s32.totalorder %s153, %s169
    %p171 = scmp.eq.s32.totalorder %s19, 0
    %p172 = por %p170, %p171
    %s173 = ssub.s32 %s20, %s32
    %s174 = ssub.s32 %s21, %s28
    %s175 = sor.u32 %s173, %s174
    %p176 = scmp.eq.s32.totalorder %s175, 0
    %s178 = sadd.s32 %s177, 1
    %s179 = scalar_select %p176, %s177, %s178
    %p182 = pneg %p176
    %p183 = scmp.eq.s32.totalorder %s13, 3
    %p184 = por %p182, %p183
    %p185 = scmp.ne.s32.totalorder %s177, %s180
    %p186 = scmp.eq.s32.totalorder %s13, 0
    %p187 = por %p185, %p186
    %p188 = scmp.ne.s32.totalorder %s177, %s180
    %p189 = scmp.eq.s32.totalorder %s18, 3
    %p190 = por %p188, %p189
    %p191 = scmp.ne.s32.totalorder %s180, %s181
    %p192 = scmp.eq.s32.totalorder %s18, 0
    %p193 = por %p191, %p192
    %p194 = scmp.ne.s32.totalorder %s180, %s181
    %p195 = scmp.eq.s32.totalorder %s19, 3
    %p196 = por %p194, %p195
    %p198 = scmp.ne.s32.totalorder %s181, %s197
    %p199 = scmp.eq.s32.totalorder %s19, 0
    %p200 = por %p198, %p199
    %p201 = scmp.le.s32.totalorder 1, %s13
    %p202 = scmp.lt.s32.totalorder %s13, 5
    %p203 = pnand %p201, %p202
    %p204 = pneg %p203
    // Predicated region
    $region9: #{mynet_forward.7} parent=5 // pred_check
      _
    $region10: #{mynet_forward.7} parent=5 // pred_check_branch
      %206 = sbr.rel (%p203) target = $region12
    $region11: #{mynet_forward.7} parent=5 // pred_region
      %s207 = ssub.s32 %s13, 1
      // Predicated region
      $region13: #{mynet_forward.7} parent=11 // pred_check
        %p208 = pneg %p74
      $region14: #{mynet_forward.7} parent=11 // pred_check_branch
        %210 = sbr.rel (%p208) target = $region16
      $region15: #{mynet_forward.7} parent=11 // pred_region
        _
      $region16: #{mynet_forward.7} parent=11 // pred_fallthru
        _
      // Predicated region
      $region17: #{mynet_forward.7} parent=11 // pred_check
        %p211 = pneg %p95
      $region18: #{mynet_forward.7} parent=11 // pred_check_branch
        %213 = sbr.rel (%p211) target = $region20
      $region19: #{mynet_forward.7} parent=11 // pred_region
        _
      $region20: #{mynet_forward.7} parent=11 // pred_fallthru
        _
      // Predicated region
      $region21: #{mynet_forward.7} parent=11 // pred_check
        %p214 = pneg %p116
      $region22: #{mynet_forward.7} parent=11 // pred_check_branch
        %216 = sbr.rel (%p214) target = $region24
      $region23: #{mynet_forward.7} parent=11 // pred_region
        _
      $region24: #{mynet_forward.7} parent=11 // pred_fallthru
        _
      // Predicated region
      $region25: #{mynet_forward.7} parent=11 // pred_check
        %p217 = pneg %p137
      $region26: #{mynet_forward.7} parent=11 // pred_check_branch
        %219 = sbr.rel (%p217) target = $region28
      $region27: #{mynet_forward.7} parent=11 // pred_region
        _
      $region28: #{mynet_forward.7} parent=11 // pred_fallthru
        _
    $region12: #{mynet_forward.7} parent=5 // pred_fallthru
      _
    %p220 = scmp.lt.s32.totalorder %s13, 4
    // Predicated region
    $region29: #{mynet_forward.7} parent=5 // pred_check
      %p221 = pneg %p220
    $region30: #{mynet_forward.7} parent=5 // pred_check_branch
      %223 = sbr.rel (%p221) target = $region32
    $region31: #{mynet_forward.7} parent=5 // pred_region
      // Predicated region
      $region33: #{mynet_forward.7} parent=31 // pred_check
        %p224 = pneg %p47
      $region34: #{mynet_forward.7} parent=31 // pred_check_branch
        %226 = sbr.rel (%p224) target = $region36
      $region35: #{mynet_forward.7} parent=31 // pred_region
        %s227 = smul.u32 8, %s21
        %p228 = scmp.lt.s32.totalorder %s20, 1
        %s229 = scalar_select %p228, %s20, 1
        %p230 = scmp.lt.s32.totalorder %s227, 15
        %s231 = scalar_select %p230, %s227, 15
        %s232 = smul.addr %s231, 2
        %s233 = smul.addr %s229, 32
        %s234 = sadd.s32 %s232, %s233
        %s235 = smul.addr %s234, 4
        %s236 = scalar_lea.vmem %s0, %s235
        %s237 = smul.u32 8, %s21
      $region36: #{mynet_forward.7} parent=31 // pred_fallthru
        _
    $region32: #{mynet_forward.7} parent=5 // pred_fallthru
      _
    %p238 = scmp.le.s32.totalorder 1, %s13
    %p239 = scmp.lt.s32.totalorder %s13, 5
    %p240 = pnand %p238, %p239
    %p241 = pneg %p240
    // Predicated region
    $region37: #{mynet_forward.7} parent=5 // pred_check
      _
    $region38: #{mynet_forward.7} parent=5 // pred_check_branch
      %243 = sbr.rel (%p240) target = $region40
    $region39: #{mynet_forward.7} parent=5 // pred_region
      %s244 = ssub.s32 %s13, 1
      %s245 = smul.u32 8, %s23
      %p246 = scmp.lt.s32.totalorder %s22, 1
      %s247 = scalar_select %p246, %s22, 1
      %p248 = scmp.lt.s32.totalorder %s245, 15
      %s249 = scalar_select %p248, %s245, 15
      %s250 = smul.addr %s249, 2
      %s251 = smul.addr %s247, 32
      %s252 = sadd.s32 %s250, %s251
      %s253 = smul.addr %s252, 4
      %s254 = scalar_lea.vmem %s0, %s253
      %p255 = pneg %p53
      %p256 = pneg %p50
      %p257 = pneg %p74
      %p258 = pneg %p71
      %p259 = pneg %p95
      %p260 = pneg %p92
      %p261 = pneg %p116
      %p262 = pneg %p113
      %p263 = pneg %p137
      %p264 = pneg %p134
      %p265 = pneg %p165
      %p266 = pneg %p162
      %s267 = smul.u32 8, %s23
      %p268 = scmp.lt.s32.totalorder %s22, 1
      %s269 = scalar_select %p268, %s22, 1
      %p270 = scmp.lt.s32.totalorder %s267, 15
      %s271 = scalar_select %p270, %s267, 15
      %s272 = smul.addr %s271, 2
      %s273 = smul.addr %s269, 32
      %s274 = sadd.s32 %s272, %s273
      %s275 = smul.addr %s274, 4
      %s276 = scalar_lea.vmem %s5, %s275
      %p277 = pneg %p193
      %p278 = pneg %p190
      %p279 = scmp.lt.s32.totalorder %s22, 1
      %s280 = scalar_select %p279, %s22, 1
      %p281 = scmp.lt.s32.totalorder %s23, 1
      %s282 = scalar_select %p281, %s23, 1
      %s283 = smul.addr %s280, 2
      %s284 = sadd.s32 %s282, %s283
      %s285 = smul.addr %s284, 2
      %s286 = scalar_lea.vmem %s6, %s285
      %s287 = smul.u32 8, %s23
      %p288 = scmp.lt.s32.totalorder %s22, 1
      %s289 = scalar_select %p288, %s22, 1
      %p290 = scmp.lt.s32.totalorder %s287, 15
      %s291 = scalar_select %p290, %s287, 15
      %s292 = smul.addr %s291, 2
      %s293 = smul.addr %s289, 32
      %s294 = sadd.s32 %s292, %s293
      %s295 = smul.addr %s294, 4
      %s296 = scalar_lea.vmem %s0, %s295
      %s297 = smul.u32 8, %s23
      %s298 = smul.u32 8, %s23
      %p299 = scmp.lt.s32.totalorder %s22, 1
      %s300 = scalar_select %p299, %s22, 1
      %p301 = scmp.lt.s32.totalorder %s298, 15
      %s302 = scalar_select %p301, %s298, 15
      %s303 = smul.addr %s302, 2
      %s304 = smul.addr %s300, 32
      %s305 = sadd.s32 %s303, %s304
      %s306 = smul.addr %s305, 4
      %s307 = scalar_lea.vmem %s5, %s306
      %s308 = smul.u32 8, %s23
      %p309 = scmp.lt.s32.totalorder %s22, 1
      %s310 = scalar_select %p309, %s22, 1
      %p311 = scmp.lt.s32.totalorder %s23, 1
      %s312 = scalar_select %p311, %s23, 1
      %s313 = smul.addr %s310, 2
      %s314 = sadd.s32 %s312, %s313
      %s315 = smul.addr %s314, 2
      %s316 = scalar_lea.vmem %s6, %s315
      %v318 = vld [vmem:[%s296] sm:$0xf]
      %v319 = vld [vmem:[%s296 + $0x4] sm:$0xf]
      %v320 = vld [vmem:[%s296 + $0x8] sm:$0xf]
      %v321 = vld [vmem:[%s296 + $0xc] sm:$0xf]
      %v322 = vld [vmem:[%s296 + $0x10] sm:$0xf]
      %v323 = vld [vmem:[%s296 + $0x14] sm:$0xf]
      %v324 = vld [vmem:[%s296 + $0x18] sm:$0xf]
      %v325 = vld [vmem:[%s296 + $0x1c] sm:$0xf]
      %v326 = vld [vmem:[%s296 + $0x20] sm:$0xf]
      %v327 = vld [vmem:[%s296 + $0x24] sm:$0xf]
      %v328 = vld [vmem:[%s296 + $0x28] sm:$0xf]
      %v329 = vld [vmem:[%s296 + $0x2c] sm:$0xf]
      %v330 = vld [vmem:[%s296 + $0x30] sm:$0xf]
      %v331 = vld [vmem:[%s296 + $0x34] sm:$0xf]
      %v332 = vld [vmem:[%s296 + $0x38] sm:$0xf]
      %v333 = vld [vmem:[%s296 + $0x3c] sm:$0xf]
      %v334 = vunpack.c.l.bf16 %v318
      %v335 = vunpack.c.l.bf16 %v319
      %v336 = vunpack.c.l.bf16 %v320
      %v337 = vunpack.c.l.bf16 %v321
      %v338 = vunpack.c.l.bf16 %v322
      %v339 = vunpack.c.l.bf16 %v323
      %v340 = vunpack.c.l.bf16 %v324
      %v341 = vunpack.c.l.bf16 %v325
      %v342 = vunpack.c.l.bf16 %v326
      %v343 = vunpack.c.l.bf16 %v327
      %v344 = vunpack.c.l.bf16 %v328
      %v345 = vunpack.c.l.bf16 %v329
      %v346 = vunpack.c.l.bf16 %v330
      %v347 = vunpack.c.l.bf16 %v331
      %v348 = vunpack.c.l.bf16 %v332
      %v349 = vunpack.c.l.bf16 %v333
      %v350 = vld [vmem:[%s1] sm:$0x1]
      %v352 = vlaneseq
      %v353 = vshrl.u32 %v352, 7
      %v354 = vsub.s32 0, %v353
      %v355 = vrot.slane %v350, %v354
      %v357 = vmul.f32 %v334, %v355
      %v358 = vmul.f32 %v335, %v355
      %v359 = vmul.f32 %v336, %v355
      %v360 = vmul.f32 %v337, %v355
      %v361 = vmul.f32 %v338, %v355
      %v362 = vmul.f32 %v339, %v355
      %v363 = vmul.f32 %v340, %v355
      %v364 = vmul.f32 %v341, %v355
      %v365 = vmul.f32 %v342, %v355
      %v366 = vmul.f32 %v343, %v355
      %v367 = vmul.f32 %v344, %v355
      %v368 = vmul.f32 %v345, %v355
      %v369 = vmul.f32 %v346, %v355
      %v370 = vmul.f32 %v347, %v355
      %v371 = vmul.f32 %v348, %v355
      %v372 = vmul.f32 %v349, %v355
      %v373 = vld [vmem:[%s2] sm:$0x1]
      %v375 = vlaneseq
      %v376 = vshrl.u32 %v375, 7
      %v377 = vsub.s32 0, %v376
      %v378 = vrot.slane %v373, %v377
      %v380 = vadd.f32 %v357, %v378
      %v381 = vadd.f32 %v358, %v378
      %v382 = vadd.f32 %v359, %v378
      %v383 = vadd.f32 %v360, %v378
      %v384 = vadd.f32 %v361, %v378
      %v385 = vadd.f32 %v362, %v378
      %v386 = vadd.f32 %v363, %v378
      %v387 = vadd.f32 %v364, %v378
      %v388 = vadd.f32 %v365, %v378
      %v389 = vadd.f32 %v366, %v378
      %v390 = vadd.f32 %v367, %v378
      %v391 = vadd.f32 %v368, %v378
      %v392 = vadd.f32 %v369, %v378
      %v393 = vadd.f32 %v370, %v378
      %v394 = vadd.f32 %v371, %v378
      %v395 = vadd.f32 %v372, %v378
      %v396 = vpack.c.bf16 %v381, %v380
      %v397 = vpack.c.bf16 %v383, %v382
      %v398 = vpack.c.bf16 %v385, %v384
      %v399 = vpack.c.bf16 %v387, %v386
      %v400 = vpack.c.bf16 %v389, %v388
      %v401 = vpack.c.bf16 %v391, %v390
      %v402 = vpack.c.bf16 %v393, %v392
      %v403 = vpack.c.bf16 %v395, %v394
      %v404 = vld [vmem:[%s3] sm:$0xf]
      %v405 = vld [vmem:[%s3 + $0x4] sm:$0xf]
      %v406 = vld [vmem:[%s3 + $0x8] sm:$0xf]
      %v407 = vld [vmem:[%s3 + $0xc] sm:$0xf]
      %v408 = vld [vmem:[%s4] sm:$0x1]
      %v410 = vlaneseq
      %v411 = vshrl.u32 %v410, 7
      %v412 = vsub.s32 0, %v411
      %v413 = vrot.slane %v408, %v412
      %v419 = vunpack.c.l.b16 %v404
      %v420 = vunpack.c.l.b16 %v405
      %v421 = vunpack.c.l.b16 %v406
      %v422 = vunpack.c.l.b16 %v407
      %v423 = vpack.c.b16 %v420, %v419
      %v424 = vpack.c.b16 %v422, %v421
      %vm427 = vcmask 261120
      %v429 = vsel %vm427, %v396, 0
      %v432 = vsel %vm427, %v397, 0
      %v435 = vsel %vm427, %v398, 0
      %v438 = vsel %vm427, %v399, 0
      %v441 = vsel %vm427, %v400, 0
      %v444 = vsel %vm427, %v401, 0
      %v447 = vsel %vm427, %v402, 0
      %v450 = vsel %vm427, %v403, 0
      %452 = vmatprep.subr.bf16.mxu0 0
      %453 = vmatpush1.bf16.msra.mxu0 %v423
      %454 = vmatprep.subr.bf16.mxu0 0
      %455 = vmatpush1.bf16.msra.mxu0 %v424
      %456 = vmatprep.subr.bf16.mxu0 0
      %457 = vmatpush1.bf16.msra.mxu0 0
      %458 = vmatprep.subr.bf16.mxu0 0
      %459 = vmatpush1.bf16.msra.mxu0 0
      %460 = vmatprep.subr.bf16.mxu0 0
      %461 = vmatpush1.bf16.msra.mxu0 0
      %462 = vmatprep.subr.bf16.mxu0 0
      %463 = vmatpush1.bf16.msra.mxu0 0
      %464 = vmatprep.subr.bf16.mxu0 0
      %465 = vmatpush1.bf16.msra.mxu0 0
      %466 = vmatprep.subr.bf16.mxu0 0
      %467 = vmatpush1.bf16.msra.mxu0 0
      %468 = vmatprep.subr.bf16.mxu0 0
      %469 = vmatpush1.bf16.msra.mxu0 0
      %470 = vmatprep.subr.bf16.mxu0 0
      %471 = vmatpush1.bf16.msra.mxu0 0
      %472 = vmatprep.subr.bf16.mxu0 0
      %473 = vmatpush1.bf16.msra.mxu0 0
      %474 = vmatprep.subr.bf16.mxu0 0
      %475 = vmatpush1.bf16.msra.mxu0 0
      %476 = vmatprep.subr.bf16.mxu0 0
      %477 = vmatpush1.bf16.msra.mxu0 0
      %478 = vmatprep.subr.bf16.mxu0 0
      %479 = vmatpush1.bf16.msra.mxu0 0
      %480 = vmatprep.subr.bf16.mxu0 0
      %481 = vmatpush1.bf16.msra.mxu0 0
      %482 = vmatprep.subr.bf16.mxu0 0
      %483 = vmatpush1.bf16.msra.mxu0 0
      %484 = vmatprep.mubr.bf16.mxu0 0
      %485 = vmatmul.mubr.bf16.gmra.mrb[0].mxu0 %v429
      %v486 = vpop.f32.mrb[0].mxu0
      %v487 = vadd.f32 %v413, %v486
      %v488 = vpop.f32.mrb[0].mxu0
      %v489 = vpop.f32.mrb[0].mxu0
      %v490 = vadd.f32 %v413, %v489
      %v491 = vpop.f32.mrb[0].mxu0
      %492 = vmatprep.mubr.bf16.mxu0 0
      %493 = vmatmul.mubr.bf16.gmra.mrb[0].mxu0 %v432
      %v494 = vpop.f32.mrb[0].mxu0
      %v495 = vadd.f32 %v413, %v494
      %v496 = vpop.f32.mrb[0].mxu0
      %v497 = vpop.f32.mrb[0].mxu0
      %v498 = vadd.f32 %v413, %v497
      %v499 = vpop.f32.mrb[0].mxu0
      %500 = vmatprep.mubr.bf16.mxu0 0
      %501 = vmatmul.mubr.bf16.gmra.mrb[0].mxu0 %v435
      %v502 = vpop.f32.mrb[0].mxu0
      %v503 = vadd.f32 %v413, %v502
      %v504 = vpop.f32.mrb[0].mxu0
      %v505 = vpop.f32.mrb[0].mxu0
      %v506 = vadd.f32 %v413, %v505
      %v507 = vpop.f32.mrb[0].mxu0
      %508 = vmatprep.mubr.bf16.mxu0 0
      %509 = vmatmul.mubr.bf16.gmra.mrb[0].mxu0 %v438
      %v510 = vpop.f32.mrb[0].mxu0
      %v511 = vadd.f32 %v413, %v510
      %v512 = vpop.f32.mrb[0].mxu0
      %v513 = vpop.f32.mrb[0].mxu0
      %v514 = vadd.f32 %v413, %v513
      %v515 = vpop.f32.mrb[0].mxu0
      %516 = vmatprep.mubr.bf16.mxu0 0
      %517 = vmatmul.mubr.bf16.gmra.mrb[0].mxu0 %v441
      %v518 = vpop.f32.mrb[0].mxu0
      %v519 = vadd.f32 %v413, %v518
      %v520 = vpop.f32.mrb[0].mxu0
      %v521 = vpop.f32.mrb[0].mxu0
      %v522 = vadd.f32 %v413, %v521
      %v523 = vpop.f32.mrb[0].mxu0
      %524 = vmatprep.mubr.bf16.mxu0 0
      %525 = vmatmul.mubr.bf16.gmra.mrb[0].mxu0 %v444
      %v526 = vpop.f32.mrb[0].mxu0
      %v527 = vadd.f32 %v413, %v526
      %v528 = vpop.f32.mrb[0].mxu0
      %v529 = vpop.f32.mrb[0].mxu0
      %v530 = vadd.f32 %v413, %v529
      %v531 = vpop.f32.mrb[0].mxu0
      %532 = vmatprep.mubr.bf16.mxu0 0
      %533 = vmatmul.mubr.bf16.gmra.mrb[0].mxu0 %v447
      %v534 = vpop.f32.mrb[0].mxu0
      %v535 = vadd.f32 %v413, %v534
      %v536 = vpop.f32.mrb[0].mxu0
      %v537 = vpop.f32.mrb[0].mxu0
      %v538 = vadd.f32 %v413, %v537
      %v539 = vpop.f32.mrb[0].mxu0
      %540 = vmatprep.mubr.bf16.mxu0 0
      %541 = vmatmul.mubr.bf16.gmra.mrb[0].mxu0 %v450
      %v542 = vpop.f32.mrb[0].mxu0
      %v543 = vadd.f32 %v413, %v542
      %v544 = vpop.f32.mrb[0].mxu0
      %v545 = vpop.f32.mrb[0].mxu0
      %v546 = vadd.f32 %v413, %v545
      %v547 = vpop.f32.mrb[0].mxu0
      %548 = vdwg.mxu0
      %v549 = vpack.c.bf16 %v490, %v487
      %v550 = vpack.c.bf16 %v498, %v495
      %v551 = vpack.c.bf16 %v506, %v503
      %v552 = vpack.c.bf16 %v514, %v511
      %v553 = vpack.c.bf16 %v522, %v519
      %v554 = vpack.c.bf16 %v530, %v527
      %v555 = vpack.c.bf16 %v538, %v535
      %v556 = vpack.c.bf16 %v546, %v543
      %v565 = vunpack.c.l.b16 %v549
      %v566 = vunpack.c.h.b16 %v549
      %v567 = vunpack.c.l.b16 %v550
      %v568 = vunpack.c.h.b16 %v550
      %v569 = vunpack.c.l.b16 %v551
      %v570 = vunpack.c.h.b16 %v551
      %v571 = vunpack.c.l.b16 %v552
      %v572 = vunpack.c.h.b16 %v552
      %v573 = vunpack.c.l.b16 %v553
      %v574 = vunpack.c.h.b16 %v553
      %v575 = vunpack.c.l.b16 %v554
      %v576 = vunpack.c.h.b16 %v554
      %v577 = vunpack.c.l.b16 %v555
      %v578 = vunpack.c.h.b16 %v555
      %v579 = vunpack.c.l.b16 %v556
      %v580 = vunpack.c.h.b16 %v556
      %v581 = vpack.c.b16 %v565, %v565
      %v582 = vpack.c.b16 %v566, %v566
      %v583 = vpack.c.b16 %v567, %v567
      %v584 = vpack.c.b16 %v568, %v568
      %v585 = vpack.c.b16 %v569, %v569
      %v586 = vpack.c.b16 %v570, %v570
      %v587 = vpack.c.b16 %v571, %v571
      %v588 = vpack.c.b16 %v572, %v572
      %v589 = vpack.c.b16 %v573, %v573
      %v590 = vpack.c.b16 %v574, %v574
      %v591 = vpack.c.b16 %v575, %v575
      %v592 = vpack.c.b16 %v576, %v576
      %v593 = vpack.c.b16 %v577, %v577
      %v594 = vpack.c.b16 %v578, %v578
      %v595 = vpack.c.b16 %v579, %v579
      %v596 = vpack.c.b16 %v580, %v580
      %vm613 = vcmask 257024
      %614 = vst.msk [vmem:[%s307] sm:$0xf] %vm613, %v581
      %615 = vst.msk [vmem:[%s307 + $0x4] sm:$0xf] %vm613, %v582
      %616 = vst.msk [vmem:[%s307 + $0x8] sm:$0xf] %vm613, %v583
      %617 = vst.msk [vmem:[%s307 + $0xc] sm:$0xf] %vm613, %v584
      %618 = vst.msk [vmem:[%s307 + $0x10] sm:$0xf] %vm613, %v585
      %619 = vst.msk [vmem:[%s307 + $0x14] sm:$0xf] %vm613, %v586
      %620 = vst.msk [vmem:[%s307 + $0x18] sm:$0xf] %vm613, %v587
      %621 = vst.msk [vmem:[%s307 + $0x1c] sm:$0xf] %vm613, %v588
      %622 = vst.msk [vmem:[%s307 + $0x20] sm:$0xf] %vm613, %v589
      %623 = vst.msk [vmem:[%s307 + $0x24] sm:$0xf] %vm613, %v590
      %624 = vst.msk [vmem:[%s307 + $0x28] sm:$0xf] %vm613, %v591
      %625 = vst.msk [vmem:[%s307 + $0x2c] sm:$0xf] %vm613, %v592
      %626 = vst.msk [vmem:[%s307 + $0x30] sm:$0xf] %vm613, %v593
      %627 = vst.msk [vmem:[%s307 + $0x34] sm:$0xf] %vm613, %v594
      %628 = vst.msk [vmem:[%s307 + $0x38] sm:$0xf] %vm613, %v595
      %629 = vst.msk [vmem:[%s307 + $0x3c] sm:$0xf] %vm613, %v596
      %v630 = vsel %vm427, %v487, 0.0
      %v631 = vsel %vm427, %v490, 0.0
      %v632 = vadd.f32 %v630, %v631
      %v633 = vsel %vm427, %v495, 0.0
      %v634 = vadd.f32 %v632, %v633
      %v635 = vsel %vm427, %v498, 0.0
      %v636 = vadd.f32 %v634, %v635
      %v637 = vsel %vm427, %v503, 0.0
      %v638 = vadd.f32 %v636, %v637
      %v639 = vsel %vm427, %v506, 0.0
      %v640 = vadd.f32 %v638, %v639
      %v641 = vsel %vm427, %v511, 0.0
      %v642 = vadd.f32 %v640, %v641
      %v643 = vsel %vm427, %v514, 0.0
      %v644 = vadd.f32 %v642, %v643
      %v645 = vsel %vm427, %v519, 0.0
      %v646 = vadd.f32 %v644, %v645
      %v647 = vsel %vm427, %v522, 0.0
      %v648 = vadd.f32 %v646, %v647
      %v649 = vsel %vm427, %v527, 0.0
      %v650 = vadd.f32 %v648, %v649
      %v651 = vsel %vm427, %v530, 0.0
      %v652 = vadd.f32 %v650, %v651
      %v653 = vsel %vm427, %v535, 0.0
      %v654 = vadd.f32 %v652, %v653
      %v655 = vsel %vm427, %v538, 0.0
      %v656 = vadd.f32 %v654, %v655
      %v657 = vsel %vm427, %v543, 0.0
      %v658 = vadd.f32 %v656, %v657
      %v659 = vsel %vm427, %v546, 0.0
      %v660 = vadd.f32 %v658, %v659
      %v661 = vrot.slane %v660, 4
      %v662 = vadd.f32 %v660, %v661
      %v663 = vrot.slane %v662, 2
      %v664 = vadd.f32 %v662, %v663
      %v665 = vrot.slane %v664, 1
      %v666 = vadd.f32 %v664, %v665
      %v667 = vmul.f32 %v666, 0.0078125
      %v668 = vsub.f32 %v487, %v667
      %v669 = vsub.f32 %v490, %v667
      %v670 = vsub.f32 %v495, %v667
      %v671 = vsub.f32 %v498, %v667
      %v672 = vsub.f32 %v503, %v667
      %v673 = vsub.f32 %v506, %v667
      %v674 = vsub.f32 %v511, %v667
      %v675 = vsub.f32 %v514, %v667
      %v676 = vsub.f32 %v519, %v667
      %v677 = vsub.f32 %v522, %v667
      %v678 = vsub.f32 %v527, %v667
      %v679 = vsub.f32 %v530, %v667
      %v680 = vsub.f32 %v535, %v667
      %v681 = vsub.f32 %v538, %v667
      %v682 = vsub.f32 %v543, %v667
      %v683 = vsub.f32 %v546, %v667
      %v684 = vmul.f32 %v668, %v668
      %v685 = vmul.f32 %v669, %v669
      %v686 = vmul.f32 %v670, %v670
      %v687 = vmul.f32 %v671, %v671
      %v688 = vmul.f32 %v672, %v672
      %v689 = vmul.f32 %v673, %v673
      %v690 = vmul.f32 %v674, %v674
      %v691 = vmul.f32 %v675, %v675
      %v692 = vmul.f32 %v676, %v676
      %v693 = vmul.f32 %v677, %v677
      %v694 = vmul.f32 %v678, %v678
      %v695 = vmul.f32 %v679, %v679
      %v696 = vmul.f32 %v680, %v680
      %v697 = vmul.f32 %v681, %v681
      %v698 = vmul.f32 %v682, %v682
      %v699 = vmul.f32 %v683, %v683
      %v700 = vsel %vm427, %v684, 0.0
      %v701 = vsel %vm427, %v685, 0.0
      %v702 = vadd.f32 %v700, %v701
      %v703 = vsel %vm427, %v686, 0.0
      %v704 = vadd.f32 %v702, %v703
      %v705 = vsel %vm427, %v687, 0.0
      %v706 = vadd.f32 %v704, %v705
      %v707 = vsel %vm427, %v688, 0.0
      %v708 = vadd.f32 %v706, %v707
      %v709 = vsel %vm427, %v689, 0.0
      %v710 = vadd.f32 %v708, %v709
      %v711 = vsel %vm427, %v690, 0.0
      %v712 = vadd.f32 %v710, %v711
      %v713 = vsel %vm427, %v691, 0.0
      %v714 = vadd.f32 %v712, %v713
      %v715 = vsel %vm427, %v692, 0.0
      %v716 = vadd.f32 %v714, %v715
      %v717 = vsel %vm427, %v693, 0.0
      %v718 = vadd.f32 %v716, %v717
      %v719 = vsel %vm427, %v694, 0.0
      %v720 = vadd.f32 %v718, %v719
      %v721 = vsel %vm427, %v695, 0.0
      %v722 = vadd.f32 %v720, %v721
      %v723 = vsel %vm427, %v696, 0.0
      %v724 = vadd.f32 %v722, %v723
      %v725 = vsel %vm427, %v697, 0.0
      %v726 = vadd.f32 %v724, %v725
      %v727 = vsel %vm427, %v698, 0.0
      %v728 = vadd.f32 %v726, %v727
      %v729 = vsel %vm427, %v699, 0.0
      %v730 = vadd.f32 %v728, %v729
      %v731 = vrot.slane %v730, 4
      %v732 = vadd.f32 %v730, %v731
      %v733 = vrot.slane %v732, 2
      %v734 = vadd.f32 %v732, %v733
      %v735 = vrot.slane %v734, 1
      %v736 = vadd.f32 %v734, %v735
      %vm737 = vcmask 1040384
      %v738 = vsel %vm737, %v666, %v736
      %vm739 = vcmask 254976
      %740 = vst.msk [vmem:[%s316] sm:$0x3] %vm739, %v738
      %s741 = smul.u32 8, %s23
      %p742 = scmp.lt.s32.totalorder %s22, 1
      %s743 = scalar_select %p742, %s22, 1
      %p744 = scmp.lt.s32.totalorder %s741, 15
      %s745 = scalar_select %p744, %s741, 15
      %s746 = smul.addr %s745, 2
      %s747 = smul.addr %s743, 32
      %s748 = sadd.s32 %s746, %s747
      %s749 = smul.addr %s748, 4
      %s750 = scalar_lea.vmem %s5, %s749
      %p751 = scmp.lt.s32.totalorder %s22, 1
      %s752 = scalar_select %p751, %s22, 1
      %p753 = scmp.lt.s32.totalorder %s23, 1
      %s754 = scalar_select %p753, %s23, 1
      %s755 = smul.addr %s752, 2
      %s756 = sadd.s32 %s754, %s755
      %s757 = smul.addr %s756, 2
      %s758 = scalar_lea.vmem %s6, %s757
      // Predicated region
      $region41: #{mynet_forward.7} parent=39 // pred_check
        %p759 = pneg %p162
      $region42: #{mynet_forward.7} parent=39 // pred_check_branch
        %761 = sbr.rel (%p759) target = $region44
      $region43: #{mynet_forward.7} parent=39 // pred_region
        %s762 = smul.u32 8, %s23
      $region44: #{mynet_forward.7} parent=39 // pred_fallthru
        _
      // Predicated region
      $region45: #{mynet_forward.7} parent=39 // pred_check
        %p763 = pneg %p190
      $region46: #{mynet_forward.7} parent=39 // pred_check_branch
        %765 = sbr.rel (%p763) target = $region48
      $region47: #{mynet_forward.7} parent=39 // pred_region
        _
      $region48: #{mynet_forward.7} parent=39 // pred_fallthru
        _
    $region40: #{mynet_forward.7} parent=5 // pred_fallthru
      _
    %p766 = scmp.le.s32.totalorder 2, %s13
    // Predicated region
    $region49: #{mynet_forward.7} parent=5 // pred_check
      %p767 = pneg %p766
    $region50: #{mynet_forward.7} parent=5 // pred_check_branch
      %769 = sbr.rel (%p767) target = $region52
    $region51: #{mynet_forward.7} parent=5 // pred_region
      %s770 = ssub.s32 %s13, 2
      // Predicated region
      $region53: #{mynet_forward.7} parent=51 // pred_check
        %p771 = pneg %p168
      $region54: #{mynet_forward.7} parent=51 // pred_check_branch
        %773 = sbr.rel (%p771) target = $region56
      $region55: #{mynet_forward.7} parent=51 // pred_region
        %s774 = smul.u32 8, %s25
        %p775 = scmp.lt.s32.totalorder %s24, 1
        %s776 = scalar_select %p775, %s24, 1
        %p777 = scmp.lt.s32.totalorder %s774, 15
        %s778 = scalar_select %p777, %s774, 15
        %s779 = smul.addr %s778, 2
        %s780 = smul.addr %s776, 32
        %s781 = sadd.s32 %s779, %s780
        %s782 = smul.addr %s781, 4
        %s783 = scalar_lea.vmem %s5, %s782
      $region56: #{mynet_forward.7} parent=51 // pred_fallthru
        _
      // Predicated region
      $region57: #{mynet_forward.7} parent=51 // pred_check
        %p784 = pneg %p196
      $region58: #{mynet_forward.7} parent=51 // pred_check_branch
        %786 = sbr.rel (%p784) target = $region60
      $region59: #{mynet_forward.7} parent=51 // pred_region
        %p787 = scmp.lt.s32.totalorder %s24, 1
        %s788 = scalar_select %p787, %s24, 1
        %p789 = scmp.lt.s32.totalorder %s25, 1
        %s790 = scalar_select %p789, %s25, 1
        %s791 = smul.addr %s788, 2
        %s792 = sadd.s32 %s790, %s791
        %s793 = smul.addr %s792, 2
        %s794 = scalar_lea.vmem %s6, %s793
      $region60: #{mynet_forward.7} parent=51 // pred_fallthru
        _
    $region52: #{mynet_forward.7} parent=5 // pred_fallthru
      _
  $region6: #{mynet_forward.7} parent=0 // loop_footer
    %s17 = sadd.s32 1, %s13
  $region7: #{mynet_forward.7} parent=0 // loop_footer_branch
    %12 = sbr.rel target = $region3
  $region8: #{mynet_forward.7} parent=0 // loop_exit
    _

// kernel: mynet_forward.4
$region0: #{mynet_forward.4}
  #allocation0 [shape = 'u32[]', space=smem, size = 0x4, offset = 0x4, fixed_abs, tag = 'smem constant byte address 0x4 - core index']
  #allocation1 [shape = 'u32[144,128]{1,0:T(1,128)}', space=vmem, size = 0x12000, scoped, tag = 'internal scratch']
  %s0 = inlined_call_operand.vmem [shape: bf16[2,16,16,4], index: 0, kind: input, shape index: {}]
  %s1 = inlined_call_operand.vmem [shape: f32[1,4], index: 1, kind: input, shape index: {}]
  %s2 = inlined_call_operand.vmem [shape: f32[1,4], index: 2, kind: input, shape index: {}]
  %s3 = inlined_call_operand.vmem [shape: bf16[36,32], index: 3, kind: input, shape index: {}]
  %s4 = inlined_call_operand.vmem [shape: f32[1,32], index: 4, kind: input, shape index: {}]
  %s5 = inlined_call_operand.vmem [shape: bf16[2,16,16,32], index: 5, kind: output, shape index: {0}]
  %s6 = inlined_call_operand.vmem [shape: f32[2,2,2,32], index: 6, kind: output, shape index: {1}]
  %7 = xla_tuple %s5, %s6
  %s8 = sld [smem:[#allocation0]]
  $region61: #{mynet_forward.4} parent=0
    _
  %s10 = ssub.s32 1, %s8
  %s11 = scalar_select 0, %s10, %s8
  loop: start=0, step=1, limit=6
  $region2: #{mynet_forward.4} parent=0 // loop_pre_header
    _
  $region3: #{mynet_forward.4} parent=0 // loop_header
    %s13 = sphi 0, %s17
    %p14 = scmp.ge.s32.totalorder %s13, 6
    %s20 = sphi 0, %s32
    %s21 = sphi 0, %s28
    %s22 = sphi 0, %s20
    %s23 = sphi 0, %s21
    %s24 = sphi 0, %s22
    %s25 = sphi 0, %s23
    %s35 = sphi 0, %s37
    %s38 = sphi 0, %s35
    %s39 = sphi 0, %s38
    %s55 = sphi 0, %s39
    %s59 = sphi 0, %s59
    %s61 = sphi 0, %s59
    %s62 = sphi 0, %s61
    %s76 = sphi 0, %s62
    %s80 = sphi 0, %s80
    %s82 = sphi 0, %s80
    %s83 = sphi 0, %s82
    %s97 = sphi 0, %s83
    %s101 = sphi 0, %s101
    %s103 = sphi 0, %s101
    %s104 = sphi 0, %s103
    %s118 = sphi 0, %s104
    %s122 = sphi 0, %s122
    %s124 = sphi 0, %s122
    %s125 = sphi 0, %s124
    %s139 = sphi 0, %s125
    %s147 = sphi 0, %s149
    %s150 = sphi 0, %s147
    %s151 = sphi 0, %s150
    %s167 = sphi 0, %s151
    %s175 = sphi 0, %s177
    %s178 = sphi 0, %s175
    %s179 = sphi 0, %s178
    %s195 = sphi 0, %s179
  $region4: #{mynet_forward.4} parent=0 // loop_header_branch
    %16 = sbr.rel (%p14) target = $region8
  $region5: #{mynet_forward.4} parent=0 // loop_body
    %s18 = ssub.s32 %s13, 1
    %s19 = ssub.s32 %s13, 2
    %s26 = sadd.s32 1, %s21
    %p27 = scmp.ge.s32.totalorder %s26, 2
    %s28 = scalar_select %p27, 0, %s26
    %s29 = sadd.s32 1, %s20
    %s30 = scalar_select %p27, %s29, %s20
    %p31 = scmp.ge.s32.totalorder %s30, 2
    %s32 = scalar_select %p31, 0, %s30
    %s33 = ssub.s32 %s20, %s32
    %p34 = scmp.eq.s32.totalorder %s33, 0
    %s36 = sadd.s32 %s35, 1
    %s37 = scalar_select %p34, %s35, %s36
    %p40 = pneg %p34
    %p41 = scmp.eq.s32.totalorder %s13, 3
    %p42 = por %p40, %p41
    %p43 = scmp.ne.s32.totalorder %s35, %s38
    %p44 = scmp.eq.s32.totalorder %s13, 0
    %p45 = por %p43, %p44
    %p46 = scmp.ne.s32.totalorder %s35, %s38
    %p47 = scmp.eq.s32.totalorder %s18, 3
    %p48 = por %p46, %p47
    %p49 = scmp.ne.s32.totalorder %s38, %s39
    %p50 = scmp.eq.s32.totalorder %s18, 0
    %p51 = por %p49, %p50
    %p52 = scmp.ne.s32.totalorder %s38, %s39
    %p53 = scmp.eq.s32.totalorder %s19, 3
    %p54 = por %p52, %p53
    %p56 = scmp.ne.s32.totalorder %s39, %s55
    %p57 = scmp.eq.s32.totalorder %s19, 0
    %p58 = por %p56, %p57
    %s60 = sadd.s32 %s59, 1
    %p63 = scmp.eq.s32.totalorder %s13, 3
    %p64 = scmp.ne.s32.totalorder %s59, %s61
    %p65 = scmp.eq.s32.totalorder %s13, 0
    %p66 = por %p64, %p65
    %p67 = scmp.ne.s32.totalorder %s59, %s61
    %p68 = scmp.eq.s32.totalorder %s18, 3
    %p69 = por %p67, %p68
    %p70 = scmp.ne.s32.totalorder %s61, %s62
    %p71 = scmp.eq.s32.totalorder %s18, 0
    %p72 = por %p70, %p71
    %p73 = scmp.ne.s32.totalorder %s61, %s62
    %p74 = scmp.eq.s32.totalorder %s19, 3
    %p75 = por %p73, %p74
    %p77 = scmp.ne.s32.totalorder %s62, %s76
    %p78 = scmp.eq.s32.totalorder %s19, 0
    %p79 = por %p77, %p78
    %s81 = sadd.s32 %s80, 1
    %p84 = scmp.eq.s32.totalorder %s13, 3
    %p85 = scmp.ne.s32.totalorder %s80, %s82
    %p86 = scmp.eq.s32.totalorder %s13, 0
    %p87 = por %p85, %p86
    %p88 = scmp.ne.s32.totalorder %s80, %s82
    %p89 = scmp.eq.s32.totalorder %s18, 3
    %p90 = por %p88, %p89
    %p91 = scmp.ne.s32.totalorder %s82, %s83
    %p92 = scmp.eq.s32.totalorder %s18, 0
    %p93 = por %p91, %p92
    %p94 = scmp.ne.s32.totalorder %s82, %s83
    %p95 = scmp.eq.s32.totalorder %s19, 3
    %p96 = por %p94, %p95
    %p98 = scmp.ne.s32.totalorder %s83, %s97
    %p99 = scmp.eq.s32.totalorder %s19, 0
    %p100 = por %p98, %p99
    %s102 = sadd.s32 %s101, 1
    %p105 = scmp.eq.s32.totalorder %s13, 3
    %p106 = scmp.ne.s32.totalorder %s101, %s103
    %p107 = scmp.eq.s32.totalorder %s13, 0
    %p108 = por %p106, %p107
    %p109 = scmp.ne.s32.totalorder %s101, %s103
    %p110 = scmp.eq.s32.totalorder %s18, 3
    %p111 = por %p109, %p110
    %p112 = scmp.ne.s32.totalorder %s103, %s104
    %p113 = scmp.eq.s32.totalorder %s18, 0
    %p114 = por %p112, %p113
    %p115 = scmp.ne.s32.totalorder %s103, %s104
    %p116 = scmp.eq.s32.totalorder %s19, 3
    %p117 = por %p115, %p116
    %p119 = scmp.ne.s32.totalorder %s104, %s118
    %p120 = scmp.eq.s32.totalorder %s19, 0
    %p121 = por %p119, %p120
    %s123 = sadd.s32 %s122, 1
    %p126 = scmp.eq.s32.totalorder %s13, 3
    %p127 = scmp.ne.s32.totalorder %s122, %s124
    %p128 = scmp.eq.s32.totalorder %s13, 0
    %p129 = por %p127, %p128
    %p130 = scmp.ne.s32.totalorder %s122, %s124
    %p131 = scmp.eq.s32.totalorder %s18, 3
    %p132 = por %p130, %p131
    %p133 = scmp.ne.s32.totalorder %s124, %s125
    %p134 = scmp.eq.s32.totalorder %s18, 0
    %p135 = por %p133, %p134
    %p136 = scmp.ne.s32.totalorder %s124, %s125
    %p137 = scmp.eq.s32.totalorder %s19, 3
    %p138 = por %p136, %p137
    %p140 = scmp.ne.s32.totalorder %s125, %s139
    %p141 = scmp.eq.s32.totalorder %s19, 0
    %p142 = por %p140, %p141
    %s143 = ssub.s32 %s20, %s32
    %s144 = ssub.s32 %s21, %s28
    %s145 = sor.u32 %s143, %s144
    %p146 = scmp.eq.s32.totalorder %s145, 0
    %s148 = sadd.s32 %s147, 1
    %s149 = scalar_select %p146, %s147, %s148
    %p152 = pneg %p146
    %p153 = scmp.eq.s32.totalorder %s13, 3
    %p154 = por %p152, %p153
    %p155 = scmp.ne.s32.totalorder %s147, %s150
    %p156 = scmp.eq.s32.totalorder %s13, 0
    %p157 = por %p155, %p156
    %p158 = scmp.ne.s32.totalorder %s147, %s150
    %p159 = scmp.eq.s32.totalorder %s18, 3
    %p160 = por %p158, %p159
    %p161 = scmp.ne.s32.totalorder %s150, %s151
    %p162 = scmp.eq.s32.totalorder %s18, 0
    %p163 = por %p161, %p162
    %p164 = scmp.ne.s32.totalorder %s150, %s151
    %p165 = scmp.eq.s32.totalorder %s19, 3
    %p166 = por %p164, %p165
    %p168 = scmp.ne.s32.totalorder %s151, %s167
    %p169 = scmp.eq.s32.totalorder %s19, 0
    %p170 = por %p168, %p169
    %s171 = ssub.s32 %s20, %s32
    %s172 = ssub.s32 %s21, %s28
    %s173 = sor.u32 %s171, %s172
    %p174 = scmp.eq.s32.totalorder %s173, 0
    %s176 = sadd.s32 %s175, 1
    %s177 = scalar_select %p174, %s175, %s176
    %p180 = pneg %p174
    %p181 = scmp.eq.s32.totalorder %s13, 3
    %p182 = por %p180, %p181
    %p183 = scmp.ne.s32.totalorder %s175, %s178
    %p184 = scmp.eq.s32.totalorder %s13, 0
    %p185 = por %p183, %p184
    %p186 = scmp.ne.s32.totalorder %s175, %s178
    %p187 = scmp.eq.s32.totalorder %s18, 3
    %p188 = por %p186, %p187
    %p189 = scmp.ne.s32.totalorder %s178, %s179
    %p190 = scmp.eq.s32.totalorder %s18, 0
    %p191 = por %p189, %p190
    %p192 = scmp.ne.s32.totalorder %s178, %s179
    %p193 = scmp.eq.s32.totalorder %s19, 3
    %p194 = por %p192, %p193
    %p196 = scmp.ne.s32.totalorder %s179, %s195
    %p197 = scmp.eq.s32.totalorder %s19, 0
    %p198 = por %p196, %p197
    %p199 = scmp.le.s32.totalorder 1, %s13
    %p200 = scmp.lt.s32.totalorder %s13, 5
    %p201 = pnand %p199, %p200
    %p202 = pneg %p201
    // Predicated region
    $region9: #{mynet_forward.4} parent=5 // pred_check
      _
    $region10: #{mynet_forward.4} parent=5 // pred_check_branch
      %204 = sbr.rel (%p201) target = $region12
    $region11: #{mynet_forward.4} parent=5 // pred_region
      %s205 = ssub.s32 %s13, 1
      // Predicated region
      $region13: #{mynet_forward.4} parent=11 // pred_check
        %p206 = pneg %p72
      $region14: #{mynet_forward.4} parent=11 // pred_check_branch
        %208 = sbr.rel (%p206) target = $region16
      $region15: #{mynet_forward.4} parent=11 // pred_region
        _
      $region16: #{mynet_forward.4} parent=11 // pred_fallthru
        _
      // Predicated region
      $region17: #{mynet_forward.4} parent=11 // pred_check
        %p209 = pneg %p93
      $region18: #{mynet_forward.4} parent=11 // pred_check_branch
        %211 = sbr.rel (%p209) target = $region20
      $region19: #{mynet_forward.4} parent=11 // pred_region
        _
      $region20: #{mynet_forward.4} parent=11 // pred_fallthru
        _
      // Predicated region
      $region21: #{mynet_forward.4} parent=11 // pred_check
        %p212 = pneg %p114
      $region22: #{mynet_forward.4} parent=11 // pred_check_branch
        %214 = sbr.rel (%p212) target = $region24
      $region23: #{mynet_forward.4} parent=11 // pred_region
        _
      $region24: #{mynet_forward.4} parent=11 // pred_fallthru
        _
      // Predicated region
      $region25: #{mynet_forward.4} parent=11 // pred_check
        %p215 = pneg %p135
      $region26: #{mynet_forward.4} parent=11 // pred_check_branch
        %217 = sbr.rel (%p215) target = $region28
      $region27: #{mynet_forward.4} parent=11 // pred_region
        _
      $region28: #{mynet_forward.4} parent=11 // pred_fallthru
        _
    $region12: #{mynet_forward.4} parent=5 // pred_fallthru
      _
    %p218 = scmp.lt.s32.totalorder %s13, 4
    // Predicated region
    $region29: #{mynet_forward.4} parent=5 // pred_check
      %p219 = pneg %p218
    $region30: #{mynet_forward.4} parent=5 // pred_check_branch
      %221 = sbr.rel (%p219) target = $region32
    $region31: #{mynet_forward.4} parent=5 // pred_region
      // Predicated region
      $region33: #{mynet_forward.4} parent=31 // pred_check
        %p222 = pneg %p45
      $region34: #{mynet_forward.4} parent=31 // pred_check_branch
        %224 = sbr.rel (%p222) target = $region36
      $region35: #{mynet_forward.4} parent=31 // pred_region
        %p225 = scmp.lt.s32.totalorder %s20, 1
        %s226 = scalar_select %p225, %s20, 1
        %s227 = smul.addr %s226, 32
        %s228 = smul.addr %s227, 4
        %s229 = scalar_lea.vmem %s0, %s228
      $region36: #{mynet_forward.4} parent=31 // pred_fallthru
        _
    $region32: #{mynet_forward.4} parent=5 // pred_fallthru
      _
    %p230 = scmp.le.s32.totalorder 1, %s13
    %p231 = scmp.lt.s32.totalorder %s13, 5
    %p232 = pnand %p230, %p231
    %p233 = pneg %p232
    // Predicated region
    $region37: #{mynet_forward.4} parent=5 // pred_check
      _
    $region38: #{mynet_forward.4} parent=5 // pred_check_branch
      %235 = sbr.rel (%p232) target = $region40
    $region39: #{mynet_forward.4} parent=5 // pred_region
      %s236 = ssub.s32 %s13, 1
      %p237 = scmp.lt.s32.totalorder %s22, 1
      %s238 = scalar_select %p237, %s22, 1
      %s239 = smul.addr %s238, 32
      %s240 = smul.addr %s239, 4
      %s241 = scalar_lea.vmem %s0, %s240
      %p242 = pneg %p51
      %p243 = pneg %p48
      %p244 = pneg %p72
      %p245 = pneg %p69
      %p246 = pneg %p93
      %p247 = pneg %p90
      %p248 = pneg %p114
      %p249 = pneg %p111
      %p250 = pneg %p135
      %p251 = pneg %p132
      %p252 = pneg %p163
      %p253 = pneg %p160
      %s254 = smul.u32 8, %s23
      %p255 = scmp.lt.s32.totalorder %s22, 1
      %s256 = scalar_select %p255, %s22, 1
      %p257 = scmp.lt.s32.totalorder %s254, 15
      %s258 = scalar_select %p257, %s254, 15
      %s259 = smul.addr %s258, 2
      %s260 = smul.addr %s256, 32
      %s261 = sadd.s32 %s259, %s260
      %s262 = smul.addr %s261, 4
      %s263 = scalar_lea.vmem %s5, %s262
      %p264 = pneg %p191
      %p265 = pneg %p188
      %p266 = scmp.lt.s32.totalorder %s22, 1
      %s267 = scalar_select %p266, %s22, 1
      %p268 = scmp.lt.s32.totalorder %s23, 1
      %s269 = scalar_select %p268, %s23, 1
      %s270 = smul.addr %s267, 2
      %s271 = sadd.s32 %s269, %s270
      %s272 = smul.addr %s271, 2
      %s273 = scalar_lea.vmem %s6, %s272
      %p274 = scmp.lt.s32.totalorder %s22, 1
      %s275 = scalar_select %p274, %s22, 1
      %s276 = smul.addr %s275, 32
      %s277 = smul.addr %s276, 4
      %s278 = scalar_lea.vmem %s0, %s277
      %s279 = smul.u32 8, %s23
      %p280 = scmp.lt.s32.totalorder %s22, 1
      %s281 = scalar_select %p280, %s22, 1
      %p282 = scmp.lt.s32.totalorder %s279, 15
      %s283 = scalar_select %p282, %s279, 15
      %s284 = smul.addr %s283, 2
      %s285 = smul.addr %s281, 32
      %s286 = sadd.s32 %s284, %s285
      %s287 = smul.addr %s286, 4
      %s288 = scalar_lea.vmem %s5, %s287
      %s289 = smul.u32 8, %s23
      %p290 = scmp.lt.s32.totalorder %s22, 1
      %s291 = scalar_select %p290, %s22, 1
      %p292 = scmp.lt.s32.totalorder %s23, 1
      %s293 = scalar_select %p292, %s23, 1
      %s294 = smul.addr %s291, 2
      %s295 = sadd.s32 %s293, %s294
      %s296 = smul.addr %s295, 2
      %s297 = scalar_lea.vmem %s6, %s296
      %s299 = smul.u32 %s23, 8
      %v300 = vld [vmem:[%s1] sm:$0x1]
      %v301 = vld [vmem:[%s2] sm:$0x1]
      %s302 = smul.u32 %s299, 2
      %s303 = smul.addr %s302, 4
      %s304 = scalar_lea.vmem %s278, %s303
      %v305 = vld [vmem:[%s304] sm:$0xf]
      %v306 = vld [vmem:[%s304 + $0x4] sm:$0xf]
      %v307 = vld [vmem:[%s304 + $0x8] sm:$0xf]
      %v308 = vld [vmem:[%s304 + $0xc] sm:$0xf]
      %v309 = vld [vmem:[%s304 + $0x10] sm:$0xf]
      %v310 = vld [vmem:[%s304 + $0x14] sm:$0xf]
      %v311 = vld [vmem:[%s304 + $0x18] sm:$0xf]
      %v312 = vld [vmem:[%s304 + $0x1c] sm:$0xf]
      %v313 = vld [vmem:[%s304 + $0x20] sm:$0xf]
      %v314 = vld [vmem:[%s304 + $0x24] sm:$0xf]
      %v315 = vld [vmem:[%s304 + $0x28] sm:$0xf]
      %v316 = vld [vmem:[%s304 + $0x2c] sm:$0xf]
      %v317 = vld [vmem:[%s304 + $0x30] sm:$0xf]
      %v318 = vld [vmem:[%s304 + $0x34] sm:$0xf]
      %v319 = vld [vmem:[%s304 + $0x38] sm:$0xf]
      %v320 = vld [vmem:[%s304 + $0x3c] sm:$0xf]
      %v321 = vunpack.c.l.bf16 %v305
      %v322 = vunpack.c.l.bf16 %v306
      %v323 = vunpack.c.l.bf16 %v307
      %v324 = vunpack.c.l.bf16 %v308
      %v325 = vunpack.c.l.bf16 %v309
      %v326 = vunpack.c.l.bf16 %v310
      %v327 = vunpack.c.l.bf16 %v311
      %v328 = vunpack.c.l.bf16 %v312
      %v329 = vunpack.c.l.bf16 %v313
      %v330 = vunpack.c.l.bf16 %v314
      %v331 = vunpack.c.l.bf16 %v315
      %v332 = vunpack.c.l.bf16 %v316
      %v333 = vunpack.c.l.bf16 %v317
      %v334 = vunpack.c.l.bf16 %v318
      %v335 = vunpack.c.l.bf16 %v319
      %v336 = vunpack.c.l.bf16 %v320
      %v338 = vlaneseq
      %v339 = vshrl.u32 %v338, 7
      %v340 = vsub.s32 0, %v339
      %v341 = vrot.slane %v300, %v340
      %v343 = vmul.f32 %v321, %v341
      %v344 = vmul.f32 %v322, %v341
      %v345 = vmul.f32 %v323, %v341
      %v346 = vmul.f32 %v324, %v341
      %v347 = vmul.f32 %v325, %v341
      %v348 = vmul.f32 %v326, %v341
      %v349 = vmul.f32 %v327, %v341
      %v350 = vmul.f32 %v328, %v341
      %v351 = vmul.f32 %v329, %v341
      %v352 = vmul.f32 %v330, %v341
      %v353 = vmul.f32 %v331, %v341
      %v354 = vmul.f32 %v332, %v341
      %v355 = vmul.f32 %v333, %v341
      %v356 = vmul.f32 %v334, %v341
      %v357 = vmul.f32 %v335, %v341
      %v358 = vmul.f32 %v336, %v341
      %v360 = vlaneseq
      %v361 = vshrl.u32 %v360, 7
      %v362 = vsub.s32 0, %v361
      %v363 = vrot.slane %v301, %v362
      %v365 = vadd.f32 %v343, %v363
      %v366 = vadd.f32 %v344, %v363
      %v367 = vadd.f32 %v345, %v363
      %v368 = vadd.f32 %v346, %v363
      %v369 = vadd.f32 %v347, %v363
      %v370 = vadd.f32 %v348, %v363
      %v371 = vadd.f32 %v349, %v363
      %v372 = vadd.f32 %v350, %v363
      %v373 = vadd.f32 %v351, %v363
      %v374 = vadd.f32 %v352, %v363
      %v375 = vadd.f32 %v353, %v363
      %v376 = vadd.f32 %v354, %v363
      %v377 = vadd.f32 %v355, %v363
      %v378 = vadd.f32 %v356, %v363
      %v379 = vadd.f32 %v357, %v363
      %v380 = vadd.f32 %v358, %v363
      %s381 = ssub.s32 %s299, 1
      %p382 = scmp.gt.s32.totalorder %s381, 0
      %s383 = scalar_select %p382, %s381, 0
      %s384 = smul.u32 %s383, 2
      %s385 = smul.addr %s384, 4
      %s386 = scalar_lea.vmem %s278, %s385
      %v387 = vld [vmem:[%s386] sm:$0xf]
      %v388 = vld [vmem:[%s386 + $0x4] sm:$0xf]
      %v389 = vunpack.c.l.bf16 %v387
      %v390 = vunpack.c.l.bf16 %v388
      %p391 = scmp.gt.s32.totalorder %s299, 0
      %v392 = vmul.f32 %v389, %v341
      %v393 = vmul.f32 %v390, %v341
      %v394 = vadd.f32 %v392, %v363
      %v395 = vadd.f32 %v393, %v363
      %s396 = scalar_select %p391, 1, 0
      %v397 = vstv %s396
      %vm398 = vcmp.eq.s32.totalorder %v397, 1
      %v399 = vsel %vm398, %v394, 0.0
      %v400 = vsel %vm398, %v395, 0.0
      %s401 = sadd.s32 %s299, 8
      %p402 = scmp.lt.s32.totalorder %s401, 15
      %s403 = scalar_select %p402, %s401, 15
      %s404 = smul.u32 %s403, 2
      %s405 = smul.addr %s404, 4
      %s406 = scalar_lea.vmem %s278, %s405
      %v407 = vld [vmem:[%s406] sm:$0xf]
      %v408 = vld [vmem:[%s406 + $0x4] sm:$0xf]
      %v409 = vunpack.c.l.bf16 %v407
      %v410 = vunpack.c.l.bf16 %v408
      %p411 = scmp.lt.s32.totalorder %s401, 16
      %v412 = vmul.f32 %v409, %v341
      %v413 = vmul.f32 %v410, %v341
      %v414 = vadd.f32 %v412, %v363
      %v415 = vadd.f32 %v413, %v363
      %s416 = scalar_select %p411, 1, 0
      %v417 = vstv %s416
      %vm418 = vcmp.eq.s32.totalorder %v417, 1
      %v419 = vsel %vm418, %v414, 0.0
      %v420 = vsel %vm418, %v415, 0.0
      %v421 = vpack.c.bf16 %v400, %v399
      %v422 = vpack.c.bf16 %v366, %v365
      %v423 = vpack.c.bf16 %v368, %v367
      %v424 = vpack.c.bf16 %v370, %v369
      %v425 = vpack.c.bf16 %v372, %v371
      %v426 = vpack.c.bf16 %v374, %v373
      %v427 = vpack.c.bf16 %v376, %v375
      %v428 = vpack.c.bf16 %v378, %v377
      %v429 = vpack.c.bf16 %v380, %v379
      %v430 = vpack.c.bf16 %v420, %v419
      %v432 = vshrl.u32 %v421, 16
      %v434 = vrot.slane %v432, 7
      %v435 = vshll.u32 %v421, 16
      %v437 = vor.u32 %v434, %v435
      %v439 = vshrl.u32 %v422, 16
      %v441 = vrot.slane %v439, 7
      %v442 = vshll.u32 %v422, 16
      %v444 = vor.u32 %v441, %v442
      %v446 = vshrl.u32 %v423, 16
      %v448 = vrot.slane %v446, 7
      %v449 = vshll.u32 %v423, 16
      %v451 = vor.u32 %v448, %v449
      %v453 = vshrl.u32 %v424, 16
      %v455 = vrot.slane %v453, 7
      %v456 = vshll.u32 %v424, 16
      %v458 = vor.u32 %v455, %v456
      %v460 = vshrl.u32 %v425, 16
      %v462 = vrot.slane %v460, 7
      %v463 = vshll.u32 %v425, 16
      %v465 = vor.u32 %v462, %v463
      %v467 = vshrl.u32 %v426, 16
      %v469 = vrot.slane %v467, 7
      %v470 = vshll.u32 %v426, 16
      %v472 = vor.u32 %v469, %v470
      %v474 = vshrl.u32 %v427, 16
      %v476 = vrot.slane %v474, 7
      %v477 = vshll.u32 %v427, 16
      %v479 = vor.u32 %v476, %v477
      %v481 = vshrl.u32 %v428, 16
      %v483 = vrot.slane %v481, 7
      %v484 = vshll.u32 %v428, 16
      %v486 = vor.u32 %v483, %v484
      %v488 = vshrl.u32 %v429, 16
      %v490 = vrot.slane %v488, 7
      %v491 = vshll.u32 %v429, 16
      %v493 = vor.u32 %v490, %v491
      %v495 = vshrl.u32 %v430, 16
      %v497 = vrot.slane %v495, 7
      %v498 = vshll.u32 %v430, 16
      %v500 = vor.u32 %v497, %v498
      %vm521 = vcmask 1040384
      %vm522 = vsmask.f32 256
      %vm523 = vmand %vm521, %vm522
      %v524 = vsel %vm523, 0, %v437
      %v525 = vsel %vm523, 0, %v444
      %v526 = vsel %vm523, 0, %v451
      %v527 = vsel %vm523, 0, %v458
      %v528 = vsel %vm523, 0, %v465
      %v529 = vsel %vm523, 0, %v472
      %v530 = vsel %vm523, 0, %v479
      %v531 = vsel %vm523, 0, %v486
      %v532 = vsel %vm523, 0, %v493
      %v533 = vsel %vm523, 0, %v500
      %v534 = vsel %vm523, %v434, 0
      %v535 = vsel %vm523, %v441, 0
      %v536 = vsel %vm523, %v448, 0
      %v537 = vsel %vm523, %v455, 0
      %v538 = vsel %vm523, %v462, 0
      %v539 = vsel %vm523, %v469, 0
      %v540 = vsel %vm523, %v476, 0
      %v541 = vsel %vm523, %v483, 0
      %v542 = vsel %vm523, %v490, 0
      %v543 = vsel %vm523, %v497, 0
      %vm544 = vsmask.f32 7424
      %v546 = vshrl.u32 %v524, 16
      %v548 = vshll.u32 %v524, 16
      %v550 = vrot.slane %v548, 1
      %v551 = vor.u32 %v546, %v550
      %v553 = vshll.u32 %v534, 16
      %v555 = vrot.slane %v553, 1
      %v556 = vsel %vm544, %v551, %v555
      %v558 = vshrl.u32 %v525, 16
      %v560 = vshll.u32 %v525, 16
      %v562 = vrot.slane %v560, 1
      %v563 = vor.u32 %v558, %v562
      %v565 = vshll.u32 %v535, 16
      %v567 = vrot.slane %v565, 1
      %v568 = vsel %vm544, %v563, %v567
      %v570 = vshrl.u32 %v526, 16
      %v572 = vshll.u32 %v526, 16
      %v574 = vrot.slane %v572, 1
      %v575 = vor.u32 %v570, %v574
      %v577 = vshll.u32 %v536, 16
      %v579 = vrot.slane %v577, 1
      %v580 = vsel %vm544, %v575, %v579
      %v582 = vshrl.u32 %v527, 16
      %v584 = vshll.u32 %v527, 16
      %v586 = vrot.slane %v584, 1
      %v587 = vor.u32 %v582, %v586
      %v589 = vshll.u32 %v537, 16
      %v591 = vrot.slane %v589, 1
      %v592 = vsel %vm544, %v587, %v591
      %v594 = vshrl.u32 %v528, 16
      %v596 = vshll.u32 %v528, 16
      %v598 = vrot.slane %v596, 1
      %v599 = vor.u32 %v594, %v598
      %v601 = vshll.u32 %v538, 16
      %v603 = vrot.slane %v601, 1
      %v604 = vsel %vm544, %v599, %v603
      %v606 = vshrl.u32 %v529, 16
      %v608 = vshll.u32 %v529, 16
      %v610 = vrot.slane %v608, 1
      %v611 = vor.u32 %v606, %v610
      %v613 = vshll.u32 %v539, 16
      %v615 = vrot.slane %v613, 1
      %v616 = vsel %vm544, %v611, %v615
      %v618 = vshrl.u32 %v530, 16
      %v620 = vshll.u32 %v530, 16
      %v622 = vrot.slane %v620, 1
      %v623 = vor.u32 %v618, %v622
      %v625 = vshll.u32 %v540, 16
      %v627 = vrot.slane %v625, 1
      %v628 = vsel %vm544, %v623, %v627
      %v630 = vshrl.u32 %v531, 16
      %v632 = vshll.u32 %v531, 16
      %v634 = vrot.slane %v632, 1
      %v635 = vor.u32 %v630, %v634
      %v637 = vshll.u32 %v541, 16
      %v639 = vrot.slane %v637, 1
      %v640 = vsel %vm544, %v635, %v639
      %641 = vrot.lane.b32.xlu0 %v556, 4
      %v642 = vpop.permute.xlu0 %641
      %643 = vrot.lane.b32.xlu0 %v568, 4
      %v644 = vpop.permute.xlu0 %643
      %645 = vrot.lane.b32.xlu0 %v580, 4
      %v646 = vpop.permute.xlu0 %645
      %647 = vrot.lane.b32.xlu0 %v592, 4
      %v648 = vpop.permute.xlu0 %647
      %649 = vrot.lane.b32.xlu0 %v604, 4
      %v650 = vpop.permute.xlu0 %649
      %651 = vrot.lane.b32.xlu0 %v616, 4
      %v652 = vpop.permute.xlu0 %651
      %653 = vrot.lane.b32.xlu0 %v628, 4
      %v654 = vpop.permute.xlu0 %653
      %655 = vrot.lane.b32.xlu0 %v640, 4
      %v656 = vpop.permute.xlu0 %655
      %vm673 = vcmask 1046528
      %v674 = vrot.slane %v524, 1
      %v675 = vrot.slane %v534, 1
      %v676 = vsel %vm673, %v674, %v675
      %v677 = vrot.slane %v525, 1
      %v678 = vrot.slane %v535, 1
      %v679 = vsel %vm673, %v677, %v678
      %v680 = vrot.slane %v526, 1
      %v681 = vrot.slane %v536, 1
      %v682 = vsel %vm673, %v680, %v681
      %v683 = vrot.slane %v527, 1
      %v684 = vrot.slane %v537, 1
      %v685 = vsel %vm673, %v683, %v684
      %v686 = vrot.slane %v528, 1
      %v687 = vrot.slane %v538, 1
      %v688 = vsel %vm673, %v686, %v687
      %v689 = vrot.slane %v529, 1
      %v690 = vrot.slane %v539, 1
      %v691 = vsel %vm673, %v689, %v690
      %v692 = vrot.slane %v530, 1
      %v693 = vrot.slane %v540, 1
      %v694 = vsel %vm673, %v692, %v693
      %v695 = vrot.slane %v531, 1
      %v696 = vrot.slane %v541, 1
      %v697 = vsel %vm673, %v695, %v696
      %698 = vrot.lane.b32.xlu0 %v676, 8
      %v699 = vpop.permute.xlu0 %698
      %700 = vrot.lane.b32.xlu0 %v679, 8
      %v701 = vpop.permute.xlu0 %700
      %702 = vrot.lane.b32.xlu0 %v682, 8
      %v703 = vpop.permute.xlu0 %702
      %704 = vrot.lane.b32.xlu0 %v685, 8
      %v705 = vpop.permute.xlu0 %704
      %706 = vrot.lane.b32.xlu0 %v688, 8
      %v707 = vpop.permute.xlu0 %706
      %708 = vrot.lane.b32.xlu0 %v691, 8
      %v709 = vpop.permute.xlu0 %708
      %710 = vrot.lane.b32.xlu0 %v694, 8
      %v711 = vpop.permute.xlu0 %710
      %712 = vrot.lane.b32.xlu0 %v697, 8
      %v713 = vpop.permute.xlu0 %712
      %715 = vrot.lane.b32.xlu0 %v525, 12
      %v716 = vpop.permute.xlu0 %715
      %717 = vrot.lane.b32.xlu0 %v526, 12
      %v718 = vpop.permute.xlu0 %717
      %719 = vrot.lane.b32.xlu0 %v527, 12
      %v720 = vpop.permute.xlu0 %719
      %721 = vrot.lane.b32.xlu0 %v528, 12
      %v722 = vpop.permute.xlu0 %721
      %723 = vrot.lane.b32.xlu0 %v529, 12
      %v724 = vpop.permute.xlu0 %723
      %725 = vrot.lane.b32.xlu0 %v530, 12
      %v726 = vpop.permute.xlu0 %725
      %727 = vrot.lane.b32.xlu0 %v531, 12
      %v728 = vpop.permute.xlu0 %727
      %729 = vrot.lane.b32.xlu0 %v532, 12
      %v730 = vpop.permute.xlu0 %729
      %v732 = vshrl.u32 %v532, 16
      %v734 = vshll.u32 %v532, 16
      %v736 = vrot.slane %v734, 1
      %v737 = vor.u32 %v732, %v736
      %v739 = vshll.u32 %v542, 16
      %v741 = vrot.slane %v739, 1
      %v742 = vsel %vm544, %v737, %v741
      %743 = vrot.lane.b32.xlu0 %v568, 16
      %v744 = vpop.permute.xlu0 %743
      %745 = vrot.lane.b32.xlu0 %v580, 16
      %v746 = vpop.permute.xlu0 %745
      %747 = vrot.lane.b32.xlu0 %v592, 16
      %v748 = vpop.permute.xlu0 %747
      %749 = vrot.lane.b32.xlu0 %v604, 16
      %v750 = vpop.permute.xlu0 %749
      %751 = vrot.lane.b32.xlu0 %v616, 16
      %v752 = vpop.permute.xlu0 %751
      %753 = vrot.lane.b32.xlu0 %v628, 16
      %v754 = vpop.permute.xlu0 %753
      %755 = vrot.lane.b32.xlu0 %v640, 16
      %v756 = vpop.permute.xlu0 %755
      %757 = vrot.lane.b32.xlu0 %v742, 16
      %v758 = vpop.permute.xlu0 %757
      %v760 = vrot.slane %v532, 1
      %v761 = vrot.slane %v542, 1
      %v762 = vsel %vm673, %v760, %v761
      %763 = vrot.lane.b32.xlu0 %v679, 20
      %v764 = vpop.permute.xlu0 %763
      %765 = vrot.lane.b32.xlu0 %v682, 20
      %v766 = vpop.permute.xlu0 %765
      %767 = vrot.lane.b32.xlu0 %v685, 20
      %v768 = vpop.permute.xlu0 %767
      %769 = vrot.lane.b32.xlu0 %v688, 20
      %v770 = vpop.permute.xlu0 %769
      %771 = vrot.lane.b32.xlu0 %v691, 20
      %v772 = vpop.permute.xlu0 %771
      %773 = vrot.lane.b32.xlu0 %v694, 20
      %v774 = vpop.permute.xlu0 %773
      %775 = vrot.lane.b32.xlu0 %v697, 20
      %v776 = vpop.permute.xlu0 %775
      %777 = vrot.lane.b32.xlu0 %v762, 20
      %v778 = vpop.permute.xlu0 %777
      %780 = vrot.lane.b32.xlu0 %v526, 24
      %v781 = vpop.permute.xlu0 %780
      %782 = vrot.lane.b32.xlu0 %v527, 24
      %v783 = vpop.permute.xlu0 %782
      %784 = vrot.lane.b32.xlu0 %v528, 24
      %v785 = vpop.permute.xlu0 %784
      %786 = vrot.lane.b32.xlu0 %v529, 24
      %v787 = vpop.permute.xlu0 %786
      %788 = vrot.lane.b32.xlu0 %v530, 24
      %v789 = vpop.permute.xlu0 %788
      %790 = vrot.lane.b32.xlu0 %v531, 24
      %v791 = vpop.permute.xlu0 %790
      %792 = vrot.lane.b32.xlu0 %v532, 24
      %v793 = vpop.permute.xlu0 %792
      %794 = vrot.lane.b32.xlu0 %v533, 24
      %v795 = vpop.permute.xlu0 %794
      %v797 = vshrl.u32 %v533, 16
      %v799 = vshll.u32 %v533, 16
      %v801 = vrot.slane %v799, 1
      %v802 = vor.u32 %v797, %v801
      %v804 = vshll.u32 %v543, 16
      %v806 = vrot.slane %v804, 1
      %v807 = vsel %vm544, %v802, %v806
      %808 = vrot.lane.b32.xlu0 %v580, 28
      %v809 = vpop.permute.xlu0 %808
      %810 = vrot.lane.b32.xlu0 %v592, 28
      %v811 = vpop.permute.xlu0 %810
      %812 = vrot.lane.b32.xlu0 %v604, 28
      %v813 = vpop.permute.xlu0 %812
      %814 = vrot.lane.b32.xlu0 %v616, 28
      %v815 = vpop.permute.xlu0 %814
      %816 = vrot.lane.b32.xlu0 %v628, 28
      %v817 = vpop.permute.xlu0 %816
      %818 = vrot.lane.b32.xlu0 %v640, 28
      %v819 = vpop.permute.xlu0 %818
      %820 = vrot.lane.b32.xlu0 %v742, 28
      %v821 = vpop.permute.xlu0 %820
      %822 = vrot.lane.b32.xlu0 %v807, 28
      %v823 = vpop.permute.xlu0 %822
      %v825 = vrot.slane %v533, 1
      %v826 = vrot.slane %v543, 1
      %v827 = vsel %vm673, %v825, %v826
      %828 = vrot.lane.b32.xlu0 %v682, 32
      %v829 = vpop.permute.xlu0 %828
      %830 = vrot.lane.b32.xlu0 %v685, 32
      %v831 = vpop.permute.xlu0 %830
      %832 = vrot.lane.b32.xlu0 %v688, 32
      %v833 = vpop.permute.xlu0 %832
      %834 = vrot.lane.b32.xlu0 %v691, 32
      %v835 = vpop.permute.xlu0 %834
      %836 = vrot.lane.b32.xlu0 %v694, 32
      %v837 = vpop.permute.xlu0 %836
      %838 = vrot.lane.b32.xlu0 %v697, 32
      %v839 = vpop.permute.xlu0 %838
      %840 = vrot.lane.b32.xlu0 %v762, 32
      %v841 = vpop.permute.xlu0 %840
      %842 = vrot.lane.b32.xlu0 %v827, 32
      %v843 = vpop.permute.xlu0 %842
      %vm844 = vcmask 31744
      %v846 = vsel %vm844, %v524, %v642
      %v848 = vsel %vm844, %v525, %v644
      %v850 = vsel %vm844, %v526, %v646
      %v852 = vsel %vm844, %v527, %v648
      %v854 = vsel %vm844, %v528, %v650
      %v856 = vsel %vm844, %v529, %v652
      %v858 = vsel %vm844, %v530, %v654
      %v860 = vsel %vm844, %v531, %v656
      %vm861 = vcmask 64512
      %v863 = vsel %vm861, %v846, %v699
      %v865 = vsel %vm861, %v848, %v701
      %v867 = vsel %vm861, %v850, %v703
      %v869 = vsel %vm861, %v852, %v705
      %v871 = vsel %vm861, %v854, %v707
      %v873 = vsel %vm861, %v856, %v709
      %v875 = vsel %vm861, %v858, %v711
      %v877 = vsel %vm861, %v860, %v713
      %vm878 = vcmask 97280
      %v880 = vsel %vm878, %v863, %v716
      %v882 = vsel %vm878, %v865, %v718
      %v884 = vsel %vm878, %v867, %v720
      %v886 = vsel %vm878, %v869, %v722
      %v888 = vsel %vm878, %v871, %v724
      %v890 = vsel %vm878, %v873, %v726
      %v892 = vsel %vm878, %v875, %v728
      %v894 = vsel %vm878, %v877, %v730
      %vm895 = vcmask 130048
      %v897 = vsel %vm895, %v880, %v744
      %v899 = vsel %vm895, %v882, %v746
      %v901 = vsel %vm895, %v884, %v748
      %v903 = vsel %vm895, %v886, %v750
      %v905 = vsel %vm895, %v888, %v752
      %v907 = vsel %vm895, %v890, %v754
      %v909 = vsel %vm895, %v892, %v756
      %v911 = vsel %vm895, %v894, %v758
      %vm912 = vcmask 162816
      %v914 = vsel %vm912, %v897, %v764
      %v916 = vsel %vm912, %v899, %v766
      %v918 = vsel %vm912, %v901, %v768
      %v920 = vsel %vm912, %v903, %v770
      %v922 = vsel %vm912, %v905, %v772
      %v924 = vsel %vm912, %v907, %v774
      %v926 = vsel %vm912, %v909, %v776
      %v928 = vsel %vm912, %v911, %v778
      %vm929 = vcmask 195584
      %v931 = vsel %vm929, %v914, %v781
      %v933 = vsel %vm929, %v916, %v783
      %v935 = vsel %vm929, %v918, %v785
      %v937 = vsel %vm929, %v920, %v787
      %v939 = vsel %vm929, %v922, %v789
      %v941 = vsel %vm929, %v924, %v791
      %v943 = vsel %vm929, %v926, %v793
      %v945 = vsel %vm929, %v928, %v795
      %vm946 = vcmask 228352
      %v948 = vsel %vm946, %v931, %v809
      %v950 = vsel %vm946, %v933, %v811
      %v952 = vsel %vm946, %v935, %v813
      %v954 = vsel %vm946, %v937, %v815
      %v956 = vsel %vm946, %v939, %v817
      %v958 = vsel %vm946, %v941, %v819
      %v960 = vsel %vm946, %v943, %v821
      %v962 = vsel %vm946, %v945, %v823
      %vm963 = vcmask 261120
      %v965 = vsel %vm963, %v948, %v829
      %v967 = vsel %vm963, %v950, %v831
      %v969 = vsel %vm963, %v952, %v833
      %v971 = vsel %vm963, %v954, %v835
      %v973 = vsel %vm963, %v956, %v837
      %v975 = vsel %vm963, %v958, %v839
      %v977 = vsel %vm963, %v960, %v841
      %v979 = vsel %vm963, %v962, %v843
      %v980 = vld [vmem:[%s3] sm:$0xf]
      %v981 = vld [vmem:[%s3 + $0x4] sm:$0xf]
      %v982 = vld [vmem:[%s3 + $0x8] sm:$0xf]
      %v983 = vld [vmem:[%s3 + $0xc] sm:$0xf]
      %v984 = vld [vmem:[%s3 + $0x10] sm:$0x3]
      %v985 = vld [vmem:[%s4] sm:$0x1]
      %v987 = vlaneseq
      %v988 = vshrl.u32 %v987, 7
      %v989 = vsub.s32 0, %v988
      %v990 = vrot.slane %v985, %v989
      %v997 = vunpack.c.l.b16 %v980
      %v998 = vunpack.c.l.b16 %v981
      %v999 = vunpack.c.l.b16 %v982
      %v1000 = vunpack.c.l.b16 %v983
      %v1001 = vunpack.c.l.b16 %v984
      %v1002 = vpack.c.b16 %v998, %v997
      %v1003 = vpack.c.b16 %v1000, %v999
      %v1004 = vpack.c.b16 %v1001, %v1001
      %vm1007 = vcmask 293888
      %v1008 = vsel %vm1007, %v965, 0
      %v1010 = vsel %vm1007, %v967, 0
      %v1012 = vsel %vm1007, %v969, 0
      %v1014 = vsel %vm1007, %v971, 0
      %v1016 = vsel %vm1007, %v973, 0
      %v1018 = vsel %vm1007, %v975, 0
      %v1020 = vsel %vm1007, %v977, 0
      %v1022 = vsel %vm1007, %v979, 0
      %vm1024 = vcmask 1041408
      %v1026 = vsel %vm1024, %v1004, 0
      %1028 = vmatprep.subr.bf16.mxu0 0
      %1029 = vmatpush1.bf16.msra.mxu0 %v1002
      %1030 = vmatprep.subr.bf16.mxu0 0
      %1031 = vmatpush1.bf16.msra.mxu0 %v1003
      %1032 = vmatprep.subr.bf16.mxu0 0
      %1033 = vmatpush1.bf16.msra.mxu0 %v1026
      %1034 = vmatprep.subr.bf16.mxu0 0
      %1035 = vmatpush1.bf16.msra.mxu0 0
      %1036 = vmatprep.subr.bf16.mxu0 0
      %1037 = vmatpush1.bf16.msra.mxu0 0
      %1038 = vmatprep.subr.bf16.mxu0 0
      %1039 = vmatpush1.bf16.msra.mxu0 0
      %1040 = vmatprep.subr.bf16.mxu0 0
      %1041 = vmatpush1.bf16.msra.mxu0 0
      %1042 = vmatprep.subr.bf16.mxu0 0
      %1043 = vmatpush1.bf16.msra.mxu0 0
      %1044 = vmatprep.subr.bf16.mxu0 0
      %1045 = vmatpush1.bf16.msra.mxu0 0
      %1046 = vmatprep.subr.bf16.mxu0 0
      %1047 = vmatpush1.bf16.msra.mxu0 0
      %1048 = vmatprep.subr.bf16.mxu0 0
      %1049 = vmatpush1.bf16.msra.mxu0 0
      %1050 = vmatprep.subr.bf16.mxu0 0
      %1051 = vmatpush1.bf16.msra.mxu0 0
      %1052 = vmatprep.subr.bf16.mxu0 0
      %1053 = vmatpush1.bf16.msra.mxu0 0
      %1054 = vmatprep.subr.bf16.mxu0 0
      %1055 = vmatpush1.bf16.msra.mxu0 0
      %1056 = vmatprep.subr.bf16.mxu0 0
      %1057 = vmatpush1.bf16.msra.mxu0 0
      %1058 = vmatprep.subr.bf16.mxu0 0
      %1059 = vmatpush1.bf16.msra.mxu0 0
      %1060 = vmatprep.mubr.bf16.mxu0 0
      %1061 = vmatmul.mubr.bf16.gmra.mrb[0].mxu0 %v1008
      %v1062 = vpop.f32.mrb[0].mxu0
      %v1063 = vadd.f32 %v990, %v1062
      %v1064 = vpop.f32.mrb[0].mxu0
      %v1065 = vpop.f32.mrb[0].mxu0
      %v1066 = vadd.f32 %v990, %v1065
      %v1067 = vpop.f32.mrb[0].mxu0
      %1068 = vmatprep.mubr.bf16.mxu0 0
      %1069 = vmatmul.mubr.bf16.gmra.mrb[0].mxu0 %v1010
      %v1070 = vpop.f32.mrb[0].mxu0
      %v1071 = vadd.f32 %v990, %v1070
      %v1072 = vpop.f32.mrb[0].mxu0
      %v1073 = vpop.f32.mrb[0].mxu0
      %v1074 = vadd.f32 %v990, %v1073
      %v1075 = vpop.f32.mrb[0].mxu0
      %1076 = vmatprep.mubr.bf16.mxu0 0
      %1077 = vmatmul.mubr.bf16.gmra.mrb[0].mxu0 %v1012
      %v1078 = vpop.f32.mrb[0].mxu0
      %v1079 = vadd.f32 %v990, %v1078
      %v1080 = vpop.f32.mrb[0].mxu0
      %v1081 = vpop.f32.mrb[0].mxu0
      %v1082 = vadd.f32 %v990, %v1081
      %v1083 = vpop.f32.mrb[0].mxu0
      %1084 = vmatprep.mubr.bf16.mxu0 0
      %1085 = vmatmul.mubr.bf16.gmra.mrb[0].mxu0 %v1014
      %v1086 = vpop.f32.mrb[0].mxu0
      %v1087 = vadd.f32 %v990, %v1086
      %v1088 = vpop.f32.mrb[0].mxu0
      %v1089 = vpop.f32.mrb[0].mxu0
      %v1090 = vadd.f32 %v990, %v1089
      %v1091 = vpop.f32.mrb[0].mxu0
      %1092 = vmatprep.mubr.bf16.mxu0 0
      %1093 = vmatmul.mubr.bf16.gmra.mrb[0].mxu0 %v1016
      %v1094 = vpop.f32.mrb[0].mxu0
      %v1095 = vadd.f32 %v990, %v1094
      %v1096 = vpop.f32.mrb[0].mxu0
      %v1097 = vpop.f32.mrb[0].mxu0
      %v1098 = vadd.f32 %v990, %v1097
      %v1099 = vpop.f32.mrb[0].mxu0
      %1100 = vmatprep.mubr.bf16.mxu0 0
      %1101 = vmatmul.mubr.bf16.gmra.mrb[0].mxu0 %v1018
      %v1102 = vpop.f32.mrb[0].mxu0
      %v1103 = vadd.f32 %v990, %v1102
      %v1104 = vpop.f32.mrb[0].mxu0
      %v1105 = vpop.f32.mrb[0].mxu0
      %v1106 = vadd.f32 %v990, %v1105
      %v1107 = vpop.f32.mrb[0].mxu0
      %1108 = vmatprep.mubr.bf16.mxu0 0
      %1109 = vmatmul.mubr.bf16.gmra.mrb[0].mxu0 %v1020
      %v1110 = vpop.f32.mrb[0].mxu0
      %v1111 = vadd.f32 %v990, %v1110
      %v1112 = vpop.f32.mrb[0].mxu0
      %v1113 = vpop.f32.mrb[0].mxu0
      %v1114 = vadd.f32 %v990, %v1113
      %v1115 = vpop.f32.mrb[0].mxu0
      %1116 = vmatprep.mubr.bf16.mxu0 0
      %1117 = vmatmul.mubr.bf16.gmra.mrb[0].mxu0 %v1022
      %v1118 = vpop.f32.mrb[0].mxu0
      %v1119 = vadd.f32 %v990, %v1118
      %v1120 = vpop.f32.mrb[0].mxu0
      %v1121 = vpop.f32.mrb[0].mxu0
      %v1122 = vadd.f32 %v990, %v1121
      %v1123 = vpop.f32.mrb[0].mxu0
      %1124 = vdwg.mxu0
      %v1125 = vmax.f32 %v1063, 0.0
      %v1126 = vmax.f32 %v1066, 0.0
      %v1127 = vmax.f32 %v1071, 0.0
      %v1128 = vmax.f32 %v1074, 0.0
      %v1129 = vmax.f32 %v1079, 0.0
      %v1130 = vmax.f32 %v1082, 0.0
      %v1131 = vmax.f32 %v1087, 0.0
      %v1132 = vmax.f32 %v1090, 0.0
      %v1133 = vmax.f32 %v1095, 0.0
      %v1134 = vmax.f32 %v1098, 0.0
      %v1135 = vmax.f32 %v1103, 0.0
      %v1136 = vmax.f32 %v1106, 0.0
      %v1137 = vmax.f32 %v1111, 0.0
      %v1138 = vmax.f32 %v1114, 0.0
      %v1139 = vmax.f32 %v1119, 0.0
      %v1140 = vmax.f32 %v1122, 0.0
      %v1141 = vpack.c.bf16 %v1126, %v1125
      %v1142 = vpack.c.bf16 %v1128, %v1127
      %v1143 = vpack.c.bf16 %v1130, %v1129
      %v1144 = vpack.c.bf16 %v1132, %v1131
      %v1145 = vpack.c.bf16 %v1134, %v1133
      %v1146 = vpack.c.bf16 %v1136, %v1135
      %v1147 = vpack.c.bf16 %v1138, %v1137
      %v1148 = vpack.c.bf16 %v1140, %v1139
      %v1157 = vunpack.c.l.b16 %v1141
      %v1158 = vunpack.c.h.b16 %v1141
      %v1159 = vunpack.c.l.b16 %v1142
      %v1160 = vunpack.c.h.b16 %v1142
      %v1161 = vunpack.c.l.b16 %v1143
      %v1162 = vunpack.c.h.b16 %v1143
      %v1163 = vunpack.c.l.b16 %v1144
      %v1164 = vunpack.c.h.b16 %v1144
      %v1165 = vunpack.c.l.b16 %v1145
      %v1166 = vunpack.c.h.b16 %v1145
      %v1167 = vunpack.c.l.b16 %v1146
      %v1168 = vunpack.c.h.b16 %v1146
      %v1169 = vunpack.c.l.b16 %v1147
      %v1170 = vunpack.c.h.b16 %v1147
      %v1171 = vunpack.c.l.b16 %v1148
      %v1172 = vunpack.c.h.b16 %v1148
      %v1173 = vpack.c.b16 %v1157, %v1157
      %v1174 = vpack.c.b16 %v1158, %v1158
      %v1175 = vpack.c.b16 %v1159, %v1159
      %v1176 = vpack.c.b16 %v1160, %v1160
      %v1177 = vpack.c.b16 %v1161, %v1161
      %v1178 = vpack.c.b16 %v1162, %v1162
      %v1179 = vpack.c.b16 %v1163, %v1163
      %v1180 = vpack.c.b16 %v1164, %v1164
      %v1181 = vpack.c.b16 %v1165, %v1165
      %v1182 = vpack.c.b16 %v1166, %v1166
      %v1183 = vpack.c.b16 %v1167, %v1167
      %v1184 = vpack.c.b16 %v1168, %v1168
      %v1185 = vpack.c.b16 %v1169, %v1169
      %v1186 = vpack.c.b16 %v1170, %v1170
      %v1187 = vpack.c.b16 %v1171, %v1171
      %v1188 = vpack.c.b16 %v1172, %v1172
      %vm1205 = vcmask 257024
      %1206 = vst.msk [vmem:[%s288] sm:$0xf] %vm1205, %v1173
      %1207 = vst.msk [vmem:[%s288 + $0x4] sm:$0xf] %vm1205, %v1174
      %1208 = vst.msk [vmem:[%s288 + $0x8] sm:$0xf] %vm1205, %v1175
      %1209 = vst.msk [vmem:[%s288 + $0xc] sm:$0xf] %vm1205, %v1176
      %1210 = vst.msk [vmem:[%s288 + $0x10] sm:$0xf] %vm1205, %v1177
      %1211 = vst.msk [vmem:[%s288 + $0x14] sm:$0xf] %vm1205, %v1178
      %1212 = vst.msk [vmem:[%s288 + $0x18] sm:$0xf] %vm1205, %v1179
      %1213 = vst.msk [vmem:[%s288 + $0x1c] sm:$0xf] %vm1205, %v1180
      %1214 = vst.msk [vmem:[%s288 + $0x20] sm:$0xf] %vm1205, %v1181
      %1215 = vst.msk [vmem:[%s288 + $0x24] sm:$0xf] %vm1205, %v1182
      %1216 = vst.msk [vmem:[%s288 + $0x28] sm:$0xf] %vm1205, %v1183
      %1217 = vst.msk [vmem:[%s288 + $0x2c] sm:$0xf] %vm1205, %v1184
      %1218 = vst.msk [vmem:[%s288 + $0x30] sm:$0xf] %vm1205, %v1185
      %1219 = vst.msk [vmem:[%s288 + $0x34] sm:$0xf] %vm1205, %v1186
      %1220 = vst.msk [vmem:[%s288 + $0x38] sm:$0xf] %vm1205, %v1187
      %1221 = vst.msk [vmem:[%s288 + $0x3c] sm:$0xf] %vm1205, %v1188
      %v1222 = vsel %vm963, %v1125, 0.0
      %v1223 = vsel %vm963, %v1126, 0.0
      %v1224 = vadd.f32 %v1222, %v1223
      %v1225 = vsel %vm963, %v1127, 0.0
      %v1226 = vadd.f32 %v1224, %v1225
      %v1227 = vsel %vm963, %v1128, 0.0
      %v1228 = vadd.f32 %v1226, %v1227
      %v1229 = vsel %vm963, %v1129, 0.0
      %v1230 = vadd.f32 %v1228, %v1229
      %v1231 = vsel %vm963, %v1130, 0.0
      %v1232 = vadd.f32 %v1230, %v1231
      %v1233 = vsel %vm963, %v1131, 0.0
      %v1234 = vadd.f32 %v1232, %v1233
      %v1235 = vsel %vm963, %v1132, 0.0
      %v1236 = vadd.f32 %v1234, %v1235
      %v1237 = vsel %vm963, %v1133, 0.0
      %v1238 = vadd.f32 %v1236, %v1237
      %v1239 = vsel %vm963, %v1134, 0.0
      %v1240 = vadd.f32 %v1238, %v1239
      %v1241 = vsel %vm963, %v1135, 0.0
      %v1242 = vadd.f32 %v1240, %v1241
      %v1243 = vsel %vm963, %v1136, 0.0
      %v1244 = vadd.f32 %v1242, %v1243
      %v1245 = vsel %vm963, %v1137, 0.0
      %v1246 = vadd.f32 %v1244, %v1245
      %v1247 = vsel %vm963, %v1138, 0.0
      %v1248 = vadd.f32 %v1246, %v1247
      %v1249 = vsel %vm963, %v1139, 0.0
      %v1250 = vadd.f32 %v1248, %v1249
      %v1251 = vsel %vm963, %v1140, 0.0
      %v1252 = vadd.f32 %v1250, %v1251
      %v1253 = vrot.slane %v1252, 4
      %v1254 = vadd.f32 %v1252, %v1253
      %v1255 = vrot.slane %v1254, 2
      %v1256 = vadd.f32 %v1254, %v1255
      %v1257 = vrot.slane %v1256, 1
      %v1258 = vadd.f32 %v1256, %v1257
      %v1259 = vmul.f32 %v1258, 0.0078125
      %v1260 = vsub.f32 %v1125, %v1259
      %v1261 = vsub.f32 %v1126, %v1259
      %v1262 = vsub.f32 %v1127, %v1259
      %v1263 = vsub.f32 %v1128, %v1259
      %v1264 = vsub.f32 %v1129, %v1259
      %v1265 = vsub.f32 %v1130, %v1259
      %v1266 = vsub.f32 %v1131, %v1259
      %v1267 = vsub.f32 %v1132, %v1259
      %v1268 = vsub.f32 %v1133, %v1259
      %v1269 = vsub.f32 %v1134, %v1259
      %v1270 = vsub.f32 %v1135, %v1259
      %v1271 = vsub.f32 %v1136, %v1259
      %v1272 = vsub.f32 %v1137, %v1259
      %v1273 = vsub.f32 %v1138, %v1259
      %v1274 = vsub.f32 %v1139, %v1259
      %v1275 = vsub.f32 %v1140, %v1259
      %v1276 = vmul.f32 %v1260, %v1260
      %v1277 = vmul.f32 %v1261, %v1261
      %v1278 = vmul.f32 %v1262, %v1262
      %v1279 = vmul.f32 %v1263, %v1263
      %v1280 = vmul.f32 %v1264, %v1264
      %v1281 = vmul.f32 %v1265, %v1265
      %v1282 = vmul.f32 %v1266, %v1266
      %v1283 = vmul.f32 %v1267, %v1267
      %v1284 = vmul.f32 %v1268, %v1268
      %v1285 = vmul.f32 %v1269, %v1269
      %v1286 = vmul.f32 %v1270, %v1270
      %v1287 = vmul.f32 %v1271, %v1271
      %v1288 = vmul.f32 %v1272, %v1272
      %v1289 = vmul.f32 %v1273, %v1273
      %v1290 = vmul.f32 %v1274, %v1274
      %v1291 = vmul.f32 %v1275, %v1275
      %v1292 = vsel %vm963, %v1276, 0.0
      %v1293 = vsel %vm963, %v1277, 0.0
      %v1294 = vadd.f32 %v1292, %v1293
      %v1295 = vsel %vm963, %v1278, 0.0
      %v1296 = vadd.f32 %v1294, %v1295
      %v1297 = vsel %vm963, %v1279, 0.0
      %v1298 = vadd.f32 %v1296, %v1297
      %v1299 = vsel %vm963, %v1280, 0.0
      %v1300 = vadd.f32 %v1298, %v1299
      %v1301 = vsel %vm963, %v1281, 0.0
      %v1302 = vadd.f32 %v1300, %v1301
      %v1303 = vsel %vm963, %v1282, 0.0
      %v1304 = vadd.f32 %v1302, %v1303
      %v1305 = vsel %vm963, %v1283, 0.0
      %v1306 = vadd.f32 %v1304, %v1305
      %v1307 = vsel %vm963, %v1284, 0.0
      %v1308 = vadd.f32 %v1306, %v1307
      %v1309 = vsel %vm963, %v1285, 0.0
      %v1310 = vadd.f32 %v1308, %v1309
      %v1311 = vsel %vm963, %v1286, 0.0
      %v1312 = vadd.f32 %v1310, %v1311
      %v1313 = vsel %vm963, %v1287, 0.0
      %v1314 = vadd.f32 %v1312, %v1313
      %v1315 = vsel %vm963, %v1288, 0.0
      %v1316 = vadd.f32 %v1314, %v1315
      %v1317 = vsel %vm963, %v1289, 0.0
      %v1318 = vadd.f32 %v1316, %v1317
      %v1319 = vsel %vm963, %v1290, 0.0
      %v1320 = vadd.f32 %v1318, %v1319
      %v1321 = vsel %vm963, %v1291, 0.0
      %v1322 = vadd.f32 %v1320, %v1321
      %v1323 = vrot.slane %v1322, 4
      %v1324 = vadd.f32 %v1322, %v1323
      %v1325 = vrot.slane %v1324, 2
      %v1326 = vadd.f32 %v1324, %v1325
      %v1327 = vrot.slane %v1326, 1
      %v1328 = vadd.f32 %v1326, %v1327
      %vm1329 = vcmask 1040384
      %v1330 = vsel %vm1329, %v1258, %v1328
      %vm1331 = vcmask 254976
      %1332 = vst.msk [vmem:[%s297] sm:$0x3] %vm1331, %v1330
      %s1333 = smul.u32 8, %s23
      %p1334 = scmp.lt.s32.totalorder %s22, 1
      %s1335 = scalar_select %p1334, %s22, 1
      %p1336 = scmp.lt.s32.totalorder %s1333, 15
      %s1337 = scalar_select %p1336, %s1333, 15
      %s1338 = smul.addr %s1337, 2
      %s1339 = smul.addr %s1335, 32
      %s1340 = sadd.s32 %s1338, %s1339
      %s1341 = smul.addr %s1340, 4
      %s1342 = scalar_lea.vmem %s5, %s1341
      %p1343 = scmp.lt.s32.totalorder %s22, 1
      %s1344 = scalar_select %p1343, %s22, 1
      %p1345 = scmp.lt.s32.totalorder %s23, 1
      %s1346 = scalar_select %p1345, %s23, 1
      %s1347 = smul.addr %s1344, 2
      %s1348 = sadd.s32 %s1346, %s1347
      %s1349 = smul.addr %s1348, 2
      %s1350 = scalar_lea.vmem %s6, %s1349
      // Predicated region
      $region41: #{mynet_forward.4} parent=39 // pred_check
        %p1351 = pneg %p160
      $region42: #{mynet_forward.4} parent=39 // pred_check_branch
        %1353 = sbr.rel (%p1351) target = $region44
      $region43: #{mynet_forward.4} parent=39 // pred_region
        %s1354 = smul.u32 8, %s23
      $region44: #{mynet_forward.4} parent=39 // pred_fallthru
        _
      // Predicated region
      $region45: #{mynet_forward.4} parent=39 // pred_check
        %p1355 = pneg %p188
      $region46: #{mynet_forward.4} parent=39 // pred_check_branch
        %1357 = sbr.rel (%p1355) target = $region48
      $region47: #{mynet_forward.4} parent=39 // pred_region
        _
      $region48: #{mynet_forward.4} parent=39 // pred_fallthru
        _
    $region40: #{mynet_forward.4} parent=5 // pred_fallthru
      _
    %p1358 = scmp.le.s32.totalorder 2, %s13
    // Predicated region
    $region49: #{mynet_forward.4} parent=5 // pred_check
      %p1359 = pneg %p1358
    $region50: #{mynet_forward.4} parent=5 // pred_check_branch
      %1361 = sbr.rel (%p1359) target = $region52
    $region51: #{mynet_forward.4} parent=5 // pred_region
      %s1362 = ssub.s32 %s13, 2
      // Predicated region
      $region53: #{mynet_forward.4} parent=51 // pred_check
        %p1363 = pneg %p166
      $region54: #{mynet_forward.4} parent=51 // pred_check_branch
        %1365 = sbr.rel (%p1363) target = $region56
      $region55: #{mynet_forward.4} parent=51 // pred_region
        %s1366 = smul.u32 8, %s25
        %p1367 = scmp.lt.s32.totalorder %s24, 1
        %s1368 = scalar_select %p1367, %s24, 1
        %p1369 = scmp.lt.s32.totalorder %s1366, 15
        %s1370 = scalar_select %p1369, %s1366, 15
        %s1371 = smul.addr %s1370, 2
        %s1372 = smul.addr %s1368, 32
        %s1373 = sadd.s32 %s1371, %s1372
        %s1374 = smul.addr %s1373, 4
        %s1375 = scalar_lea.vmem %s5, %s1374
      $region56: #{mynet_forward.4} parent=51 // pred_fallthru
        _
      // Predicated region
      $region57: #{mynet_forward.4} parent=51 // pred_check
        %p1376 = pneg %p194
      $region58: #{mynet_forward.4} parent=51 // pred_check_branch
        %1378 = sbr.rel (%p1376) target = $region60
      $region59: #{mynet_forward.4} parent=51 // pred_region
        %p1379 = scmp.lt.s32.totalorder %s24, 1
        %s1380 = scalar_select %p1379, %s24, 1
        %p1381 = scmp.lt.s32.totalorder %s25, 1
        %s1382 = scalar_select %p1381, %s25, 1
        %s1383 = smul.addr %s1380, 2
        %s1384 = sadd.s32 %s1382, %s1383
        %s1385 = smul.addr %s1384, 2
        %s1386 = scalar_lea.vmem %s6, %s1385
      $region60: #{mynet_forward.4} parent=51 // pred_fallthru
        _
    $region52: #{mynet_forward.4} parent=5 // pred_fallthru
      _
  $region6: #{mynet_forward.4} parent=0 // loop_footer
    %s17 = sadd.s32 1, %s13
  $region7: #{mynet_forward.4} parent=0 // loop_footer_branch
    %12 = sbr.rel target = $region3
  $region8: #{mynet_forward.4} parent=0 // loop_exit
    _

// kernel: mynet_forward.5
$region0: #{mynet_forward.5}
  #allocation0 [shape = 'u32[]', space=smem, size = 0x4, offset = 0x4, fixed_abs, tag = 'smem constant byte address 0x4 - core index']
  #allocation1 [shape = 'u32[144,128]{1,0:T(1,128)}', space=vmem, size = 0x12000, scoped, tag = 'internal scratch']
  %s0 = inlined_call_operand.vmem [shape: bf16[2,16,16,32], index: 0, kind: input, shape index: {}]
  %s1 = inlined_call_operand.vmem [shape: f32[1,32], index: 1, kind: input, shape index: {}]
  %s2 = inlined_call_operand.vmem [shape: f32[1,32], index: 2, kind: input, shape index: {}]
  %s3 = inlined_call_operand.vmem [shape: bf16[288,32], index: 3, kind: input, shape index: {}]
  %s4 = inlined_call_operand.vmem [shape: f32[1,32], index: 4, kind: input, shape index: {}]
  %s5 = inlined_call_operand.vmem [shape: bf16[2,16,16,32], index: 5, kind: output, shape index: {0}]
  %s6 = inlined_call_operand.vmem [shape: f32[2,2,2,32], index: 6, kind: output, shape index: {1}]
  %7 = xla_tuple %s5, %s6
  %s8 = sld [smem:[#allocation0]]
  $region61: #{mynet_forward.5} parent=0
    _
  %s10 = ssub.s32 1, %s8
  %s11 = scalar_select 0, %s10, %s8
  loop: start=0, step=1, limit=6
  $region2: #{mynet_forward.5} parent=0 // loop_pre_header
    _
  $region3: #{mynet_forward.5} parent=0 // loop_header
    %s13 = sphi 0, %s17
    %p14 = scmp.ge.s32.totalorder %s13, 6
    %s20 = sphi 0, %s32
    %s21 = sphi 0, %s28
    %s22 = sphi 0, %s20
    %s23 = sphi 0, %s21
    %s24 = sphi 0, %s22
    %s25 = sphi 0, %s23
    %s35 = sphi 0, %s37
    %s38 = sphi 0, %s35
    %s39 = sphi 0, %s38
    %s55 = sphi 0, %s39
    %s59 = sphi 0, %s59
    %s61 = sphi 0, %s59
    %s62 = sphi 0, %s61
    %s76 = sphi 0, %s62
    %s80 = sphi 0, %s80
    %s82 = sphi 0, %s80
    %s83 = sphi 0, %s82
    %s97 = sphi 0, %s83
    %s101 = sphi 0, %s101
    %s103 = sphi 0, %s101
    %s104 = sphi 0, %s103
    %s118 = sphi 0, %s104
    %s122 = sphi 0, %s122
    %s124 = sphi 0, %s122
    %s125 = sphi 0, %s124
    %s139 = sphi 0, %s125
    %s147 = sphi 0, %s149
    %s150 = sphi 0, %s147
    %s151 = sphi 0, %s150
    %s167 = sphi 0, %s151
    %s175 = sphi 0, %s177
    %s178 = sphi 0, %s175
    %s179 = sphi 0, %s178
    %s195 = sphi 0, %s179
  $region4: #{mynet_forward.5} parent=0 // loop_header_branch
    %16 = sbr.rel (%p14) target = $region8
  $region5: #{mynet_forward.5} parent=0 // loop_body
    %s18 = ssub.s32 %s13, 1
    %s19 = ssub.s32 %s13, 2
    %s26 = sadd.s32 1, %s21
    %p27 = scmp.ge.s32.totalorder %s26, 2
    %s28 = scalar_select %p27, 0, %s26
    %s29 = sadd.s32 1, %s20
    %s30 = scalar_select %p27, %s29, %s20
    %p31 = scmp.ge.s32.totalorder %s30, 2
    %s32 = scalar_select %p31, 0, %s30
    %s33 = ssub.s32 %s20, %s32
    %p34 = scmp.eq.s32.totalorder %s33, 0
    %s36 = sadd.s32 %s35, 1
    %s37 = scalar_select %p34, %s35, %s36
    %p40 = pneg %p34
    %p41 = scmp.eq.s32.totalorder %s13, 3
    %p42 = por %p40, %p41
    %p43 = scmp.ne.s32.totalorder %s35, %s38
    %p44 = scmp.eq.s32.totalorder %s13, 0
    %p45 = por %p43, %p44
    %p46 = scmp.ne.s32.totalorder %s35, %s38
    %p47 = scmp.eq.s32.totalorder %s18, 3
    %p48 = por %p46, %p47
    %p49 = scmp.ne.s32.totalorder %s38, %s39
    %p50 = scmp.eq.s32.totalorder %s18, 0
    %p51 = por %p49, %p50
    %p52 = scmp.ne.s32.totalorder %s38, %s39
    %p53 = scmp.eq.s32.totalorder %s19, 3
    %p54 = por %p52, %p53
    %p56 = scmp.ne.s32.totalorder %s39, %s55
    %p57 = scmp.eq.s32.totalorder %s19, 0
    %p58 = por %p56, %p57
    %s60 = sadd.s32 %s59, 1
    %p63 = scmp.eq.s32.totalorder %s13, 3
    %p64 = scmp.ne.s32.totalorder %s59, %s61
    %p65 = scmp.eq.s32.totalorder %s13, 0
    %p66 = por %p64, %p65
    %p67 = scmp.ne.s32.totalorder %s59, %s61
    %p68 = scmp.eq.s32.totalorder %s18, 3
    %p69 = por %p67, %p68
    %p70 = scmp.ne.s32.totalorder %s61, %s62
    %p71 = scmp.eq.s32.totalorder %s18, 0
    %p72 = por %p70, %p71
    %p73 = scmp.ne.s32.totalorder %s61, %s62
    %p74 = scmp.eq.s32.totalorder %s19, 3
    %p75 = por %p73, %p74
    %p77 = scmp.ne.s32.totalorder %s62, %s76
    %p78 = scmp.eq.s32.totalorder %s19, 0
    %p79 = por %p77, %p78
    %s81 = sadd.s32 %s80, 1
    %p84 = scmp.eq.s32.totalorder %s13, 3
    %p85 = scmp.ne.s32.totalorder %s80, %s82
    %p86 = scmp.eq.s32.totalorder %s13, 0
    %p87 = por %p85, %p86
    %p88 = scmp.ne.s32.totalorder %s80, %s82
    %p89 = scmp.eq.s32.totalorder %s18, 3
    %p90 = por %p88, %p89
    %p91 = scmp.ne.s32.totalorder %s82, %s83
    %p92 = scmp.eq.s32.totalorder %s18, 0
    %p93 = por %p91, %p92
    %p94 = scmp.ne.s32.totalorder %s82, %s83
    %p95 = scmp.eq.s32.totalorder %s19, 3
    %p96 = por %p94, %p95
    %p98 = scmp.ne.s32.totalorder %s83, %s97
    %p99 = scmp.eq.s32.totalorder %s19, 0
    %p100 = por %p98, %p99
    %s102 = sadd.s32 %s101, 1
    %p105 = scmp.eq.s32.totalorder %s13, 3
    %p106 = scmp.ne.s32.totalorder %s101, %s103
    %p107 = scmp.eq.s32.totalorder %s13, 0
    %p108 = por %p106, %p107
    %p109 = scmp.ne.s32.totalorder %s101, %s103
    %p110 = scmp.eq.s32.totalorder %s18, 3
    %p111 = por %p109, %p110
    %p112 = scmp.ne.s32.totalorder %s103, %s104
    %p113 = scmp.eq.s32.totalorder %s18, 0
    %p114 = por %p112, %p113
    %p115 = scmp.ne.s32.totalorder %s103, %s104
    %p116 = scmp.eq.s32.totalorder %s19, 3
    %p117 = por %p115, %p116
    %p119 = scmp.ne.s32.totalorder %s104, %s118
    %p120 = scmp.eq.s32.totalorder %s19, 0
    %p121 = por %p119, %p120
    %s123 = sadd.s32 %s122, 1
    %p126 = scmp.eq.s32.totalorder %s13, 3
    %p127 = scmp.ne.s32.totalorder %s122, %s124
    %p128 = scmp.eq.s32.totalorder %s13, 0
    %p129 = por %p127, %p128
    %p130 = scmp.ne.s32.totalorder %s122, %s124
    %p131 = scmp.eq.s32.totalorder %s18, 3
    %p132 = por %p130, %p131
    %p133 = scmp.ne.s32.totalorder %s124, %s125
    %p134 = scmp.eq.s32.totalorder %s18, 0
    %p135 = por %p133, %p134
    %p136 = scmp.ne.s32.totalorder %s124, %s125
    %p137 = scmp.eq.s32.totalorder %s19, 3
    %p138 = por %p136, %p137
    %p140 = scmp.ne.s32.totalorder %s125, %s139
    %p141 = scmp.eq.s32.totalorder %s19, 0
    %p142 = por %p140, %p141
    %s143 = ssub.s32 %s20, %s32
    %s144 = ssub.s32 %s21, %s28
    %s145 = sor.u32 %s143, %s144
    %p146 = scmp.eq.s32.totalorder %s145, 0
    %s148 = sadd.s32 %s147, 1
    %s149 = scalar_select %p146, %s147, %s148
    %p152 = pneg %p146
    %p153 = scmp.eq.s32.totalorder %s13, 3
    %p154 = por %p152, %p153
    %p155 = scmp.ne.s32.totalorder %s147, %s150
    %p156 = scmp.eq.s32.totalorder %s13, 0
    %p157 = por %p155, %p156
    %p158 = scmp.ne.s32.totalorder %s147, %s150
    %p159 = scmp.eq.s32.totalorder %s18, 3
    %p160 = por %p158, %p159
    %p161 = scmp.ne.s32.totalorder %s150, %s151
    %p162 = scmp.eq.s32.totalorder %s18, 0
    %p163 = por %p161, %p162
    %p164 = scmp.ne.s32.totalorder %s150, %s151
    %p165 = scmp.eq.s32.totalorder %s19, 3
    %p166 = por %p164, %p165
    %p168 = scmp.ne.s32.totalorder %s151, %s167
    %p169 = scmp.eq.s32.totalorder %s19, 0
    %p170 = por %p168, %p169
    %s171 = ssub.s32 %s20, %s32
    %s172 = ssub.s32 %s21, %s28
    %s173 = sor.u32 %s171, %s172
    %p174 = scmp.eq.s32.totalorder %s173, 0
    %s176 = sadd.s32 %s175, 1
    %s177 = scalar_select %p174, %s175, %s176
    %p180 = pneg %p174
    %p181 = scmp.eq.s32.totalorder %s13, 3
    %p182 = por %p180, %p181
    %p183 = scmp.ne.s32.totalorder %s175, %s178
    %p184 = scmp.eq.s32.totalorder %s13, 0
    %p185 = por %p183, %p184
    %p186 = scmp.ne.s32.totalorder %s175, %s178
    %p187 = scmp.eq.s32.totalorder %s18, 3
    %p188 = por %p186, %p187
    %p189 = scmp.ne.s32.totalorder %s178, %s179
    %p190 = scmp.eq.s32.totalorder %s18, 0
    %p191 = por %p189, %p190
    %p192 = scmp.ne.s32.totalorder %s178, %s179
    %p193 = scmp.eq.s32.totalorder %s19, 3
    %p194 = por %p192, %p193
    %p196 = scmp.ne.s32.totalorder %s179, %s195
    %p197 = scmp.eq.s32.totalorder %s19, 0
    %p198 = por %p196, %p197
    %p199 = scmp.le.s32.totalorder 1, %s13
    %p200 = scmp.lt.s32.totalorder %s13, 5
    %p201 = pnand %p199, %p200
    %p202 = pneg %p201
    // Predicated region
    $region9: #{mynet_forward.5} parent=5 // pred_check
      _
    $region10: #{mynet_forward.5} parent=5 // pred_check_branch
      %204 = sbr.rel (%p201) target = $region12
    $region11: #{mynet_forward.5} parent=5 // pred_region
      %s205 = ssub.s32 %s13, 1
      // Predicated region
      $region13: #{mynet_forward.5} parent=11 // pred_check
        %p206 = pneg %p72
      $region14: #{mynet_forward.5} parent=11 // pred_check_branch
        %208 = sbr.rel (%p206) target = $region16
      $region15: #{mynet_forward.5} parent=11 // pred_region
        _
      $region16: #{mynet_forward.5} parent=11 // pred_fallthru
        _
      // Predicated region
      $region17: #{mynet_forward.5} parent=11 // pred_check
        %p209 = pneg %p93
      $region18: #{mynet_forward.5} parent=11 // pred_check_branch
        %211 = sbr.rel (%p209) target = $region20
      $region19: #{mynet_forward.5} parent=11 // pred_region
        _
      $region20: #{mynet_forward.5} parent=11 // pred_fallthru
        _
      // Predicated region
      $region21: #{mynet_forward.5} parent=11 // pred_check
        %p212 = pneg %p114
      $region22: #{mynet_forward.5} parent=11 // pred_check_branch
        %214 = sbr.rel (%p212) target = $region24
      $region23: #{mynet_forward.5} parent=11 // pred_region
        _
      $region24: #{mynet_forward.5} parent=11 // pred_fallthru
        _
      // Predicated region
      $region25: #{mynet_forward.5} parent=11 // pred_check
        %p215 = pneg %p135
      $region26: #{mynet_forward.5} parent=11 // pred_check_branch
        %217 = sbr.rel (%p215) target = $region28
      $region27: #{mynet_forward.5} parent=11 // pred_region
        _
      $region28: #{mynet_forward.5} parent=11 // pred_fallthru
        _
    $region12: #{mynet_forward.5} parent=5 // pred_fallthru
      _
    %p218 = scmp.lt.s32.totalorder %s13, 4
    // Predicated region
    $region29: #{mynet_forward.5} parent=5 // pred_check
      %p219 = pneg %p218
    $region30: #{mynet_forward.5} parent=5 // pred_check_branch
      %221 = sbr.rel (%p219) target = $region32
    $region31: #{mynet_forward.5} parent=5 // pred_region
      // Predicated region
      $region33: #{mynet_forward.5} parent=31 // pred_check
        %p222 = pneg %p45
      $region34: #{mynet_forward.5} parent=31 // pred_check_branch
        %224 = sbr.rel (%p222) target = $region36
      $region35: #{mynet_forward.5} parent=31 // pred_region
        %p225 = scmp.lt.s32.totalorder %s20, 1
        %s226 = scalar_select %p225, %s20, 1
        %s227 = smul.addr %s226, 32
        %s228 = smul.addr %s227, 4
        %s229 = scalar_lea.vmem %s0, %s228
      $region36: #{mynet_forward.5} parent=31 // pred_fallthru
        _
    $region32: #{mynet_forward.5} parent=5 // pred_fallthru
      _
    %p230 = scmp.le.s32.totalorder 1, %s13
    %p231 = scmp.lt.s32.totalorder %s13, 5
    %p232 = pnand %p230, %p231
    %p233 = pneg %p232
    // Predicated region
    $region37: #{mynet_forward.5} parent=5 // pred_check
      _
    $region38: #{mynet_forward.5} parent=5 // pred_check_branch
      %235 = sbr.rel (%p232) target = $region40
    $region39: #{mynet_forward.5} parent=5 // pred_region
      %s236 = ssub.s32 %s13, 1
      %p237 = scmp.lt.s32.totalorder %s22, 1
      %s238 = scalar_select %p237, %s22, 1
      %s239 = smul.addr %s238, 32
      %s240 = smul.addr %s239, 4
      %s241 = scalar_lea.vmem %s0, %s240
      %p242 = pneg %p51
      %p243 = pneg %p48
      %p244 = pneg %p72
      %p245 = pneg %p69
      %p246 = pneg %p93
      %p247 = pneg %p90
      %p248 = pneg %p114
      %p249 = pneg %p111
      %p250 = pneg %p135
      %p251 = pneg %p132
      %p252 = pneg %p163
      %p253 = pneg %p160
      %s254 = smul.u32 8, %s23
      %p255 = scmp.lt.s32.totalorder %s22, 1
      %s256 = scalar_select %p255, %s22, 1
      %p257 = scmp.lt.s32.totalorder %s254, 15
      %s258 = scalar_select %p257, %s254, 15
      %s259 = smul.addr %s258, 2
      %s260 = smul.addr %s256, 32
      %s261 = sadd.s32 %s259, %s260
      %s262 = smul.addr %s261, 4
      %s263 = scalar_lea.vmem %s5, %s262
      %p264 = pneg %p191
      %p265 = pneg %p188
      %p266 = scmp.lt.s32.totalorder %s22, 1
      %s267 = scalar_select %p266, %s22, 1
      %p268 = scmp.lt.s32.totalorder %s23, 1
      %s269 = scalar_select %p268, %s23, 1
      %s270 = smul.addr %s267, 2
      %s271 = sadd.s32 %s269, %s270
      %s272 = smul.addr %s271, 2
      %s273 = scalar_lea.vmem %s6, %s272
      %p274 = scmp.lt.s32.totalorder %s22, 1
      %s275 = scalar_select %p274, %s22, 1
      %s276 = smul.addr %s275, 32
      %s277 = smul.addr %s276, 4
      %s278 = scalar_lea.vmem %s0, %s277
      %s279 = smul.u32 8, %s23
      %p280 = scmp.lt.s32.totalorder %s22, 1
      %s281 = scalar_select %p280, %s22, 1
      %p282 = scmp.lt.s32.totalorder %s279, 15
      %s283 = scalar_select %p282, %s279, 15
      %s284 = smul.addr %s283, 2
      %s285 = smul.addr %s281, 32
      %s286 = sadd.s32 %s284, %s285
      %s287 = smul.addr %s286, 4
      %s288 = scalar_lea.vmem %s5, %s287
      %s289 = smul.u32 8, %s23
      %p290 = scmp.lt.s32.totalorder %s22, 1
      %s291 = scalar_select %p290, %s22, 1
      %p292 = scmp.lt.s32.totalorder %s23, 1
      %s293 = scalar_select %p292, %s23, 1
      %s294 = smul.addr %s291, 2
      %s295 = sadd.s32 %s293, %s294
      %s296 = smul.addr %s295, 2
      %s297 = scalar_lea.vmem %s6, %s296
      %s299 = smul.u32 %s23, 8
      %v300 = vld [vmem:[%s1] sm:$0x1]
      %v301 = vld [vmem:[%s2] sm:$0x1]
      %s302 = smul.u32 %s299, 2
      %s303 = smul.addr %s302, 4
      %s304 = scalar_lea.vmem %s278, %s303
      %v305 = vld [vmem:[%s304] sm:$0xf]
      %v306 = vld [vmem:[%s304 + $0x4] sm:$0xf]
      %v307 = vld [vmem:[%s304 + $0x8] sm:$0xf]
      %v308 = vld [vmem:[%s304 + $0xc] sm:$0xf]
      %v309 = vld [vmem:[%s304 + $0x10] sm:$0xf]
      %v310 = vld [vmem:[%s304 + $0x14] sm:$0xf]
      %v311 = vld [vmem:[%s304 + $0x18] sm:$0xf]
      %v312 = vld [vmem:[%s304 + $0x1c] sm:$0xf]
      %v313 = vld [vmem:[%s304 + $0x20] sm:$0xf]
      %v314 = vld [vmem:[%s304 + $0x24] sm:$0xf]
      %v315 = vld [vmem:[%s304 + $0x28] sm:$0xf]
      %v316 = vld [vmem:[%s304 + $0x2c] sm:$0xf]
      %v317 = vld [vmem:[%s304 + $0x30] sm:$0xf]
      %v318 = vld [vmem:[%s304 + $0x34] sm:$0xf]
      %v319 = vld [vmem:[%s304 + $0x38] sm:$0xf]
      %v320 = vld [vmem:[%s304 + $0x3c] sm:$0xf]
      %v321 = vunpack.c.l.bf16 %v305
      %v322 = vunpack.c.l.bf16 %v306
      %v323 = vunpack.c.l.bf16 %v307
      %v324 = vunpack.c.l.bf16 %v308
      %v325 = vunpack.c.l.bf16 %v309
      %v326 = vunpack.c.l.bf16 %v310
      %v327 = vunpack.c.l.bf16 %v311
      %v328 = vunpack.c.l.bf16 %v312
      %v329 = vunpack.c.l.bf16 %v313
      %v330 = vunpack.c.l.bf16 %v314
      %v331 = vunpack.c.l.bf16 %v315
      %v332 = vunpack.c.l.bf16 %v316
      %v333 = vunpack.c.l.bf16 %v317
      %v334 = vunpack.c.l.bf16 %v318
      %v335 = vunpack.c.l.bf16 %v319
      %v336 = vunpack.c.l.bf16 %v320
      %v338 = vlaneseq
      %v339 = vshrl.u32 %v338, 7
      %v340 = vsub.s32 0, %v339
      %v341 = vrot.slane %v300, %v340
      %v343 = vmul.f32 %v321, %v341
      %v344 = vmul.f32 %v322, %v341
      %v345 = vmul.f32 %v323, %v341
      %v346 = vmul.f32 %v324, %v341
      %v347 = vmul.f32 %v325, %v341
      %v348 = vmul.f32 %v326, %v341
      %v349 = vmul.f32 %v327, %v341
      %v350 = vmul.f32 %v328, %v341
      %v351 = vmul.f32 %v329, %v341
      %v352 = vmul.f32 %v330, %v341
      %v353 = vmul.f32 %v331, %v341
      %v354 = vmul.f32 %v332, %v341
      %v355 = vmul.f32 %v333, %v341
      %v356 = vmul.f32 %v334, %v341
      %v357 = vmul.f32 %v335, %v341
      %v358 = vmul.f32 %v336, %v341
      %v360 = vlaneseq
      %v361 = vshrl.u32 %v360, 7
      %v362 = vsub.s32 0, %v361
      %v363 = vrot.slane %v301, %v362
      %v365 = vadd.f32 %v343, %v363
      %v366 = vadd.f32 %v344, %v363
      %v367 = vadd.f32 %v345, %v363
      %v368 = vadd.f32 %v346, %v363
      %v369 = vadd.f32 %v347, %v363
      %v370 = vadd.f32 %v348, %v363
      %v371 = vadd.f32 %v349, %v363
      %v372 = vadd.f32 %v350, %v363
      %v373 = vadd.f32 %v351, %v363
      %v374 = vadd.f32 %v352, %v363
      %v375 = vadd.f32 %v353, %v363
      %v376 = vadd.f32 %v354, %v363
      %v377 = vadd.f32 %v355, %v363
      %v378 = vadd.f32 %v356, %v363
      %v379 = vadd.f32 %v357, %v363
      %v380 = vadd.f32 %v358, %v363
      %s381 = ssub.s32 %s299, 1
      %p382 = scmp.gt.s32.totalorder %s381, 0
      %s383 = scalar_select %p382, %s381, 0
      %s384 = smul.u32 %s383, 2
      %s385 = smul.addr %s384, 4
      %s386 = scalar_lea.vmem %s278, %s385
      %v387 = vld [vmem:[%s386] sm:$0xf]
      %v388 = vld [vmem:[%s386 + $0x4] sm:$0xf]
      %v389 = vunpack.c.l.bf16 %v387
      %v390 = vunpack.c.l.bf16 %v388
      %p391 = scmp.gt.s32.totalorder %s299, 0
      %v392 = vmul.f32 %v389, %v341
      %v393 = vmul.f32 %v390, %v341
      %v394 = vadd.f32 %v392, %v363
      %v395 = vadd.f32 %v393, %v363
      %s396 = scalar_select %p391, 1, 0
      %v397 = vstv %s396
      %vm398 = vcmp.eq.s32.totalorder %v397, 1
      %v399 = vsel %vm398, %v394, 0.0
      %v400 = vsel %vm398, %v395, 0.0
      %s401 = sadd.s32 %s299, 8
      %p402 = scmp.lt.s32.totalorder %s401, 15
      %s403 = scalar_select %p402, %s401, 15
      %s404 = smul.u32 %s403, 2
      %s405 = smul.addr %s404, 4
      %s406 = scalar_lea.vmem %s278, %s405
      %v407 = vld [vmem:[%s406] sm:$0xf]
      %v408 = vld [vmem:[%s406 + $0x4] sm:$0xf]
      %v409 = vunpack.c.l.bf16 %v407
      %v410 = vunpack.c.l.bf16 %v408
      %p411 = scmp.lt.s32.totalorder %s401, 16
      %v412 = vmul.f32 %v409, %v341
      %v413 = vmul.f32 %v410, %v341
      %v414 = vadd.f32 %v412, %v363
      %v415 = vadd.f32 %v413, %v363
      %s416 = scalar_select %p411, 1, 0
      %v417 = vstv %s416
      %vm418 = vcmp.eq.s32.totalorder %v417, 1
      %v419 = vsel %vm418, %v414, 0.0
      %v420 = vsel %vm418, %v415, 0.0
      %v421 = vpack.c.bf16 %v400, %v399
      %v422 = vpack.c.bf16 %v366, %v365
      %v423 = vpack.c.bf16 %v368, %v367
      %v424 = vpack.c.bf16 %v370, %v369
      %v425 = vpack.c.bf16 %v372, %v371
      %v426 = vpack.c.bf16 %v374, %v373
      %v427 = vpack.c.bf16 %v376, %v375
      %v428 = vpack.c.bf16 %v378, %v377
      %v429 = vpack.c.bf16 %v380, %v379
      %v430 = vpack.c.bf16 %v420, %v419
      %v432 = vshrl.u32 %v421, 16
      %v434 = vrot.slane %v432, 7
      %v435 = vshll.u32 %v421, 16
      %v437 = vor.u32 %v434, %v435
      %v439 = vshrl.u32 %v422, 16
      %v441 = vrot.slane %v439, 7
      %v442 = vshll.u32 %v422, 16
      %v444 = vor.u32 %v441, %v442
      %v446 = vshrl.u32 %v423, 16
      %v448 = vrot.slane %v446, 7
      %v449 = vshll.u32 %v423, 16
      %v451 = vor.u32 %v448, %v449
      %v453 = vshrl.u32 %v424, 16
      %v455 = vrot.slane %v453, 7
      %v456 = vshll.u32 %v424, 16
      %v458 = vor.u32 %v455, %v456
      %v460 = vshrl.u32 %v425, 16
      %v462 = vrot.slane %v460, 7
      %v463 = vshll.u32 %v425, 16
      %v465 = vor.u32 %v462, %v463
      %v467 = vshrl.u32 %v426, 16
      %v469 = vrot.slane %v467, 7
      %v470 = vshll.u32 %v426, 16
      %v472 = vor.u32 %v469, %v470
      %v474 = vshrl.u32 %v427, 16
      %v476 = vrot.slane %v474, 7
      %v477 = vshll.u32 %v427, 16
      %v479 = vor.u32 %v476, %v477
      %v481 = vshrl.u32 %v428, 16
      %v483 = vrot.slane %v481, 7
      %v484 = vshll.u32 %v428, 16
      %v486 = vor.u32 %v483, %v484
      %v488 = vshrl.u32 %v429, 16
      %v490 = vrot.slane %v488, 7
      %v491 = vshll.u32 %v429, 16
      %v493 = vor.u32 %v490, %v491
      %v495 = vshrl.u32 %v430, 16
      %v497 = vrot.slane %v495, 7
      %v498 = vshll.u32 %v430, 16
      %v500 = vor.u32 %v497, %v498
      %vm521 = vcmask 1040384
      %vm522 = vsmask.f32 256
      %vm523 = vmand %vm521, %vm522
      %v524 = vsel %vm523, 0, %v437
      %v525 = vsel %vm523, 0, %v444
      %v526 = vsel %vm523, 0, %v451
      %v527 = vsel %vm523, 0, %v458
      %v528 = vsel %vm523, 0, %v465
      %v529 = vsel %vm523, 0, %v472
      %v530 = vsel %vm523, 0, %v479
      %v531 = vsel %vm523, 0, %v486
      %v532 = vsel %vm523, 0, %v493
      %v533 = vsel %vm523, 0, %v500
      %v534 = vsel %vm523, %v434, 0
      %v535 = vsel %vm523, %v441, 0
      %v536 = vsel %vm523, %v448, 0
      %v537 = vsel %vm523, %v455, 0
      %v538 = vsel %vm523, %v462, 0
      %v539 = vsel %vm523, %v469, 0
      %v540 = vsel %vm523, %v476, 0
      %v541 = vsel %vm523, %v483, 0
      %v542 = vsel %vm523, %v490, 0
      %v543 = vsel %vm523, %v497, 0
      %vm544 = vsmask.f32 7424
      %v546 = vshrl.u32 %v524, 16
      %v548 = vshll.u32 %v524, 16
      %v550 = vrot.slane %v548, 1
      %v551 = vor.u32 %v546, %v550
      %v553 = vshll.u32 %v534, 16
      %v555 = vrot.slane %v553, 1
      %v556 = vsel %vm544, %v551, %v555
      %v558 = vshrl.u32 %v525, 16
      %v560 = vshll.u32 %v525, 16
      %v562 = vrot.slane %v560, 1
      %v563 = vor.u32 %v558, %v562
      %v565 = vshll.u32 %v535, 16
      %v567 = vrot.slane %v565, 1
      %v568 = vsel %vm544, %v563, %v567
      %v570 = vshrl.u32 %v526, 16
      %v572 = vshll.u32 %v526, 16
      %v574 = vrot.slane %v572, 1
      %v575 = vor.u32 %v570, %v574
      %v577 = vshll.u32 %v536, 16
      %v579 = vrot.slane %v577, 1
      %v580 = vsel %vm544, %v575, %v579
      %v582 = vshrl.u32 %v527, 16
      %v584 = vshll.u32 %v527, 16
      %v586 = vrot.slane %v584, 1
      %v587 = vor.u32 %v582, %v586
      %v589 = vshll.u32 %v537, 16
      %v591 = vrot.slane %v589, 1
      %v592 = vsel %vm544, %v587, %v591
      %v594 = vshrl.u32 %v528, 16
      %v596 = vshll.u32 %v528, 16
      %v598 = vrot.slane %v596, 1
      %v599 = vor.u32 %v594, %v598
      %v601 = vshll.u32 %v538, 16
      %v603 = vrot.slane %v601, 1
      %v604 = vsel %vm544, %v599, %v603
      %v606 = vshrl.u32 %v529, 16
      %v608 = vshll.u32 %v529, 16
      %v610 = vrot.slane %v608, 1
      %v611 = vor.u32 %v606, %v610
      %v613 = vshll.u32 %v539, 16
      %v615 = vrot.slane %v613, 1
      %v616 = vsel %vm544, %v611, %v615
      %v618 = vshrl.u32 %v530, 16
      %v620 = vshll.u32 %v530, 16
      %v622 = vrot.slane %v620, 1
      %v623 = vor.u32 %v618, %v622
      %v625 = vshll.u32 %v540, 16
      %v627 = vrot.slane %v625, 1
      %v628 = vsel %vm544, %v623, %v627
      %v630 = vshrl.u32 %v531, 16
      %v632 = vshll.u32 %v531, 16
      %v634 = vrot.slane %v632, 1
      %v635 = vor.u32 %v630, %v634
      %v637 = vshll.u32 %v541, 16
      %v639 = vrot.slane %v637, 1
      %v640 = vsel %vm544, %v635, %v639
      %641 = vrot.lane.b32.xlu0 %v556, 32
      %v642 = vpop.permute.xlu0 %641
      %643 = vrot.lane.b32.xlu0 %v568, 32
      %v644 = vpop.permute.xlu0 %643
      %645 = vrot.lane.b32.xlu0 %v580, 32
      %v646 = vpop.permute.xlu0 %645
      %647 = vrot.lane.b32.xlu0 %v592, 32
      %v648 = vpop.permute.xlu0 %647
      %649 = vrot.lane.b32.xlu0 %v604, 32
      %v650 = vpop.permute.xlu0 %649
      %651 = vrot.lane.b32.xlu0 %v616, 32
      %v652 = vpop.permute.xlu0 %651
      %653 = vrot.lane.b32.xlu0 %v628, 32
      %v654 = vpop.permute.xlu0 %653
      %655 = vrot.lane.b32.xlu0 %v640, 32
      %v656 = vpop.permute.xlu0 %655
      %vm673 = vcmask 1046528
      %v674 = vrot.slane %v524, 1
      %v675 = vrot.slane %v534, 1
      %v676 = vsel %vm673, %v674, %v675
      %v677 = vrot.slane %v525, 1
      %v678 = vrot.slane %v535, 1
      %v679 = vsel %vm673, %v677, %v678
      %v680 = vrot.slane %v526, 1
      %v681 = vrot.slane %v536, 1
      %v682 = vsel %vm673, %v680, %v681
      %v683 = vrot.slane %v527, 1
      %v684 = vrot.slane %v537, 1
      %v685 = vsel %vm673, %v683, %v684
      %v686 = vrot.slane %v528, 1
      %v687 = vrot.slane %v538, 1
      %v688 = vsel %vm673, %v686, %v687
      %v689 = vrot.slane %v529, 1
      %v690 = vrot.slane %v539, 1
      %v691 = vsel %vm673, %v689, %v690
      %v692 = vrot.slane %v530, 1
      %v693 = vrot.slane %v540, 1
      %v694 = vsel %vm673, %v692, %v693
      %v695 = vrot.slane %v531, 1
      %v696 = vrot.slane %v541, 1
      %v697 = vsel %vm673, %v695, %v696
      %698 = vrot.lane.b32.xlu0 %v676, 64
      %v699 = vpop.permute.xlu0 %698
      %700 = vrot.lane.b32.xlu0 %v679, 64
      %v701 = vpop.permute.xlu0 %700
      %702 = vrot.lane.b32.xlu0 %v682, 64
      %v703 = vpop.permute.xlu0 %702
      %704 = vrot.lane.b32.xlu0 %v685, 64
      %v705 = vpop.permute.xlu0 %704
      %706 = vrot.lane.b32.xlu0 %v688, 64
      %v707 = vpop.permute.xlu0 %706
      %708 = vrot.lane.b32.xlu0 %v691, 64
      %v709 = vpop.permute.xlu0 %708
      %710 = vrot.lane.b32.xlu0 %v694, 64
      %v711 = vpop.permute.xlu0 %710
      %712 = vrot.lane.b32.xlu0 %v697, 64
      %v713 = vpop.permute.xlu0 %712
      %715 = vrot.lane.b32.xlu0 %v525, 96
      %v716 = vpop.permute.xlu0 %715
      %717 = vrot.lane.b32.xlu0 %v526, 96
      %v718 = vpop.permute.xlu0 %717
      %719 = vrot.lane.b32.xlu0 %v527, 96
      %v720 = vpop.permute.xlu0 %719
      %721 = vrot.lane.b32.xlu0 %v528, 96
      %v722 = vpop.permute.xlu0 %721
      %723 = vrot.lane.b32.xlu0 %v529, 96
      %v724 = vpop.permute.xlu0 %723
      %725 = vrot.lane.b32.xlu0 %v530, 96
      %v726 = vpop.permute.xlu0 %725
      %727 = vrot.lane.b32.xlu0 %v531, 96
      %v728 = vpop.permute.xlu0 %727
      %729 = vrot.lane.b32.xlu0 %v532, 96
      %v730 = vpop.permute.xlu0 %729
      %v732 = vshrl.u32 %v532, 16
      %v734 = vshll.u32 %v532, 16
      %v736 = vrot.slane %v734, 1
      %v737 = vor.u32 %v732, %v736
      %v739 = vshll.u32 %v542, 16
      %v741 = vrot.slane %v739, 1
      %v742 = vsel %vm544, %v737, %v741
      %v744 = vrot.slane %v532, 1
      %v745 = vrot.slane %v542, 1
      %v746 = vsel %vm673, %v744, %v745
      %747 = vrot.lane.b32.xlu0 %v679, 32
      %v748 = vpop.permute.xlu0 %747
      %749 = vrot.lane.b32.xlu0 %v682, 32
      %v750 = vpop.permute.xlu0 %749
      %751 = vrot.lane.b32.xlu0 %v685, 32
      %v752 = vpop.permute.xlu0 %751
      %753 = vrot.lane.b32.xlu0 %v688, 32
      %v754 = vpop.permute.xlu0 %753
      %755 = vrot.lane.b32.xlu0 %v691, 32
      %v756 = vpop.permute.xlu0 %755
      %757 = vrot.lane.b32.xlu0 %v694, 32
      %v758 = vpop.permute.xlu0 %757
      %759 = vrot.lane.b32.xlu0 %v697, 32
      %v760 = vpop.permute.xlu0 %759
      %761 = vrot.lane.b32.xlu0 %v746, 32
      %v762 = vpop.permute.xlu0 %761
      %764 = vrot.lane.b32.xlu0 %v526, 64
      %v765 = vpop.permute.xlu0 %764
      %766 = vrot.lane.b32.xlu0 %v527, 64
      %v767 = vpop.permute.xlu0 %766
      %768 = vrot.lane.b32.xlu0 %v528, 64
      %v769 = vpop.permute.xlu0 %768
      %770 = vrot.lane.b32.xlu0 %v529, 64
      %v771 = vpop.permute.xlu0 %770
      %772 = vrot.lane.b32.xlu0 %v530, 64
      %v773 = vpop.permute.xlu0 %772
      %774 = vrot.lane.b32.xlu0 %v531, 64
      %v775 = vpop.permute.xlu0 %774
      %776 = vrot.lane.b32.xlu0 %v532, 64
      %v777 = vpop.permute.xlu0 %776
      %778 = vrot.lane.b32.xlu0 %v533, 64
      %v779 = vpop.permute.xlu0 %778
      %v781 = vshrl.u32 %v533, 16
      %v783 = vshll.u32 %v533, 16
      %v785 = vrot.slane %v783, 1
      %v786 = vor.u32 %v781, %v785
      %v788 = vshll.u32 %v543, 16
      %v790 = vrot.slane %v788, 1
      %v791 = vsel %vm544, %v786, %v790
      %792 = vrot.lane.b32.xlu0 %v580, 96
      %v793 = vpop.permute.xlu0 %792
      %794 = vrot.lane.b32.xlu0 %v592, 96
      %v795 = vpop.permute.xlu0 %794
      %796 = vrot.lane.b32.xlu0 %v604, 96
      %v797 = vpop.permute.xlu0 %796
      %798 = vrot.lane.b32.xlu0 %v616, 96
      %v799 = vpop.permute.xlu0 %798
      %800 = vrot.lane.b32.xlu0 %v628, 96
      %v801 = vpop.permute.xlu0 %800
      %802 = vrot.lane.b32.xlu0 %v640, 96
      %v803 = vpop.permute.xlu0 %802
      %804 = vrot.lane.b32.xlu0 %v742, 96
      %v805 = vpop.permute.xlu0 %804
      %806 = vrot.lane.b32.xlu0 %v791, 96
      %v807 = vpop.permute.xlu0 %806
      %v809 = vrot.slane %v533, 1
      %v810 = vrot.slane %v543, 1
      %v811 = vsel %vm673, %v809, %v810
      %vm812 = vcmask 261120
      %v814 = vsel %vm812, %v524, %v642
      %v816 = vsel %vm812, %v525, %v644
      %v818 = vsel %vm812, %v526, %v646
      %v820 = vsel %vm812, %v527, %v648
      %v822 = vsel %vm812, %v528, %v650
      %v824 = vsel %vm812, %v529, %v652
      %v826 = vsel %vm812, %v530, %v654
      %v828 = vsel %vm812, %v531, %v656
      %vm829 = vcmask 523264
      %v831 = vsel %vm829, %v814, %v699
      %v833 = vsel %vm829, %v816, %v701
      %v835 = vsel %vm829, %v818, %v703
      %v837 = vsel %vm829, %v820, %v705
      %v839 = vsel %vm829, %v822, %v707
      %v841 = vsel %vm829, %v824, %v709
      %v843 = vsel %vm829, %v826, %v711
      %v845 = vsel %vm829, %v828, %v713
      %vm846 = vcmask 785408
      %v848 = vsel %vm846, %v831, %v716
      %v851 = vsel %vm846, %v833, %v718
      %v854 = vsel %vm846, %v835, %v720
      %v857 = vsel %vm846, %v837, %v722
      %v860 = vsel %vm846, %v839, %v724
      %v863 = vsel %vm846, %v841, %v726
      %v866 = vsel %vm846, %v843, %v728
      %v869 = vsel %vm846, %v845, %v730
      %v873 = vsel %vm812, %v568, %v748
      %v876 = vsel %vm812, %v580, %v750
      %v879 = vsel %vm812, %v592, %v752
      %v882 = vsel %vm812, %v604, %v754
      %v885 = vsel %vm812, %v616, %v756
      %v888 = vsel %vm812, %v628, %v758
      %v891 = vsel %vm812, %v640, %v760
      %v894 = vsel %vm812, %v742, %v762
      %v896 = vsel %vm829, %v873, %v765
      %v898 = vsel %vm829, %v876, %v767
      %v900 = vsel %vm829, %v879, %v769
      %v902 = vsel %vm829, %v882, %v771
      %v904 = vsel %vm829, %v885, %v773
      %v906 = vsel %vm829, %v888, %v775
      %v908 = vsel %vm829, %v891, %v777
      %v910 = vsel %vm829, %v894, %v779
      %v912 = vsel %vm846, %v896, %v793
      %v915 = vsel %vm846, %v898, %v795
      %v918 = vsel %vm846, %v900, %v797
      %v921 = vsel %vm846, %v902, %v799
      %v924 = vsel %vm846, %v904, %v801
      %v927 = vsel %vm846, %v906, %v803
      %v930 = vsel %vm846, %v908, %v805
      %v933 = vsel %vm846, %v910, %v807
      %v935 = vld [vmem:[%s3] sm:$0xf]
      %v936 = vld [vmem:[%s3 + $0x4] sm:$0xf]
      %v937 = vld [vmem:[%s3 + $0x8] sm:$0xf]
      %v938 = vld [vmem:[%s3 + $0xc] sm:$0xf]
      %v939 = vld [vmem:[%s3 + $0x10] sm:$0xf]
      %v940 = vld [vmem:[%s3 + $0x14] sm:$0xf]
      %v941 = vld [vmem:[%s3 + $0x18] sm:$0xf]
      %v942 = vld [vmem:[%s3 + $0x1c] sm:$0xf]
      %v943 = vld [vmem:[%s3 + $0x20] sm:$0xf]
      %v944 = vld [vmem:[%s3 + $0x24] sm:$0xf]
      %v945 = vld [vmem:[%s3 + $0x28] sm:$0xf]
      %v946 = vld [vmem:[%s3 + $0x2c] sm:$0xf]
      %v947 = vld [vmem:[%s3 + $0x30] sm:$0xf]
      %v948 = vld [vmem:[%s3 + $0x34] sm:$0xf]
      %v949 = vld [vmem:[%s3 + $0x38] sm:$0xf]
      %v950 = vld [vmem:[%s3 + $0x3c] sm:$0xf]
      %v951 = vld [vmem:[%s3 + $0x40] sm:$0xf]
      %v952 = vld [vmem:[%s3 + $0x44] sm:$0xf]
      %v953 = vld [vmem:[%s3 + $0x48] sm:$0xf]
      %v954 = vld [vmem:[%s3 + $0x4c] sm:$0xf]
      %v955 = vld [vmem:[%s3 + $0x50] sm:$0xf]
      %v956 = vld [vmem:[%s3 + $0x54] sm:$0xf]
      %v957 = vld [vmem:[%s3 + $0x58] sm:$0xf]
      %v958 = vld [vmem:[%s3 + $0x5c] sm:$0xf]
      %v959 = vld [vmem:[%s3 + $0x60] sm:$0xf]
      %v960 = vld [vmem:[%s3 + $0x64] sm:$0xf]
      %v961 = vld [vmem:[%s3 + $0x68] sm:$0xf]
      %v962 = vld [vmem:[%s3 + $0x6c] sm:$0xf]
      %v963 = vld [vmem:[%s3 + $0x70] sm:$0xf]
      %v964 = vld [vmem:[%s3 + $0x74] sm:$0xf]
      %v965 = vld [vmem:[%s3 + $0x78] sm:$0xf]
      %v966 = vld [vmem:[%s3 + $0x7c] sm:$0xf]
      %v967 = vld [vmem:[%s3 + $0x80] sm:$0xf]
      %v968 = vld [vmem:[%s3 + $0x84] sm:$0xf]
      %v969 = vld [vmem:[%s3 + $0x88] sm:$0xf]
      %v970 = vld [vmem:[%s3 + $0x8c] sm:$0xf]
      %v971 = vld [vmem:[%s4] sm:$0x1]
      %v973 = vlaneseq
      %v974 = vshrl.u32 %v973, 7
      %v975 = vsub.s32 0, %v974
      %v976 = vrot.slane %v971, %v975
      %v1014 = vunpack.c.l.b16 %v935
      %v1015 = vunpack.c.l.b16 %v936
      %v1016 = vunpack.c.l.b16 %v937
      %v1017 = vunpack.c.l.b16 %v938
      %v1018 = vunpack.c.l.b16 %v939
      %v1019 = vunpack.c.l.b16 %v940
      %v1020 = vunpack.c.l.b16 %v941
      %v1021 = vunpack.c.l.b16 %v942
      %v1022 = vunpack.c.l.b16 %v943
      %v1023 = vunpack.c.l.b16 %v944
      %v1024 = vunpack.c.l.b16 %v945
      %v1025 = vunpack.c.l.b16 %v946
      %v1026 = vunpack.c.l.b16 %v947
      %v1027 = vunpack.c.l.b16 %v948
      %v1028 = vunpack.c.l.b16 %v949
      %v1029 = vunpack.c.l.b16 %v950
      %v1030 = vunpack.c.l.b16 %v951
      %v1031 = vunpack.c.l.b16 %v952
      %v1032 = vunpack.c.l.b16 %v953
      %v1033 = vunpack.c.l.b16 %v954
      %v1034 = vunpack.c.l.b16 %v955
      %v1035 = vunpack.c.l.b16 %v956
      %v1036 = vunpack.c.l.b16 %v957
      %v1037 = vunpack.c.l.b16 %v958
      %v1038 = vunpack.c.l.b16 %v959
      %v1039 = vunpack.c.l.b16 %v960
      %v1040 = vunpack.c.l.b16 %v961
      %v1041 = vunpack.c.l.b16 %v962
      %v1042 = vunpack.c.l.b16 %v963
      %v1043 = vunpack.c.l.b16 %v964
      %v1044 = vunpack.c.l.b16 %v965
      %v1045 = vunpack.c.l.b16 %v966
      %v1046 = vunpack.c.l.b16 %v967
      %v1047 = vunpack.c.l.b16 %v968
      %v1048 = vunpack.c.l.b16 %v969
      %v1049 = vunpack.c.l.b16 %v970
      %v1050 = vpack.c.b16 %v1015, %v1014
      %v1051 = vpack.c.b16 %v1017, %v1016
      %v1052 = vpack.c.b16 %v1019, %v1018
      %v1053 = vpack.c.b16 %v1021, %v1020
      %v1054 = vpack.c.b16 %v1023, %v1022
      %v1055 = vpack.c.b16 %v1025, %v1024
      %v1056 = vpack.c.b16 %v1027, %v1026
      %v1057 = vpack.c.b16 %v1029, %v1028
      %v1058 = vpack.c.b16 %v1031, %v1030
      %v1059 = vpack.c.b16 %v1033, %v1032
      %v1060 = vpack.c.b16 %v1035, %v1034
      %v1061 = vpack.c.b16 %v1037, %v1036
      %v1062 = vpack.c.b16 %v1039, %v1038
      %v1063 = vpack.c.b16 %v1041, %v1040
      %v1064 = vpack.c.b16 %v1043, %v1042
      %v1065 = vpack.c.b16 %v1045, %v1044
      %v1066 = vpack.c.b16 %v1047, %v1046
      %v1067 = vpack.c.b16 %v1049, %v1048
      %v1087 = vsel %vm812, %v682, 0
      %v1090 = vsel %vm812, %v685, 0
      %v1093 = vsel %vm812, %v688, 0
      %v1096 = vsel %vm812, %v691, 0
      %v1099 = vsel %vm812, %v694, 0
      %v1102 = vsel %vm812, %v697, 0
      %v1105 = vsel %vm812, %v746, 0
      %v1108 = vsel %vm812, %v811, 0
      %1110 = vmatprep.subr.bf16.mxu0 0
      %1111 = vmatpush1.bf16.msra.mxu0 %v1050
      %1112 = vmatprep.subr.bf16.mxu0 0
      %1113 = vmatpush1.bf16.msra.mxu0 %v1051
      %1114 = vmatprep.subr.bf16.mxu0 0
      %1115 = vmatpush1.bf16.msra.mxu0 %v1052
      %1116 = vmatprep.subr.bf16.mxu0 0
      %1117 = vmatpush1.bf16.msra.mxu0 %v1053
      %1118 = vmatprep.subr.bf16.mxu0 0
      %1119 = vmatpush1.bf16.msra.mxu0 %v1054
      %1120 = vmatprep.subr.bf16.mxu0 0
      %1121 = vmatpush1.bf16.msra.mxu0 %v1055
      %1122 = vmatprep.subr.bf16.mxu0 0
      %1123 = vmatpush1.bf16.msra.mxu0 %v1056
      %1124 = vmatprep.subr.bf16.mxu0 0
      %1125 = vmatpush1.bf16.msra.mxu0 %v1057
      %1126 = vmatprep.subr.bf16.mxu0 0
      %1127 = vmatpush1.bf16.msra.mxu0 %v1058
      %1128 = vmatprep.subr.bf16.mxu0 0
      %1129 = vmatpush1.bf16.msra.mxu0 %v1059
      %1130 = vmatprep.subr.bf16.mxu0 0
      %1131 = vmatpush1.bf16.msra.mxu0 %v1060
      %1132 = vmatprep.subr.bf16.mxu0 0
      %1133 = vmatpush1.bf16.msra.mxu0 %v1061
      %1134 = vmatprep.subr.bf16.mxu0 0
      %1135 = vmatpush1.bf16.msra.mxu0 %v1062
      %1136 = vmatprep.subr.bf16.mxu0 0
      %1137 = vmatpush1.bf16.msra.mxu0 %v1063
      %1138 = vmatprep.subr.bf16.mxu0 0
      %1139 = vmatpush1.bf16.msra.mxu0 %v1064
      %1140 = vmatprep.subr.bf16.mxu0 0
      %1141 = vmatpush1.bf16.msra.mxu0 %v1065
      %1142 = vmatprep.mubr.bf16.mxu0 %v912
      %1143 = vmatmul.mubr.bf16.gmra.mrb[0].mxu0 %v848
      %v1144 = vpop.f32.mrb[0].mxu0
      %v1145 = vadd.f32 %v976, %v1144
      %v1146 = vpop.f32.mrb[0].mxu0
      %v1147 = vpop.f32.mrb[0].mxu0
      %v1148 = vadd.f32 %v976, %v1147
      %v1149 = vpop.f32.mrb[0].mxu0
      %1150 = vmatprep.mubr.bf16.mxu0 %v915
      %1151 = vmatmul.mubr.bf16.gmra.mrb[0].mxu0 %v851
      %v1152 = vpop.f32.mrb[0].mxu0
      %v1153 = vadd.f32 %v976, %v1152
      %v1154 = vpop.f32.mrb[0].mxu0
      %v1155 = vpop.f32.mrb[0].mxu0
      %v1156 = vadd.f32 %v976, %v1155
      %v1157 = vpop.f32.mrb[0].mxu0
      %1158 = vmatprep.mubr.bf16.mxu0 %v918
      %1159 = vmatmul.mubr.bf16.gmra.mrb[0].mxu0 %v854
      %v1160 = vpop.f32.mrb[0].mxu0
      %v1161 = vadd.f32 %v976, %v1160
      %v1162 = vpop.f32.mrb[0].mxu0
      %v1163 = vpop.f32.mrb[0].mxu0
      %v1164 = vadd.f32 %v976, %v1163
      %v1165 = vpop.f32.mrb[0].mxu0
      %1166 = vmatprep.mubr.bf16.mxu0 %v921
      %1167 = vmatmul.mubr.bf16.gmra.mrb[0].mxu0 %v857
      %v1168 = vpop.f32.mrb[0].mxu0
      %v1169 = vadd.f32 %v976, %v1168
      %v1170 = vpop.f32.mrb[0].mxu0
      %v1171 = vpop.f32.mrb[0].mxu0
      %v1172 = vadd.f32 %v976, %v1171
      %v1173 = vpop.f32.mrb[0].mxu0
      %1174 = vmatprep.mubr.bf16.mxu0 %v924
      %1175 = vmatmul.mubr.bf16.gmra.mrb[0].mxu0 %v860
      %v1176 = vpop.f32.mrb[0].mxu0
      %v1177 = vadd.f32 %v976, %v1176
      %v1178 = vpop.f32.mrb[0].mxu0
      %v1179 = vpop.f32.mrb[0].mxu0
      %v1180 = vadd.f32 %v976, %v1179
      %v1181 = vpop.f32.mrb[0].mxu0
      %1182 = vmatprep.mubr.bf16.mxu0 %v927
      %1183 = vmatmul.mubr.bf16.gmra.mrb[0].mxu0 %v863
      %v1184 = vpop.f32.mrb[0].mxu0
      %v1185 = vadd.f32 %v976, %v1184
      %v1186 = vpop.f32.mrb[0].mxu0
      %v1187 = vpop.f32.mrb[0].mxu0
      %v1188 = vadd.f32 %v976, %v1187
      %v1189 = vpop.f32.mrb[0].mxu0
      %1190 = vmatprep.mubr.bf16.mxu0 %v930
      %1191 = vmatmul.mubr.bf16.gmra.mrb[0].mxu0 %v866
      %v1192 = vpop.f32.mrb[0].mxu0
      %v1193 = vadd.f32 %v976, %v1192
      %v1194 = vpop.f32.mrb[0].mxu0
      %v1195 = vpop.f32.mrb[0].mxu0
      %v1196 = vadd.f32 %v976, %v1195
      %v1197 = vpop.f32.mrb[0].mxu0
      %1198 = vmatprep.mubr.bf16.mxu0 %v933
      %1199 = vmatmul.mubr.bf16.gmra.mrb[0].mxu0 %v869
      %v1200 = vpop.f32.mrb[0].mxu0
      %v1201 = vadd.f32 %v976, %v1200
      %v1202 = vpop.f32.mrb[0].mxu0
      %v1203 = vpop.f32.mrb[0].mxu0
      %v1204 = vadd.f32 %v976, %v1203
      %v1205 = vpop.f32.mrb[0].mxu0
      %1206 = vdwg.mxu0
      %1207 = vmatprep.subr.bf16.mxu0 0
      %1208 = vmatpush1.bf16.msra.mxu0 %v1066
      %1209 = vmatprep.subr.bf16.mxu0 0
      %1210 = vmatpush1.bf16.msra.mxu0 %v1067
      %1211 = vmatprep.subr.bf16.mxu0 0
      %1212 = vmatpush1.bf16.msra.mxu0 0
      %1213 = vmatprep.subr.bf16.mxu0 0
      %1214 = vmatpush1.bf16.msra.mxu0 0
      %1215 = vmatprep.subr.bf16.mxu0 0
      %1216 = vmatpush1.bf16.msra.mxu0 0
      %1217 = vmatprep.subr.bf16.mxu0 0
      %1218 = vmatpush1.bf16.msra.mxu0 0
      %1219 = vmatprep.subr.bf16.mxu0 0
      %1220 = vmatpush1.bf16.msra.mxu0 0
      %1221 = vmatprep.subr.bf16.mxu0 0
      %1222 = vmatpush1.bf16.msra.mxu0 0
      %1223 = vmatprep.subr.bf16.mxu0 0
      %1224 = vmatpush1.bf16.msra.mxu0 0
      %1225 = vmatprep.subr.bf16.mxu0 0
      %1226 = vmatpush1.bf16.msra.mxu0 0
      %1227 = vmatprep.subr.bf16.mxu0 0
      %1228 = vmatpush1.bf16.msra.mxu0 0
      %1229 = vmatprep.subr.bf16.mxu0 0
      %1230 = vmatpush1.bf16.msra.mxu0 0
      %1231 = vmatprep.subr.bf16.mxu0 0
      %1232 = vmatpush1.bf16.msra.mxu0 0
      %1233 = vmatprep.subr.bf16.mxu0 0
      %1234 = vmatpush1.bf16.msra.mxu0 0
      %1235 = vmatprep.subr.bf16.mxu0 0
      %1236 = vmatpush1.bf16.msra.mxu0 0
      %1237 = vmatprep.subr.bf16.mxu0 0
      %1238 = vmatpush1.bf16.msra.mxu0 0
      %1239 = vmatprep.mubr.bf16.mxu0 0
      %1240 = vmatmul.mubr.bf16.gmra.mrb[0].mxu0 %v1087
      %v1241 = vpop.f32.mrb[0].mxu0
      %v1242 = vadd.f32 %v1145, %v1241
      %v1243 = vpop.f32.mrb[0].mxu0
      %v1244 = vpop.f32.mrb[0].mxu0
      %v1245 = vadd.f32 %v1148, %v1244
      %v1246 = vpop.f32.mrb[0].mxu0
      %1247 = vmatprep.mubr.bf16.mxu0 0
      %1248 = vmatmul.mubr.bf16.gmra.mrb[0].mxu0 %v1090
      %v1249 = vpop.f32.mrb[0].mxu0
      %v1250 = vadd.f32 %v1153, %v1249
      %v1251 = vpop.f32.mrb[0].mxu0
      %v1252 = vpop.f32.mrb[0].mxu0
      %v1253 = vadd.f32 %v1156, %v1252
      %v1254 = vpop.f32.mrb[0].mxu0
      %1255 = vmatprep.mubr.bf16.mxu0 0
      %1256 = vmatmul.mubr.bf16.gmra.mrb[0].mxu0 %v1093
      %v1257 = vpop.f32.mrb[0].mxu0
      %v1258 = vadd.f32 %v1161, %v1257
      %v1259 = vpop.f32.mrb[0].mxu0
      %v1260 = vpop.f32.mrb[0].mxu0
      %v1261 = vadd.f32 %v1164, %v1260
      %v1262 = vpop.f32.mrb[0].mxu0
      %1263 = vmatprep.mubr.bf16.mxu0 0
      %1264 = vmatmul.mubr.bf16.gmra.mrb[0].mxu0 %v1096
      %v1265 = vpop.f32.mrb[0].mxu0
      %v1266 = vadd.f32 %v1169, %v1265
      %v1267 = vpop.f32.mrb[0].mxu0
      %v1268 = vpop.f32.mrb[0].mxu0
      %v1269 = vadd.f32 %v1172, %v1268
      %v1270 = vpop.f32.mrb[0].mxu0
      %1271 = vmatprep.mubr.bf16.mxu0 0
      %1272 = vmatmul.mubr.bf16.gmra.mrb[0].mxu0 %v1099
      %v1273 = vpop.f32.mrb[0].mxu0
      %v1274 = vadd.f32 %v1177, %v1273
      %v1275 = vpop.f32.mrb[0].mxu0
      %v1276 = vpop.f32.mrb[0].mxu0
      %v1277 = vadd.f32 %v1180, %v1276
      %v1278 = vpop.f32.mrb[0].mxu0
      %1279 = vmatprep.mubr.bf16.mxu0 0
      %1280 = vmatmul.mubr.bf16.gmra.mrb[0].mxu0 %v1102
      %v1281 = vpop.f32.mrb[0].mxu0
      %v1282 = vadd.f32 %v1185, %v1281
      %v1283 = vpop.f32.mrb[0].mxu0
      %v1284 = vpop.f32.mrb[0].mxu0
      %v1285 = vadd.f32 %v1188, %v1284
      %v1286 = vpop.f32.mrb[0].mxu0
      %1287 = vmatprep.mubr.bf16.mxu0 0
      %1288 = vmatmul.mubr.bf16.gmra.mrb[0].mxu0 %v1105
      %v1289 = vpop.f32.mrb[0].mxu0
      %v1290 = vadd.f32 %v1193, %v1289
      %v1291 = vpop.f32.mrb[0].mxu0
      %v1292 = vpop.f32.mrb[0].mxu0
      %v1293 = vadd.f32 %v1196, %v1292
      %v1294 = vpop.f32.mrb[0].mxu0
      %1295 = vmatprep.mubr.bf16.mxu0 0
      %1296 = vmatmul.mubr.bf16.gmra.mrb[0].mxu0 %v1108
      %v1297 = vpop.f32.mrb[0].mxu0
      %v1298 = vadd.f32 %v1201, %v1297
      %v1299 = vpop.f32.mrb[0].mxu0
      %v1300 = vpop.f32.mrb[0].mxu0
      %v1301 = vadd.f32 %v1204, %v1300
      %v1302 = vpop.f32.mrb[0].mxu0
      %1303 = vdwg.mxu0
      %v1304 = vmax.f32 %v1242, 0.0
      %v1305 = vmax.f32 %v1245, 0.0
      %v1306 = vmax.f32 %v1250, 0.0
      %v1307 = vmax.f32 %v1253, 0.0
      %v1308 = vmax.f32 %v1258, 0.0
      %v1309 = vmax.f32 %v1261, 0.0
      %v1310 = vmax.f32 %v1266, 0.0
      %v1311 = vmax.f32 %v1269, 0.0
      %v1312 = vmax.f32 %v1274, 0.0
      %v1313 = vmax.f32 %v1277, 0.0
      %v1314 = vmax.f32 %v1282, 0.0
      %v1315 = vmax.f32 %v1285, 0.0
      %v1316 = vmax.f32 %v1290, 0.0
      %v1317 = vmax.f32 %v1293, 0.0
      %v1318 = vmax.f32 %v1298, 0.0
      %v1319 = vmax.f32 %v1301, 0.0
      %v1320 = vpack.c.bf16 %v1305, %v1304
      %v1321 = vpack.c.bf16 %v1307, %v1306
      %v1322 = vpack.c.bf16 %v1309, %v1308
      %v1323 = vpack.c.bf16 %v1311, %v1310
      %v1324 = vpack.c.bf16 %v1313, %v1312
      %v1325 = vpack.c.bf16 %v1315, %v1314
      %v1326 = vpack.c.bf16 %v1317, %v1316
      %v1327 = vpack.c.bf16 %v1319, %v1318
      %v1336 = vunpack.c.l.b16 %v1320
      %v1337 = vunpack.c.h.b16 %v1320
      %v1338 = vunpack.c.l.b16 %v1321
      %v1339 = vunpack.c.h.b16 %v1321
      %v1340 = vunpack.c.l.b16 %v1322
      %v1341 = vunpack.c.h.b16 %v1322
      %v1342 = vunpack.c.l.b16 %v1323
      %v1343 = vunpack.c.h.b16 %v1323
      %v1344 = vunpack.c.l.b16 %v1324
      %v1345 = vunpack.c.h.b16 %v1324
      %v1346 = vunpack.c.l.b16 %v1325
      %v1347 = vunpack.c.h.b16 %v1325
      %v1348 = vunpack.c.l.b16 %v1326
      %v1349 = vunpack.c.h.b16 %v1326
      %v1350 = vunpack.c.l.b16 %v1327
      %v1351 = vunpack.c.h.b16 %v1327
      %v1352 = vpack.c.b16 %v1336, %v1336
      %v1353 = vpack.c.b16 %v1337, %v1337
      %v1354 = vpack.c.b16 %v1338, %v1338
      %v1355 = vpack.c.b16 %v1339, %v1339
      %v1356 = vpack.c.b16 %v1340, %v1340
      %v1357 = vpack.c.b16 %v1341, %v1341
      %v1358 = vpack.c.b16 %v1342, %v1342
      %v1359 = vpack.c.b16 %v1343, %v1343
      %v1360 = vpack.c.b16 %v1344, %v1344
      %v1361 = vpack.c.b16 %v1345, %v1345
      %v1362 = vpack.c.b16 %v1346, %v1346
      %v1363 = vpack.c.b16 %v1347, %v1347
      %v1364 = vpack.c.b16 %v1348, %v1348
      %v1365 = vpack.c.b16 %v1349, %v1349
      %v1366 = vpack.c.b16 %v1350, %v1350
      %v1367 = vpack.c.b16 %v1351, %v1351
      %vm1384 = vcmask 257024
      %1385 = vst.msk [vmem:[%s288] sm:$0xf] %vm1384, %v1352
      %1386 = vst.msk [vmem:[%s288 + $0x4] sm:$0xf] %vm1384, %v1353
      %1387 = vst.msk [vmem:[%s288 + $0x8] sm:$0xf] %vm1384, %v1354
      %1388 = vst.msk [vmem:[%s288 + $0xc] sm:$0xf] %vm1384, %v1355
      %1389 = vst.msk [vmem:[%s288 + $0x10] sm:$0xf] %vm1384, %v1356
      %1390 = vst.msk [vmem:[%s288 + $0x14] sm:$0xf] %vm1384, %v1357
      %1391 = vst.msk [vmem:[%s288 + $0x18] sm:$0xf] %vm1384, %v1358
      %1392 = vst.msk [vmem:[%s288 + $0x1c] sm:$0xf] %vm1384, %v1359
      %1393 = vst.msk [vmem:[%s288 + $0x20] sm:$0xf] %vm1384, %v1360
      %1394 = vst.msk [vmem:[%s288 + $0x24] sm:$0xf] %vm1384, %v1361
      %1395 = vst.msk [vmem:[%s288 + $0x28] sm:$0xf] %vm1384, %v1362
      %1396 = vst.msk [vmem:[%s288 + $0x2c] sm:$0xf] %vm1384, %v1363
      %1397 = vst.msk [vmem:[%s288 + $0x30] sm:$0xf] %vm1384, %v1364
      %1398 = vst.msk [vmem:[%s288 + $0x34] sm:$0xf] %vm1384, %v1365
      %1399 = vst.msk [vmem:[%s288 + $0x38] sm:$0xf] %vm1384, %v1366
      %1400 = vst.msk [vmem:[%s288 + $0x3c] sm:$0xf] %vm1384, %v1367
      %v1401 = vsel %vm812, %v1304, 0.0
      %v1402 = vsel %vm812, %v1305, 0.0
      %v1403 = vadd.f32 %v1401, %v1402
      %v1404 = vsel %vm812, %v1306, 0.0
      %v1405 = vadd.f32 %v1403, %v1404
      %v1406 = vsel %vm812, %v1307, 0.0
      %v1407 = vadd.f32 %v1405, %v1406
      %v1408 = vsel %vm812, %v1308, 0.0
      %v1409 = vadd.f32 %v1407, %v1408
      %v1410 = vsel %vm812, %v1309, 0.0
      %v1411 = vadd.f32 %v1409, %v1410
      %v1412 = vsel %vm812, %v1310, 0.0
      %v1413 = vadd.f32 %v1411, %v1412
      %v1414 = vsel %vm812, %v1311, 0.0
      %v1415 = vadd.f32 %v1413, %v1414
      %v1416 = vsel %vm812, %v1312, 0.0
      %v1417 = vadd.f32 %v1415, %v1416
      %v1418 = vsel %vm812, %v1313, 0.0
      %v1419 = vadd.f32 %v1417, %v1418
      %v1420 = vsel %vm812, %v1314, 0.0
      %v1421 = vadd.f32 %v1419, %v1420
      %v1422 = vsel %vm812, %v1315, 0.0
      %v1423 = vadd.f32 %v1421, %v1422
      %v1424 = vsel %vm812, %v1316, 0.0
      %v1425 = vadd.f32 %v1423, %v1424
      %v1426 = vsel %vm812, %v1317, 0.0
      %v1427 = vadd.f32 %v1425, %v1426
      %v1428 = vsel %vm812, %v1318, 0.0
      %v1429 = vadd.f32 %v1427, %v1428
      %v1430 = vsel %vm812, %v1319, 0.0
      %v1431 = vadd.f32 %v1429, %v1430
      %v1432 = vrot.slane %v1431, 4
      %v1433 = vadd.f32 %v1431, %v1432
      %v1434 = vrot.slane %v1433, 2
      %v1435 = vadd.f32 %v1433, %v1434
      %v1436 = vrot.slane %v1435, 1
      %v1437 = vadd.f32 %v1435, %v1436
      %v1438 = vmul.f32 %v1437, 0.0078125
      %v1439 = vsub.f32 %v1304, %v1438
      %v1440 = vsub.f32 %v1305, %v1438
      %v1441 = vsub.f32 %v1306, %v1438
      %v1442 = vsub.f32 %v1307, %v1438
      %v1443 = vsub.f32 %v1308, %v1438
      %v1444 = vsub.f32 %v1309, %v1438
      %v1445 = vsub.f32 %v1310, %v1438
      %v1446 = vsub.f32 %v1311, %v1438
      %v1447 = vsub.f32 %v1312, %v1438
      %v1448 = vsub.f32 %v1313, %v1438
      %v1449 = vsub.f32 %v1314, %v1438
      %v1450 = vsub.f32 %v1315, %v1438
      %v1451 = vsub.f32 %v1316, %v1438
      %v1452 = vsub.f32 %v1317, %v1438
      %v1453 = vsub.f32 %v1318, %v1438
      %v1454 = vsub.f32 %v1319, %v1438
      %v1455 = vmul.f32 %v1439, %v1439
      %v1456 = vmul.f32 %v1440, %v1440
      %v1457 = vmul.f32 %v1441, %v1441
      %v1458 = vmul.f32 %v1442, %v1442
      %v1459 = vmul.f32 %v1443, %v1443
      %v1460 = vmul.f32 %v1444, %v1444
      %v1461 = vmul.f32 %v1445, %v1445
      %v1462 = vmul.f32 %v1446, %v1446
      %v1463 = vmul.f32 %v1447, %v1447
      %v1464 = vmul.f32 %v1448, %v1448
      %v1465 = vmul.f32 %v1449, %v1449
      %v1466 = vmul.f32 %v1450, %v1450
      %v1467 = vmul.f32 %v1451, %v1451
      %v1468 = vmul.f32 %v1452, %v1452
      %v1469 = vmul.f32 %v1453, %v1453
      %v1470 = vmul.f32 %v1454, %v1454
      %v1471 = vsel %vm812, %v1455, 0.0
      %v1472 = vsel %vm812, %v1456, 0.0
      %v1473 = vadd.f32 %v1471, %v1472
      %v1474 = vsel %vm812, %v1457, 0.0
      %v1475 = vadd.f32 %v1473, %v1474
      %v1476 = vsel %vm812, %v1458, 0.0
      %v1477 = vadd.f32 %v1475, %v1476
      %v1478 = vsel %vm812, %v1459, 0.0
      %v1479 = vadd.f32 %v1477, %v1478
      %v1480 = vsel %vm812, %v1460, 0.0
      %v1481 = vadd.f32 %v1479, %v1480
      %v1482 = vsel %vm812, %v1461, 0.0
      %v1483 = vadd.f32 %v1481, %v1482
      %v1484 = vsel %vm812, %v1462, 0.0
      %v1485 = vadd.f32 %v1483, %v1484
      %v1486 = vsel %vm812, %v1463, 0.0
      %v1487 = vadd.f32 %v1485, %v1486
      %v1488 = vsel %vm812, %v1464, 0.0
      %v1489 = vadd.f32 %v1487, %v1488
      %v1490 = vsel %vm812, %v1465, 0.0
      %v1491 = vadd.f32 %v1489, %v1490
      %v1492 = vsel %vm812, %v1466, 0.0
      %v1493 = vadd.f32 %v1491, %v1492
      %v1494 = vsel %vm812, %v1467, 0.0
      %v1495 = vadd.f32 %v1493, %v1494
      %v1496 = vsel %vm812, %v1468, 0.0
      %v1497 = vadd.f32 %v1495, %v1496
      %v1498 = vsel %vm812, %v1469, 0.0
      %v1499 = vadd.f32 %v1497, %v1498
      %v1500 = vsel %vm812, %v1470, 0.0
      %v1501 = vadd.f32 %v1499, %v1500
      %v1502 = vrot.slane %v1501, 4
      %v1503 = vadd.f32 %v1501, %v1502
      %v1504 = vrot.slane %v1503, 2
      %v1505 = vadd.f32 %v1503, %v1504
      %v1506 = vrot.slane %v1505, 1
      %v1507 = vadd.f32 %v1505, %v1506
      %vm1508 = vcmask 1040384
      %v1509 = vsel %vm1508, %v1437, %v1507
      %vm1510 = vcmask 254976
      %1511 = vst.msk [vmem:[%s297] sm:$0x3] %vm1510, %v1509
      %s1512 = smul.u32 8, %s23
      %p1513 = scmp.lt.s32.totalorder %s22, 1
      %s1514 = scalar_select %p1513, %s22, 1
      %p1515 = scmp.lt.s32.totalorder %s1512, 15
      %s1516 = scalar_select %p1515, %s1512, 15
      %s1517 = smul.addr %s1516, 2
      %s1518 = smul.addr %s1514, 32
      %s1519 = sadd.s32 %s1517, %s1518
      %s1520 = smul.addr %s1519, 4
      %s1521 = scalar_lea.vmem %s5, %s1520
      %p1522 = scmp.lt.s32.totalorder %s22, 1
      %s1523 = scalar_select %p1522, %s22, 1
      %p1524 = scmp.lt.s32.totalorder %s23, 1
      %s1525 = scalar_select %p1524, %s23, 1
      %s1526 = smul.addr %s1523, 2
      %s1527 = sadd.s32 %s1525, %s1526
      %s1528 = smul.addr %s1527, 2
      %s1529 = scalar_lea.vmem %s6, %s1528
      // Predicated region
      $region41: #{mynet_forward.5} parent=39 // pred_check
        %p1530 = pneg %p160
      $region42: #{mynet_forward.5} parent=39 // pred_check_branch
        %1532 = sbr.rel (%p1530) target = $region44
      $region43: #{mynet_forward.5} parent=39 // pred_region
        %s1533 = smul.u32 8, %s23
      $region44: #{mynet_forward.5} parent=39 // pred_fallthru
        _
      // Predicated region
      $region45: #{mynet_forward.5} parent=39 // pred_check
        %p1534 = pneg %p188
      $region46: #{mynet_forward.5} parent=39 // pred_check_branch
        %1536 = sbr.rel (%p1534) target = $region48
      $region47: #{mynet_forward.5} parent=39 // pred_region
        _
      $region48: #{mynet_forward.5} parent=39 // pred_fallthru
        _
    $region40: #{mynet_forward.5} parent=5 // pred_fallthru
      _
    %p1537 = scmp.le.s32.totalorder 2, %s13
    // Predicated region
    $region49: #{mynet_forward.5} parent=5 // pred_check
      %p1538 = pneg %p1537
    $region50: #{mynet_forward.5} parent=5 // pred_check_branch
      %1540 = sbr.rel (%p1538) target = $region52
    $region51: #{mynet_forward.5} parent=5 // pred_region
      %s1541 = ssub.s32 %s13, 2
      // Predicated region
      $region53: #{mynet_forward.5} parent=51 // pred_check
        %p1542 = pneg %p166
      $region54: #{mynet_forward.5} parent=51 // pred_check_branch
        %1544 = sbr.rel (%p1542) target = $region56
      $region55: #{mynet_forward.5} parent=51 // pred_region
        %s1545 = smul.u32 8, %s25
        %p1546 = scmp.lt.s32.totalorder %s24, 1
        %s1547 = scalar_select %p1546, %s24, 1
        %p1548 = scmp.lt.s32.totalorder %s1545, 15
        %s1549 = scalar_select %p1548, %s1545, 15
        %s1550 = smul.addr %s1549, 2
        %s1551 = smul.addr %s1547, 32
        %s1552 = sadd.s32 %s1550, %s1551
        %s1553 = smul.addr %s1552, 4
        %s1554 = scalar_lea.vmem %s5, %s1553
      $region56: #{mynet_forward.5} parent=51 // pred_fallthru
        _
      // Predicated region
      $region57: #{mynet_forward.5} parent=51 // pred_check
        %p1555 = pneg %p194
      $region58: #{mynet_forward.5} parent=51 // pred_check_branch
        %1557 = sbr.rel (%p1555) target = $region60
      $region59: #{mynet_forward.5} parent=51 // pred_region
        %p1558 = scmp.lt.s32.totalorder %s24, 1
        %s1559 = scalar_select %p1558, %s24, 1
        %p1560 = scmp.lt.s32.totalorder %s25, 1
        %s1561 = scalar_select %p1560, %s25, 1
        %s1562 = smul.addr %s1559, 2
        %s1563 = sadd.s32 %s1561, %s1562
        %s1564 = smul.addr %s1563, 2
        %s1565 = scalar_lea.vmem %s6, %s1564
      $region60: #{mynet_forward.5} parent=51 // pred_fallthru
        _
    $region52: #{mynet_forward.5} parent=5 // pred_fallthru
      _
  $region6: #{mynet_forward.5} parent=0 // loop_footer
    %s17 = sadd.s32 1, %s13
  $region7: #{mynet_forward.5} parent=0 // loop_footer_branch
    %12 = sbr.rel target = $region3
  $region8: #{mynet_forward.5} parent=0 // loop_exit
    _

</llo_original>
